<compile_context>
chip_gen: v5e
topology: v5e:2x2
jax: 0.10.0
libtpu: 0.0.40
codegen_flags: <defaults>
</compile_context>

<pallas_src>
import jax
import jax.numpy as jnp
from jax.experimental import pallas as pl
from jax.experimental.pallas import tpu as pltpu


# ----------------------------------------------------------------------------
# Fused kernel: all LSTM layers + head, single invocation, weights VMEM-resident.
# Gate columns arrive pre-permuted to [i | f | o | g].
# ----------------------------------------------------------------------------
def make_fused_lstm_kernel(num_layers, T, B_pad, H):
    def kernel(*args):
        # args = (x, h0, c0,
        #         [w_ih^T, w_hh^T, bias] * num_layers,
        #         fc1_w^T, fc1_b, fc2_w^T, fc2_b,
        #         out_ref,
        #         gx_scr)
        x_ref, h0_ref, c0_ref = args[0:3]
        layer_refs = [args[3 + 3 * l: 6 + 3 * l] for l in range(num_layers)]
        base = 3 + 3 * num_layers
        fc1w_ref, fc1b_ref, fc2w_ref, fc2b_ref = args[base: base + 4]
        out_ref = args[base + 4]
        gx_scr = args[base + 5]

        src = x_ref[...]                        # (T*B_pad, I) for layer 0
        h_last = None
        for l in range(num_layers):
            wih_ref, whh_ref, b_ref = layer_refs[l]
            last_layer = (l == num_layers - 1)

            # Hoisted input projection for ALL timesteps: one big (T*B_pad, K)
            # x (K, 4H) MXU matmul; fused bias folded in here so the serial
            # recurrence only adds h @ W_hh^T.
            gx_scr[...] = (jnp.dot(src, wih_ref[...],
                                   preferred_element_type=jnp.float32)
                           + b_ref[...])

            h = h0_ref[l]                       # (B_pad, H)
            c = c0_ref[l]                       # (B_pad, H)
            # Loop-invariant RHS of the per-step matmul: loaded once per layer
            # so the MXU weight staging can be hoisted out of the recurrence.
            # TODO(synk): explicit pltpu.matmul_push_rhs/acc_lhs/pop staging.
            whh = whh_ref[...]                  # (H, 4H)

            h_seq = []                          # vreg-resident hidden sequence
            for t in range(T):
                row = t * B_pad                 # static, sublane-aligned (B_pad % 8 == 0)
                gates = gx_scr[pl.ds(row, B_pad), :] + jnp.dot(
                    h, whh, preferred_element_type=jnp.float32)   # (B_pad, 4H)

                # [i|f|o] -> one contiguous 3H-wide sigmoid; g -> H-wide tanh.
                sg = jax.nn.sigmoid(gates[:, 0:3 * H])
                g_g = jnp.tanh(gates[:, 3 * H:4 * H])
                i_g = sg[:, 0 * H:1 * H]
                f_g = sg[:, 1 * H:2 * H]
                o_g = sg[:, 2 * H:3 * H]

                c = f_g * c + i_g * g_g
                h = o_g * jnp.tanh(c)
                if not last_layer:
                    h_seq.append(h)             # stays in registers; no masked vst

            if not last_layer:
                # Next layer's full input sequence assembled in registers
                # (T*B_pad*H*4B = 16 KiB here) instead of a lane-sparse VMEM
                # scratch with per-step masked stores.
                src = jnp.concatenate(h_seq, axis=0)     # (T*B_pad, H)
            h_last = h

        # Head: FC(H->128) -> ReLU -> FC(128->C) -> Sigmoid on final hidden state.
        z = jnp.maximum(
            jnp.dot(h_last, fc1w_ref[...], preferred_element_type=jnp.float32)
            + fc1b_ref[...], 0.0)
        y = (jnp.dot(z, fc2w_ref[...], preferred_element_type=jnp.float32)
             + fc2b_ref[...])
        out_ref[...] = jax.nn.sigmoid(y)

    return kernel


# ----------------------------------------------------------------------------
# Full model forward (matches the PyTorch LSTM module semantics).
#   x: (B, input_size, seq_len)  [the module does x.permute(0, 2, 1) internally]
# ----------------------------------------------------------------------------
def lstm_model_forward(x, params, h0, c0):
    B, I, T = x.shape
    L = len(params["lstm"])
    H = params["lstm"][0]["w_hh"].shape[1]
    C = params["fc2_w"].shape[0]
    B_pad = ((B + 7) // 8) * 8                      # sublane-align the batch

    # Time-major, batch-padded, flattened to (T*B_pad, I) for one big matmul.
    x_tbi = jnp.transpose(x, (2, 0, 1)).astype(jnp.float32)       # (T, B, I)
    x_p = jnp.pad(x_tbi, ((0, 0), (0, B_pad - B), (0, 0)))
    x_flat = x_p.reshape(T * B_pad, I)

    h0_p = jnp.pad(h0.astype(jnp.float32), ((0, 0), (0, B_pad - B), (0, 0)))
    c0_p = jnp.pad(c0.astype(jnp.float32), ((0, 0), (0, B_pad - B), (0, 0)))

    def reorder_gates(w):
        # PyTorch row order [i, f, g, o]  ->  [i, f, o, g] so that the three
        # sigmoid gates are contiguous and g sits in the last H columns.
        i_, f_, g_, o_ = jnp.split(w, 4, axis=0)
        return jnp.concatenate([i_, f_, o_, g_], axis=0)

    args = [x_flat, h0_p, c0_p]
    for p in params["lstm"]:
        args.append(jnp.asarray(reorder_gates(p["w_ih"]).T, jnp.float32))   # (K, 4H)
        args.append(jnp.asarray(reorder_gates(p["w_hh"]).T, jnp.float32))   # (H, 4H)
        fused_b = reorder_gates(p["b_ih"] + p["b_hh"])
        args.append(fused_b.reshape(1, 4 * H).astype(jnp.float32))          # (1, 4H)
    args += [
        jnp.asarray(params["fc_w"].T, jnp.float32),               # (H, 128)
        params["fc_b"].reshape(1, -1).astype(jnp.float32),        # (1, 128)
        jnp.asarray(params["fc2_w"].T, jnp.float32),              # (128, C)
        params["fc2_b"].reshape(1, -1).astype(jnp.float32),       # (1, C)
    ]

    # Advisory cost estimate for the XLA scheduler around the fused call.
    flops = 0
    for p in params["lstm"]:
        K = p["w_ih"].shape[1]
        flops += 2 * T * B_pad * (K + H) * 4 * H
    flops += 2 * B_pad * (H * 128 + 128 * C)
    transcendentals = T * L * B_pad * 5 * H + B_pad * C
    bytes_accessed = int(sum(int(a.size) for a in args) * 4 + B_pad * C * 4)

    kernel = make_fused_lstm_kernel(L, T, B_pad, H)
    out_pad = pl.pallas_call(
        kernel,
        out_shape=jax.ShapeDtypeStruct((B_pad, C), jnp.float32),
        in_specs=[pl.BlockSpec(memory_space=pltpu.MemorySpace.VMEM)] * len(args),
        out_specs=pl.BlockSpec(memory_space=pltpu.MemorySpace.VMEM),
        scratch_shapes=[
            pltpu.VMEM((T * B_pad, 4 * H), jnp.float32),   # hoisted gates_x (lane-dense)
        ],
        compiler_params=pltpu.CompilerParams(
            vmem_limit_bytes=32 * 1024 * 1024),
        cost_estimate=pl.CostEstimate(flops=int(flops),
                                      transcendentals=int(transcendentals),
                                      bytes_accessed=bytes_accessed),
    )(*args)
    return out_pad[:B]


# ----------------------------------------------------------------------------
# Pure-JAX reference (for correctness check) — uses the ORIGINAL gate order.
# ----------------------------------------------------------------------------
def lstm_model_ref(x, params, h0, c0):
    x_bti = jnp.transpose(x, (0, 2, 1)).astype(jnp.float32)   # (B, T, I)
    B, T, _ = x_bti.shape
    inp = x_bti
    for l, p in enumerate(params["lstm"]):
        H = p["w_hh"].shape[1]
        h, c = h0[l], c0[l]
        outs = []
        for t in range(T):
            gates = (inp[:, t, :] @ p["w_ih"].T + p["b_ih"]
                     + h @ p["w_hh"].T + p["b_hh"])
            i = jax.nn.sigmoid(gates[:, 0 * H:1 * H])
            f = jax.nn.sigmoid(gates[:, 1 * H:2 * H])
            g = jnp.tanh(gates[:, 2 * H:3 * H])
            o = jax.nn.sigmoid(gates[:, 3 * H:4 * H])
            c = f * c + i * g
            h = o * jnp.tanh(c)
            outs.append(h)
        inp = jnp.stack(outs, axis=1)
    z = jnp.maximum(inp[:, -1, :] @ params["fc_w"].T + params["fc_b"], 0.0)
    return jax.nn.sigmoid(z @ params["fc2_w"].T + params["fc2_b"])


# ----------------------------------------------------------------------------
# Deterministic parameter init (PyTorch-style uniform(-1/sqrt(H), 1/sqrt(H))).
# ----------------------------------------------------------------------------
def init_params(key, input_size, hidden_size, num_layers, num_classes):
    k = 1.0 / jnp.sqrt(hidden_size)
    params = {"lstm": []}
    for l in range(num_layers):
        in_feat = input_size if l == 0 else hidden_size
        key, k1, k2, k3, k4 = jax.random.split(key, 5)
        params["lstm"].append({
            "w_ih": jax.random.uniform(k1, (4 * hidden_size, in_feat),
                                       minval=-k, maxval=k, dtype=jnp.float32),
            "w_hh": jax.random.uniform(k2, (4 * hidden_size, hidden_size),
                                       minval=-k, maxval=k, dtype=jnp.float32),
            "b_ih": jax.random.uniform(k3, (4 * hidden_size,),
                                       minval=-k, maxval=k, dtype=jnp.float32),
            "b_hh": jax.random.uniform(k4, (4 * hidden_size,),
                                       minval=-k, maxval=k, dtype=jnp.float32),
        })
    key, k1, k2, k3, k4 = jax.random.split(key, 5)
    kf = 1.0 / jnp.sqrt(hidden_size)
    kf2 = 1.0 / jnp.sqrt(128.0)
    params["fc_w"] = jax.random.uniform(k1, (128, hidden_size),
                                        minval=-kf, maxval=kf, dtype=jnp.float32)
    params["fc_b"] = jax.random.uniform(k2, (128,),
                                        minval=-kf, maxval=kf, dtype=jnp.float32)
    params["fc2_w"] = jax.random.uniform(k3, (num_classes, 128),
                                         minval=-kf2, maxval=kf2, dtype=jnp.float32)
    params["fc2_b"] = jax.random.uniform(k4, (num_classes,),
                                         minval=-kf2, maxval=kf2, dtype=jnp.float32)
    return params, key


if __name__ == "__main__":
    batch, input_size, seq_len = 2, 8, 16
    hidden_size, num_layers, num_classes = 32, 2, 4

    root = jax.random.PRNGKey(0)
    params, root = init_params(root, input_size, hidden_size,
                               num_layers, num_classes)

    root, kx, kh, kc = jax.random.split(root, 4)
    x = jax.random.normal(kx, (batch, input_size, seq_len), dtype=jnp.float32)
    # TODO(synk): the PyTorch module draws fresh random h0/c0 inside forward();
    # here they are drawn deterministically outside the kernel and fed to both
    # the kernel and the reference so the numerical check is meaningful.
    h0 = jax.random.normal(kh, (num_layers, batch, hidden_size), dtype=jnp.float32)
    c0 = jax.random.normal(kc, (num_layers, batch, hidden_size), dtype=jnp.float32)

    out = lstm_model_forward(x, params, h0, c0)
    out = jax.block_until_ready(out)

    ref = lstm_model_ref(x, params, h0, c0)
    assert out.shape == (batch, num_classes)
    assert jnp.allclose(out, ref, atol=1e-5, rtol=1e-5), "mismatch vs reference"

    print("KERNEL_OK")
</pallas_src>

<mosaic_0001>
module attributes {stable_mosaic.version = 11 : i64} {
  func.func @kernel(%arg0: memref<128x8xf32, #tpu.memory_space<vmem>>, %arg1: memref<2x8x32xf32, #tpu.memory_space<vmem>>, %arg2: memref<2x8x32xf32, #tpu.memory_space<vmem>>, %arg3: memref<8x128xf32, #tpu.memory_space<vmem>>, %arg4: memref<32x128xf32, #tpu.memory_space<vmem>>, %arg5: memref<1x128xf32, #tpu.memory_space<vmem>>, %arg6: memref<32x128xf32, #tpu.memory_space<vmem>>, %arg7: memref<32x128xf32, #tpu.memory_space<vmem>>, %arg8: memref<1x128xf32, #tpu.memory_space<vmem>>, %arg9: memref<32x128xf32, #tpu.memory_space<vmem>>, %arg10: memref<1x128xf32, #tpu.memory_space<vmem>>, %arg11: memref<128x4xf32, #tpu.memory_space<vmem>>, %arg12: memref<1x4xf32, #tpu.memory_space<vmem>>, %arg13: memref<8x4xf32, #tpu.memory_space<vmem>>, %arg14: memref<128x128xf32, #tpu.memory_space<vmem>>) attributes {dimension_semantics = [], scalar_prefetch = 0 : i64, scratch_operands = 1 : i64, tpu.core_type = #tpu.core_type<tc>} {
    %c0 = arith.constant 0 : index
    %c0_0 = arith.constant 0 : index
    %0 = vector.load %arg0[%c0, %c0_0] : memref<128x8xf32, #tpu.memory_space<vmem>>, vector<128x8xf32>
    %c0_1 = arith.constant 0 : index
    %c0_2 = arith.constant 0 : index
    %1 = vector.load %arg3[%c0_1, %c0_2] : memref<8x128xf32, #tpu.memory_space<vmem>>, vector<8x128xf32>
    %cst = arith.constant dense<0.000000e+00> : vector<128x128xf32>
    %2 = tpu.matmul %0, %1, %cst {dimension_numbers = #tpu.dot_dimension_numbers<[1], [0], [0], [1], [0, 0, 1, 1], [], []>} : vector<128x8xf32>, vector<8x128xf32>, vector<128x128xf32> -> vector<128x128xf32>
    %c0_3 = arith.constant 0 : index
    %c0_4 = arith.constant 0 : index
    %3 = vector.load %arg5[%c0_3, %c0_4] : memref<1x128xf32, #tpu.memory_space<vmem>>, vector<1x128xf32>
    %4 = vector.broadcast %3 : vector<1x128xf32> to vector<128x128xf32>
    %5 = arith.addf %2, %4 : vector<128x128xf32>
    %c0_5 = arith.constant 0 : index
    %c0_6 = arith.constant 0 : index
    %6 = vector.load %arg14[%c0_5, %c0_6] : memref<128x128xf32, #tpu.memory_space<vmem>>, vector<128x128xf32>
    tpu.vector_store %arg14[%c0_5, %c0_6], %5 {strides = array<i32>} : memref<128x128xf32, #tpu.memory_space<vmem>>, vector<128x128xf32>,
    %c0_7 = arith.constant 0 : index
    %c0_8 = arith.constant 0 : index
    %c0_9 = arith.constant 0 : index
    %7 = vector.load %arg1[%c0_7, %c0_8, %c0_9] : memref<2x8x32xf32, #tpu.memory_space<vmem>>, vector<1x8x32xf32>
    %8 = vector.shape_cast %7 : vector<1x8x32xf32> to vector<8x32xf32>
    %c0_10 = arith.constant 0 : index
    %c0_11 = arith.constant 0 : index
    %c0_12 = arith.constant 0 : index
    %9 = vector.load %arg2[%c0_10, %c0_11, %c0_12] : memref<2x8x32xf32, #tpu.memory_space<vmem>>, vector<1x8x32xf32>
    %10 = vector.shape_cast %9 : vector<1x8x32xf32> to vector<8x32xf32>
    %c0_13 = arith.constant 0 : index
    %c0_14 = arith.constant 0 : index
    %11 = vector.load %arg4[%c0_13, %c0_14] : memref<32x128xf32, #tpu.memory_space<vmem>>, vector<32x128xf32>
    %c0_15 = arith.constant 0 : index
    %c0_16 = arith.constant 0 : index
    %12 = vector.load %arg14[%c0_15, %c0_16] : memref<128x128xf32, #tpu.memory_space<vmem>>, vector<8x128xf32>
    %cst_17 = arith.constant dense<0.000000e+00> : vector<8x128xf32>
    %13 = tpu.matmul %8, %11, %cst_17 {dimension_numbers = #tpu.dot_dimension_numbers<[1], [0], [0], [1], [0, 0, 1, 1], [], []>} : vector<8x32xf32>, vector<32x128xf32>, vector<8x128xf32> -> vector<8x128xf32>
    %14 = arith.addf %12, %13 : vector<8x128xf32>
    %15 = vector.extract_strided_slice %14 {offsets = [0, 0], sizes = [8, 96], strides = [1, 1]} : vector<8x128xf32> to vector<8x96xf32>
    %16 = arith.negf %15 : vector<8x96xf32>
    %17 = math.exp %16 : vector<8x96xf32>
    %cst_18 = arith.constant 1.000000e+00 : f32
    %18 = vector.broadcast %cst_18 : f32 to vector<8x96xf32>
    %19 = arith.addf %18, %17 : vector<8x96xf32>
    %20 = arith.divf %18, %19 : vector<8x96xf32>
    %21 = vector.extract_strided_slice %14 {offsets = [0, 96], sizes = [8, 32], strides = [1, 1]} : vector<8x128xf32> to vector<8x32xf32>
    %22 = math.tanh %21 : vector<8x32xf32>
    %23 = vector.extract_strided_slice %20 {offsets = [0, 0], sizes = [8, 32], strides = [1, 1]} : vector<8x96xf32> to vector<8x32xf32>
    %24 = vector.extract_strided_slice %20 {offsets = [0, 32], sizes = [8, 32], strides = [1, 1]} : vector<8x96xf32> to vector<8x32xf32>
    %25 = vector.extract_strided_slice %20 {offsets = [0, 64], sizes = [8, 32], strides = [1, 1]} : vector<8x96xf32> to vector<8x32xf32>
    %26 = arith.mulf %24, %10 : vector<8x32xf32>
    %27 = arith.mulf %23, %22 : vector<8x32xf32>
    %28 = arith.addf %26, %27 : vector<8x32xf32>
    %29 = math.tanh %28 : vector<8x32xf32>
    %30 = arith.mulf %25, %29 : vector<8x32xf32>
    %c8 = arith.constant 8 : index
    %c0_19 = arith.constant 0 : index
    %31 = vector.load %arg14[%c8, %c0_19] : memref<128x128xf32, #tpu.memory_space<vmem>>, vector<8x128xf32>
    %cst_20 = arith.constant dense<0.000000e+00> : vector<8x128xf32>
    %32 = tpu.matmul %30, %11, %cst_20 {dimension_numbers = #tpu.dot_dimension_numbers<[1], [0], [0], [1], [0, 0, 1, 1], [], []>} : vector<8x32xf32>, vector<32x128xf32>, vector<8x128xf32> -> vector<8x128xf32>
    %33 = arith.addf %31, %32 : vector<8x128xf32>
    %34 = vector.extract_strided_slice %33 {offsets = [0, 0], sizes = [8, 96], strides = [1, 1]} : vector<8x128xf32> to vector<8x96xf32>
    %35 = arith.negf %34 : vector<8x96xf32>
    %36 = math.exp %35 : vector<8x96xf32>
    %cst_21 = arith.constant 1.000000e+00 : f32
    %37 = vector.broadcast %cst_21 : f32 to vector<8x96xf32>
    %38 = arith.addf %37, %36 : vector<8x96xf32>
    %39 = arith.divf %37, %38 : vector<8x96xf32>
    %40 = vector.extract_strided_slice %33 {offsets = [0, 96], sizes = [8, 32], strides = [1, 1]} : vector<8x128xf32> to vector<8x32xf32>
    %41 = math.tanh %40 : vector<8x32xf32>
    %42 = vector.extract_strided_slice %39 {offsets = [0, 0], sizes = [8, 32], strides = [1, 1]} : vector<8x96xf32> to vector<8x32xf32>
    %43 = vector.extract_strided_slice %39 {offsets = [0, 32], sizes = [8, 32], strides = [1, 1]} : vector<8x96xf32> to vector<8x32xf32>
    %44 = vector.extract_strided_slice %39 {offsets = [0, 64], sizes = [8, 32], strides = [1, 1]} : vector<8x96xf32> to vector<8x32xf32>
    %45 = arith.mulf %43, %28 : vector<8x32xf32>
    %46 = arith.mulf %42, %41 : vector<8x32xf32>
    %47 = arith.addf %45, %46 : vector<8x32xf32>
    %48 = math.tanh %47 : vector<8x32xf32>
    %49 = arith.mulf %44, %48 : vector<8x32xf32>
    %c16 = arith.constant 16 : index
    %c0_22 = arith.constant 0 : index
    %50 = vector.load %arg14[%c16, %c0_22] : memref<128x128xf32, #tpu.memory_space<vmem>>, vector<8x128xf32>
    %cst_23 = arith.constant dense<0.000000e+00> : vector<8x128xf32>
    %51 = tpu.matmul %49, %11, %cst_23 {dimension_numbers = #tpu.dot_dimension_numbers<[1], [0], [0], [1], [0, 0, 1, 1], [], []>} : vector<8x32xf32>, vector<32x128xf32>, vector<8x128xf32> -> vector<8x128xf32>
    %52 = arith.addf %50, %51 : vector<8x128xf32>
    %53 = vector.extract_strided_slice %52 {offsets = [0, 0], sizes = [8, 96], strides = [1, 1]} : vector<8x128xf32> to vector<8x96xf32>
    %54 = arith.negf %53 : vector<8x96xf32>
    %55 = math.exp %54 : vector<8x96xf32>
    %cst_24 = arith.constant 1.000000e+00 : f32
    %56 = vector.broadcast %cst_24 : f32 to vector<8x96xf32>
    %57 = arith.addf %56, %55 : vector<8x96xf32>
    %58 = arith.divf %56, %57 : vector<8x96xf32>
    %59 = vector.extract_strided_slice %52 {offsets = [0, 96], sizes = [8, 32], strides = [1, 1]} : vector<8x128xf32> to vector<8x32xf32>
    %60 = math.tanh %59 : vector<8x32xf32>
    %61 = vector.extract_strided_slice %58 {offsets = [0, 0], sizes = [8, 32], strides = [1, 1]} : vector<8x96xf32> to vector<8x32xf32>
    %62 = vector.extract_strided_slice %58 {offsets = [0, 32], sizes = [8, 32], strides = [1, 1]} : vector<8x96xf32> to vector<8x32xf32>
    %63 = vector.extract_strided_slice %58 {offsets = [0, 64], sizes = [8, 32], strides = [1, 1]} : vector<8x96xf32> to vector<8x32xf32>
    %64 = arith.mulf %62, %47 : vector<8x32xf32>
    %65 = arith.mulf %61, %60 : vector<8x32xf32>
    %66 = arith.addf %64, %65 : vector<8x32xf32>
    %67 = math.tanh %66 : vector<8x32xf32>
    %68 = arith.mulf %63, %67 : vector<8x32xf32>
    %c24 = arith.constant 24 : index
    %c0_25 = arith.constant 0 : index
    %69 = vector.load %arg14[%c24, %c0_25] : memref<128x128xf32, #tpu.memory_space<vmem>>, vector<8x128xf32>
    %cst_26 = arith.constant dense<0.000000e+00> : vector<8x128xf32>
    %70 = tpu.matmul %68, %11, %cst_26 {dimension_numbers = #tpu.dot_dimension_numbers<[1], [0], [0], [1], [0, 0, 1, 1], [], []>} : vector<8x32xf32>, vector<32x128xf32>, vector<8x128xf32> -> vector<8x128xf32>
    %71 = arith.addf %69, %70 : vector<8x128xf32>
    %72 = vector.extract_strided_slice %71 {offsets = [0, 0], sizes = [8, 96], strides = [1, 1]} : vector<8x128xf32> to vector<8x96xf32>
    %73 = arith.negf %72 : vector<8x96xf32>
    %74 = math.exp %73 : vector<8x96xf32>
    %cst_27 = arith.constant 1.000000e+00 : f32
    %75 = vector.broadcast %cst_27 : f32 to vector<8x96xf32>
    %76 = arith.addf %75, %74 : vector<8x96xf32>
    %77 = arith.divf %75, %76 : vector<8x96xf32>
    %78 = vector.extract_strided_slice %71 {offsets = [0, 96], sizes = [8, 32], strides = [1, 1]} : vector<8x128xf32> to vector<8x32xf32>
    %79 = math.tanh %78 : vector<8x32xf32>
    %80 = vector.extract_strided_slice %77 {offsets = [0, 0], sizes = [8, 32], strides = [1, 1]} : vector<8x96xf32> to vector<8x32xf32>
    %81 = vector.extract_strided_slice %77 {offsets = [0, 32], sizes = [8, 32], strides = [1, 1]} : vector<8x96xf32> to vector<8x32xf32>
    %82 = vector.extract_strided_slice %77 {offsets = [0, 64], sizes = [8, 32], strides = [1, 1]} : vector<8x96xf32> to vector<8x32xf32>
    %83 = arith.mulf %81, %66 : vector<8x32xf32>
    %84 = arith.mulf %80, %79 : vector<8x32xf32>
    %85 = arith.addf %83, %84 : vector<8x32xf32>
    %86 = math.tanh %85 : vector<8x32xf32>
    %87 = arith.mulf %82, %86 : vector<8x32xf32>
    %c32 = arith.constant 32 : index
    %c0_28 = arith.constant 0 : index
    %88 = vector.load %arg14[%c32, %c0_28] : memref<128x128xf32, #tpu.memory_space<vmem>>, vector<8x128xf32>
    %cst_29 = arith.constant dense<0.000000e+00> : vector<8x128xf32>
    %89 = tpu.matmul %87, %11, %cst_29 {dimension_numbers = #tpu.dot_dimension_numbers<[1], [0], [0], [1], [0, 0, 1, 1], [], []>} : vector<8x32xf32>, vector<32x128xf32>, vector<8x128xf32> -> vector<8x128xf32>
    %90 = arith.addf %88, %89 : vector<8x128xf32>
    %91 = vector.extract_strided_slice %90 {offsets = [0, 0], sizes = [8, 96], strides = [1, 1]} : vector<8x128xf32> to vector<8x96xf32>
    %92 = arith.negf %91 : vector<8x96xf32>
    %93 = math.exp %92 : vector<8x96xf32>
    %cst_30 = arith.constant 1.000000e+00 : f32
    %94 = vector.broadcast %cst_30 : f32 to vector<8x96xf32>
    %95 = arith.addf %94, %93 : vector<8x96xf32>
    %96 = arith.divf %94, %95 : vector<8x96xf32>
    %97 = vector.extract_strided_slice %90 {offsets = [0, 96], sizes = [8, 32], strides = [1, 1]} : vector<8x128xf32> to vector<8x32xf32>
    %98 = math.tanh %97 : vector<8x32xf32>
    %99 = vector.extract_strided_slice %96 {offsets = [0, 0], sizes = [8, 32], strides = [1, 1]} : vector<8x96xf32> to vector<8x32xf32>
    %100 = vector.extract_strided_slice %96 {offsets = [0, 32], sizes = [8, 32], strides = [1, 1]} : vector<8x96xf32> to vector<8x32xf32>
    %101 = vector.extract_strided_slice %96 {offsets = [0, 64], sizes = [8, 32], strides = [1, 1]} : vector<8x96xf32> to vector<8x32xf32>
    %102 = arith.mulf %100, %85 : vector<8x32xf32>
    %103 = arith.mulf %99, %98 : vector<8x32xf32>
    %104 = arith.addf %102, %103 : vector<8x32xf32>
    %105 = math.tanh %104 : vector<8x32xf32>
    %106 = arith.mulf %101, %105 : vector<8x32xf32>
    %c40 = arith.constant 40 : index
    %c0_31 = arith.constant 0 : index
    %107 = vector.load %arg14[%c40, %c0_31] : memref<128x128xf32, #tpu.memory_space<vmem>>, vector<8x128xf32>
    %cst_32 = arith.constant dense<0.000000e+00> : vector<8x128xf32>
    %108 = tpu.matmul %106, %11, %cst_32 {dimension_numbers = #tpu.dot_dimension_numbers<[1], [0], [0], [1], [0, 0, 1, 1], [], []>} : vector<8x32xf32>, vector<32x128xf32>, vector<8x128xf32> -> vector<8x128xf32>
    %109 = arith.addf %107, %108 : vector<8x128xf32>
    %110 = vector.extract_strided_slice %109 {offsets = [0, 0], sizes = [8, 96], strides = [1, 1]} : vector<8x128xf32> to vector<8x96xf32>
    %111 = arith.negf %110 : vector<8x96xf32>
    %112 = math.exp %111 : vector<8x96xf32>
    %cst_33 = arith.constant 1.000000e+00 : f32
    %113 = vector.broadcast %cst_33 : f32 to vector<8x96xf32>
    %114 = arith.addf %113, %112 : vector<8x96xf32>
    %115 = arith.divf %113, %114 : vector<8x96xf32>
    %116 = vector.extract_strided_slice %109 {offsets = [0, 96], sizes = [8, 32], strides = [1, 1]} : vector<8x128xf32> to vector<8x32xf32>
    %117 = math.tanh %116 : vector<8x32xf32>
    %118 = vector.extract_strided_slice %115 {offsets = [0, 0], sizes = [8, 32], strides = [1, 1]} : vector<8x96xf32> to vector<8x32xf32>
    %119 = vector.extract_strided_slice %115 {offsets = [0, 32], sizes = [8, 32], strides = [1, 1]} : vector<8x96xf32> to vector<8x32xf32>
    %120 = vector.extract_strided_slice %115 {offsets = [0, 64], sizes = [8, 32], strides = [1, 1]} : vector<8x96xf32> to vector<8x32xf32>
    %121 = arith.mulf %119, %104 : vector<8x32xf32>
    %122 = arith.mulf %118, %117 : vector<8x32xf32>
    %123 = arith.addf %121, %122 : vector<8x32xf32>
    %124 = math.tanh %123 : vector<8x32xf32>
    %125 = arith.mulf %120, %124 : vector<8x32xf32>
    %c48 = arith.constant 48 : index
    %c0_34 = arith.constant 0 : index
    %126 = vector.load %arg14[%c48, %c0_34] : memref<128x128xf32, #tpu.memory_space<vmem>>, vector<8x128xf32>
    %cst_35 = arith.constant dense<0.000000e+00> : vector<8x128xf32>
    %127 = tpu.matmul %125, %11, %cst_35 {dimension_numbers = #tpu.dot_dimension_numbers<[1], [0], [0], [1], [0, 0, 1, 1], [], []>} : vector<8x32xf32>, vector<32x128xf32>, vector<8x128xf32> -> vector<8x128xf32>
    %128 = arith.addf %126, %127 : vector<8x128xf32>
    %129 = vector.extract_strided_slice %128 {offsets = [0, 0], sizes = [8, 96], strides = [1, 1]} : vector<8x128xf32> to vector<8x96xf32>
    %130 = arith.negf %129 : vector<8x96xf32>
    %131 = math.exp %130 : vector<8x96xf32>
    %cst_36 = arith.constant 1.000000e+00 : f32
    %132 = vector.broadcast %cst_36 : f32 to vector<8x96xf32>
    %133 = arith.addf %132, %131 : vector<8x96xf32>
    %134 = arith.divf %132, %133 : vector<8x96xf32>
    %135 = vector.extract_strided_slice %128 {offsets = [0, 96], sizes = [8, 32], strides = [1, 1]} : vector<8x128xf32> to vector<8x32xf32>
    %136 = math.tanh %135 : vector<8x32xf32>
    %137 = vector.extract_strided_slice %134 {offsets = [0, 0], sizes = [8, 32], strides = [1, 1]} : vector<8x96xf32> to vector<8x32xf32>
    %138 = vector.extract_strided_slice %134 {offsets = [0, 32], sizes = [8, 32], strides = [1, 1]} : vector<8x96xf32> to vector<8x32xf32>
    %139 = vector.extract_strided_slice %134 {offsets = [0, 64], sizes = [8, 32], strides = [1, 1]} : vector<8x96xf32> to vector<8x32xf32>
    %140 = arith.mulf %138, %123 : vector<8x32xf32>
    %141 = arith.mulf %137, %136 : vector<8x32xf32>
    %142 = arith.addf %140, %141 : vector<8x32xf32>
    %143 = math.tanh %142 : vector<8x32xf32>
    %144 = arith.mulf %139, %143 : vector<8x32xf32>
    %c56 = arith.constant 56 : index
    %c0_37 = arith.constant 0 : index
    %145 = vector.load %arg14[%c56, %c0_37] : memref<128x128xf32, #tpu.memory_space<vmem>>, vector<8x128xf32>
    %cst_38 = arith.constant dense<0.000000e+00> : vector<8x128xf32>
    %146 = tpu.matmul %144, %11, %cst_38 {dimension_numbers = #tpu.dot_dimension_numbers<[1], [0], [0], [1], [0, 0, 1, 1], [], []>} : vector<8x32xf32>, vector<32x128xf32>, vector<8x128xf32> -> vector<8x128xf32>
    %147 = arith.addf %145, %146 : vector<8x128xf32>
    %148 = vector.extract_strided_slice %147 {offsets = [0, 0], sizes = [8, 96], strides = [1, 1]} : vector<8x128xf32> to vector<8x96xf32>
    %149 = arith.negf %148 : vector<8x96xf32>
    %150 = math.exp %149 : vector<8x96xf32>
    %cst_39 = arith.constant 1.000000e+00 : f32
    %151 = vector.broadcast %cst_39 : f32 to vector<8x96xf32>
    %152 = arith.addf %151, %150 : vector<8x96xf32>
    %153 = arith.divf %151, %152 : vector<8x96xf32>
    %154 = vector.extract_strided_slice %147 {offsets = [0, 96], sizes = [8, 32], strides = [1, 1]} : vector<8x128xf32> to vector<8x32xf32>
    %155 = math.tanh %154 : vector<8x32xf32>
    %156 = vector.extract_strided_slice %153 {offsets = [0, 0], sizes = [8, 32], strides = [1, 1]} : vector<8x96xf32> to vector<8x32xf32>
    %157 = vector.extract_strided_slice %153 {offsets = [0, 32], sizes = [8, 32], strides = [1, 1]} : vector<8x96xf32> to vector<8x32xf32>
    %158 = vector.extract_strided_slice %153 {offsets = [0, 64], sizes = [8, 32], strides = [1, 1]} : vector<8x96xf32> to vector<8x32xf32>
    %159 = arith.mulf %157, %142 : vector<8x32xf32>
    %160 = arith.mulf %156, %155 : vector<8x32xf32>
    %161 = arith.addf %159, %160 : vector<8x32xf32>
    %162 = math.tanh %161 : vector<8x32xf32>
    %163 = arith.mulf %158, %162 : vector<8x32xf32>
    %c64 = arith.constant 64 : index
    %c0_40 = arith.constant 0 : index
    %164 = vector.load %arg14[%c64, %c0_40] : memref<128x128xf32, #tpu.memory_space<vmem>>, vector<8x128xf32>
    %cst_41 = arith.constant dense<0.000000e+00> : vector<8x128xf32>
    %165 = tpu.matmul %163, %11, %cst_41 {dimension_numbers = #tpu.dot_dimension_numbers<[1], [0], [0], [1], [0, 0, 1, 1], [], []>} : vector<8x32xf32>, vector<32x128xf32>, vector<8x128xf32> -> vector<8x128xf32>
    %166 = arith.addf %164, %165 : vector<8x128xf32>
    %167 = vector.extract_strided_slice %166 {offsets = [0, 0], sizes = [8, 96], strides = [1, 1]} : vector<8x128xf32> to vector<8x96xf32>
    %168 = arith.negf %167 : vector<8x96xf32>
    %169 = math.exp %168 : vector<8x96xf32>
    %cst_42 = arith.constant 1.000000e+00 : f32
    %170 = vector.broadcast %cst_42 : f32 to vector<8x96xf32>
    %171 = arith.addf %170, %169 : vector<8x96xf32>
    %172 = arith.divf %170, %171 : vector<8x96xf32>
    %173 = vector.extract_strided_slice %166 {offsets = [0, 96], sizes = [8, 32], strides = [1, 1]} : vector<8x128xf32> to vector<8x32xf32>
    %174 = math.tanh %173 : vector<8x32xf32>
    %175 = vector.extract_strided_slice %172 {offsets = [0, 0], sizes = [8, 32], strides = [1, 1]} : vector<8x96xf32> to vector<8x32xf32>
    %176 = vector.extract_strided_slice %172 {offsets = [0, 32], sizes = [8, 32], strides = [1, 1]} : vector<8x96xf32> to vector<8x32xf32>
    %177 = vector.extract_strided_slice %172 {offsets = [0, 64], sizes = [8, 32], strides = [1, 1]} : vector<8x96xf32> to vector<8x32xf32>
    %178 = arith.mulf %176, %161 : vector<8x32xf32>
    %179 = arith.mulf %175, %174 : vector<8x32xf32>
    %180 = arith.addf %178, %179 : vector<8x32xf32>
    %181 = math.tanh %180 : vector<8x32xf32>
    %182 = arith.mulf %177, %181 : vector<8x32xf32>
    %c72 = arith.constant 72 : index
    %c0_43 = arith.constant 0 : index
    %183 = vector.load %arg14[%c72, %c0_43] : memref<128x128xf32, #tpu.memory_space<vmem>>, vector<8x128xf32>
    %cst_44 = arith.constant dense<0.000000e+00> : vector<8x128xf32>
    %184 = tpu.matmul %182, %11, %cst_44 {dimension_numbers = #tpu.dot_dimension_numbers<[1], [0], [0], [1], [0, 0, 1, 1], [], []>} : vector<8x32xf32>, vector<32x128xf32>, vector<8x128xf32> -> vector<8x128xf32>
    %185 = arith.addf %183, %184 : vector<8x128xf32>
    %186 = vector.extract_strided_slice %185 {offsets = [0, 0], sizes = [8, 96], strides = [1, 1]} : vector<8x128xf32> to vector<8x96xf32>
    %187 = arith.negf %186 : vector<8x96xf32>
    %188 = math.exp %187 : vector<8x96xf32>
    %cst_45 = arith.constant 1.000000e+00 : f32
    %189 = vector.broadcast %cst_45 : f32 to vector<8x96xf32>
    %190 = arith.addf %189, %188 : vector<8x96xf32>
    %191 = arith.divf %189, %190 : vector<8x96xf32>
    %192 = vector.extract_strided_slice %185 {offsets = [0, 96], sizes = [8, 32], strides = [1, 1]} : vector<8x128xf32> to vector<8x32xf32>
    %193 = math.tanh %192 : vector<8x32xf32>
    %194 = vector.extract_strided_slice %191 {offsets = [0, 0], sizes = [8, 32], strides = [1, 1]} : vector<8x96xf32> to vector<8x32xf32>
    %195 = vector.extract_strided_slice %191 {offsets = [0, 32], sizes = [8, 32], strides = [1, 1]} : vector<8x96xf32> to vector<8x32xf32>
    %196 = vector.extract_strided_slice %191 {offsets = [0, 64], sizes = [8, 32], strides = [1, 1]} : vector<8x96xf32> to vector<8x32xf32>
    %197 = arith.mulf %195, %180 : vector<8x32xf32>
    %198 = arith.mulf %194, %193 : vector<8x32xf32>
    %199 = arith.addf %197, %198 : vector<8x32xf32>
    %200 = math.tanh %199 : vector<8x32xf32>
    %201 = arith.mulf %196, %200 : vector<8x32xf32>
    %c80 = arith.constant 80 : index
    %c0_46 = arith.constant 0 : index
    %202 = vector.load %arg14[%c80, %c0_46] : memref<128x128xf32, #tpu.memory_space<vmem>>, vector<8x128xf32>
    %cst_47 = arith.constant dense<0.000000e+00> : vector<8x128xf32>
    %203 = tpu.matmul %201, %11, %cst_47 {dimension_numbers = #tpu.dot_dimension_numbers<[1], [0], [0], [1], [0, 0, 1, 1], [], []>} : vector<8x32xf32>, vector<32x128xf32>, vector<8x128xf32> -> vector<8x128xf32>
    %204 = arith.addf %202, %203 : vector<8x128xf32>
    %205 = vector.extract_strided_slice %204 {offsets = [0, 0], sizes = [8, 96], strides = [1, 1]} : vector<8x128xf32> to vector<8x96xf32>
    %206 = arith.negf %205 : vector<8x96xf32>
    %207 = math.exp %206 : vector<8x96xf32>
    %cst_48 = arith.constant 1.000000e+00 : f32
    %208 = vector.broadcast %cst_48 : f32 to vector<8x96xf32>
    %209 = arith.addf %208, %207 : vector<8x96xf32>
    %210 = arith.divf %208, %209 : vector<8x96xf32>
    %211 = vector.extract_strided_slice %204 {offsets = [0, 96], sizes = [8, 32], strides = [1, 1]} : vector<8x128xf32> to vector<8x32xf32>
    %212 = math.tanh %211 : vector<8x32xf32>
    %213 = vector.extract_strided_slice %210 {offsets = [0, 0], sizes = [8, 32], strides = [1, 1]} : vector<8x96xf32> to vector<8x32xf32>
    %214 = vector.extract_strided_slice %210 {offsets = [0, 32], sizes = [8, 32], strides = [1, 1]} : vector<8x96xf32> to vector<8x32xf32>
    %215 = vector.extract_strided_slice %210 {offsets = [0, 64], sizes = [8, 32], strides = [1, 1]} : vector<8x96xf32> to vector<8x32xf32>
    %216 = arith.mulf %214, %199 : vector<8x32xf32>
    %217 = arith.mulf %213, %212 : vector<8x32xf32>
    %218 = arith.addf %216, %217 : vector<8x32xf32>
    %219 = math.tanh %218 : vector<8x32xf32>
    %220 = arith.mulf %215, %219 : vector<8x32xf32>
    %c88 = arith.constant 88 : index
    %c0_49 = arith.constant 0 : index
    %221 = vector.load %arg14[%c88, %c0_49] : memref<128x128xf32, #tpu.memory_space<vmem>>, vector<8x128xf32>
    %cst_50 = arith.constant dense<0.000000e+00> : vector<8x128xf32>
    %222 = tpu.matmul %220, %11, %cst_50 {dimension_numbers = #tpu.dot_dimension_numbers<[1], [0], [0], [1], [0, 0, 1, 1], [], []>} : vector<8x32xf32>, vector<32x128xf32>, vector<8x128xf32> -> vector<8x128xf32>
    %223 = arith.addf %221, %222 : vector<8x128xf32>
    %224 = vector.extract_strided_slice %223 {offsets = [0, 0], sizes = [8, 96], strides = [1, 1]} : vector<8x128xf32> to vector<8x96xf32>
    %225 = arith.negf %224 : vector<8x96xf32>
    %226 = math.exp %225 : vector<8x96xf32>
    %cst_51 = arith.constant 1.000000e+00 : f32
    %227 = vector.broadcast %cst_51 : f32 to vector<8x96xf32>
    %228 = arith.addf %227, %226 : vector<8x96xf32>
    %229 = arith.divf %227, %228 : vector<8x96xf32>
    %230 = vector.extract_strided_slice %223 {offsets = [0, 96], sizes = [8, 32], strides = [1, 1]} : vector<8x128xf32> to vector<8x32xf32>
    %231 = math.tanh %230 : vector<8x32xf32>
    %232 = vector.extract_strided_slice %229 {offsets = [0, 0], sizes = [8, 32], strides = [1, 1]} : vector<8x96xf32> to vector<8x32xf32>
    %233 = vector.extract_strided_slice %229 {offsets = [0, 32], sizes = [8, 32], strides = [1, 1]} : vector<8x96xf32> to vector<8x32xf32>
    %234 = vector.extract_strided_slice %229 {offsets = [0, 64], sizes = [8, 32], strides = [1, 1]} : vector<8x96xf32> to vector<8x32xf32>
    %235 = arith.mulf %233, %218 : vector<8x32xf32>
    %236 = arith.mulf %232, %231 : vector<8x32xf32>
    %237 = arith.addf %235, %236 : vector<8x32xf32>
    %238 = math.tanh %237 : vector<8x32xf32>
    %239 = arith.mulf %234, %238 : vector<8x32xf32>
    %c96 = arith.constant 96 : index
    %c0_52 = arith.constant 0 : index
    %240 = vector.load %arg14[%c96, %c0_52] : memref<128x128xf32, #tpu.memory_space<vmem>>, vector<8x128xf32>
    %cst_53 = arith.constant dense<0.000000e+00> : vector<8x128xf32>
    %241 = tpu.matmul %239, %11, %cst_53 {dimension_numbers = #tpu.dot_dimension_numbers<[1], [0], [0], [1], [0, 0, 1, 1], [], []>} : vector<8x32xf32>, vector<32x128xf32>, vector<8x128xf32> -> vector<8x128xf32>
    %242 = arith.addf %240, %241 : vector<8x128xf32>
    %243 = vector.extract_strided_slice %242 {offsets = [0, 0], sizes = [8, 96], strides = [1, 1]} : vector<8x128xf32> to vector<8x96xf32>
    %244 = arith.negf %243 : vector<8x96xf32>
    %245 = math.exp %244 : vector<8x96xf32>
    %cst_54 = arith.constant 1.000000e+00 : f32
    %246 = vector.broadcast %cst_54 : f32 to vector<8x96xf32>
    %247 = arith.addf %246, %245 : vector<8x96xf32>
    %248 = arith.divf %246, %247 : vector<8x96xf32>
    %249 = vector.extract_strided_slice %242 {offsets = [0, 96], sizes = [8, 32], strides = [1, 1]} : vector<8x128xf32> to vector<8x32xf32>
    %250 = math.tanh %249 : vector<8x32xf32>
    %251 = vector.extract_strided_slice %248 {offsets = [0, 0], sizes = [8, 32], strides = [1, 1]} : vector<8x96xf32> to vector<8x32xf32>
    %252 = vector.extract_strided_slice %248 {offsets = [0, 32], sizes = [8, 32], strides = [1, 1]} : vector<8x96xf32> to vector<8x32xf32>
    %253 = vector.extract_strided_slice %248 {offsets = [0, 64], sizes = [8, 32], strides = [1, 1]} : vector<8x96xf32> to vector<8x32xf32>
    %254 = arith.mulf %252, %237 : vector<8x32xf32>
    %255 = arith.mulf %251, %250 : vector<8x32xf32>
    %256 = arith.addf %254, %255 : vector<8x32xf32>
    %257 = math.tanh %256 : vector<8x32xf32>
    %258 = arith.mulf %253, %257 : vector<8x32xf32>
    %c104 = arith.constant 104 : index
    %c0_55 = arith.constant 0 : index
    %259 = vector.load %arg14[%c104, %c0_55] : memref<128x128xf32, #tpu.memory_space<vmem>>, vector<8x128xf32>
    %cst_56 = arith.constant dense<0.000000e+00> : vector<8x128xf32>
    %260 = tpu.matmul %258, %11, %cst_56 {dimension_numbers = #tpu.dot_dimension_numbers<[1], [0], [0], [1], [0, 0, 1, 1], [], []>} : vector<8x32xf32>, vector<32x128xf32>, vector<8x128xf32> -> vector<8x128xf32>
    %261 = arith.addf %259, %260 : vector<8x128xf32>
    %262 = vector.extract_strided_slice %261 {offsets = [0, 0], sizes = [8, 96], strides = [1, 1]} : vector<8x128xf32> to vector<8x96xf32>
    %263 = arith.negf %262 : vector<8x96xf32>
    %264 = math.exp %263 : vector<8x96xf32>
    %cst_57 = arith.constant 1.000000e+00 : f32
    %265 = vector.broadcast %cst_57 : f32 to vector<8x96xf32>
    %266 = arith.addf %265, %264 : vector<8x96xf32>
    %267 = arith.divf %265, %266 : vector<8x96xf32>
    %268 = vector.extract_strided_slice %261 {offsets = [0, 96], sizes = [8, 32], strides = [1, 1]} : vector<8x128xf32> to vector<8x32xf32>
    %269 = math.tanh %268 : vector<8x32xf32>
    %270 = vector.extract_strided_slice %267 {offsets = [0, 0], sizes = [8, 32], strides = [1, 1]} : vector<8x96xf32> to vector<8x32xf32>
    %271 = vector.extract_strided_slice %267 {offsets = [0, 32], sizes = [8, 32], strides = [1, 1]} : vector<8x96xf32> to vector<8x32xf32>
    %272 = vector.extract_strided_slice %267 {offsets = [0, 64], sizes = [8, 32], strides = [1, 1]} : vector<8x96xf32> to vector<8x32xf32>
    %273 = arith.mulf %271, %256 : vector<8x32xf32>
    %274 = arith.mulf %270, %269 : vector<8x32xf32>
    %275 = arith.addf %273, %274 : vector<8x32xf32>
    %276 = math.tanh %275 : vector<8x32xf32>
    %277 = arith.mulf %272, %276 : vector<8x32xf32>
    %c112 = arith.constant 112 : index
    %c0_58 = arith.constant 0 : index
    %278 = vector.load %arg14[%c112, %c0_58] : memref<128x128xf32, #tpu.memory_space<vmem>>, vector<8x128xf32>
    %cst_59 = arith.constant dense<0.000000e+00> : vector<8x128xf32>
    %279 = tpu.matmul %277, %11, %cst_59 {dimension_numbers = #tpu.dot_dimension_numbers<[1], [0], [0], [1], [0, 0, 1, 1], [], []>} : vector<8x32xf32>, vector<32x128xf32>, vector<8x128xf32> -> vector<8x128xf32>
    %280 = arith.addf %278, %279 : vector<8x128xf32>
    %281 = vector.extract_strided_slice %280 {offsets = [0, 0], sizes = [8, 96], strides = [1, 1]} : vector<8x128xf32> to vector<8x96xf32>
    %282 = arith.negf %281 : vector<8x96xf32>
    %283 = math.exp %282 : vector<8x96xf32>
    %cst_60 = arith.constant 1.000000e+00 : f32
    %284 = vector.broadcast %cst_60 : f32 to vector<8x96xf32>
    %285 = arith.addf %284, %283 : vector<8x96xf32>
    %286 = arith.divf %284, %285 : vector<8x96xf32>
    %287 = vector.extract_strided_slice %280 {offsets = [0, 96], sizes = [8, 32], strides = [1, 1]} : vector<8x128xf32> to vector<8x32xf32>
    %288 = math.tanh %287 : vector<8x32xf32>
    %289 = vector.extract_strided_slice %286 {offsets = [0, 0], sizes = [8, 32], strides = [1, 1]} : vector<8x96xf32> to vector<8x32xf32>
    %290 = vector.extract_strided_slice %286 {offsets = [0, 32], sizes = [8, 32], strides = [1, 1]} : vector<8x96xf32> to vector<8x32xf32>
    %291 = vector.extract_strided_slice %286 {offsets = [0, 64], sizes = [8, 32], strides = [1, 1]} : vector<8x96xf32> to vector<8x32xf32>
    %292 = arith.mulf %290, %275 : vector<8x32xf32>
    %293 = arith.mulf %289, %288 : vector<8x32xf32>
    %294 = arith.addf %292, %293 : vector<8x32xf32>
    %295 = math.tanh %294 : vector<8x32xf32>
    %296 = arith.mulf %291, %295 : vector<8x32xf32>
    %c120 = arith.constant 120 : index
    %c0_61 = arith.constant 0 : index
    %297 = vector.load %arg14[%c120, %c0_61] : memref<128x128xf32, #tpu.memory_space<vmem>>, vector<8x128xf32>
    %cst_62 = arith.constant dense<0.000000e+00> : vector<8x128xf32>
    %298 = tpu.matmul %296, %11, %cst_62 {dimension_numbers = #tpu.dot_dimension_numbers<[1], [0], [0], [1], [0, 0, 1, 1], [], []>} : vector<8x32xf32>, vector<32x128xf32>, vector<8x128xf32> -> vector<8x128xf32>
    %299 = arith.addf %297, %298 : vector<8x128xf32>
    %300 = vector.extract_strided_slice %299 {offsets = [0, 0], sizes = [8, 96], strides = [1, 1]} : vector<8x128xf32> to vector<8x96xf32>
    %301 = arith.negf %300 : vector<8x96xf32>
    %302 = math.exp %301 : vector<8x96xf32>
    %cst_63 = arith.constant 1.000000e+00 : f32
    %303 = vector.broadcast %cst_63 : f32 to vector<8x96xf32>
    %304 = arith.addf %303, %302 : vector<8x96xf32>
    %305 = arith.divf %303, %304 : vector<8x96xf32>
    %306 = vector.extract_strided_slice %299 {offsets = [0, 96], sizes = [8, 32], strides = [1, 1]} : vector<8x128xf32> to vector<8x32xf32>
    %307 = math.tanh %306 : vector<8x32xf32>
    %308 = vector.extract_strided_slice %305 {offsets = [0, 0], sizes = [8, 32], strides = [1, 1]} : vector<8x96xf32> to vector<8x32xf32>
    %309 = vector.extract_strided_slice %305 {offsets = [0, 32], sizes = [8, 32], strides = [1, 1]} : vector<8x96xf32> to vector<8x32xf32>
    %310 = vector.extract_strided_slice %305 {offsets = [0, 64], sizes = [8, 32], strides = [1, 1]} : vector<8x96xf32> to vector<8x32xf32>
    %311 = arith.mulf %309, %294 : vector<8x32xf32>
    %312 = arith.mulf %308, %307 : vector<8x32xf32>
    %313 = arith.addf %311, %312 : vector<8x32xf32>
    %314 = math.tanh %313 : vector<8x32xf32>
    %315 = arith.mulf %310, %314 : vector<8x32xf32>
    %316 = tpu.concatenate %30, %49, %68, %87, %106, %125, %144, %163, %182, %201, %220, %239, %258, %277, %296, %315 in 0 : vector<8x32xf32>, vector<8x32xf32>, vector<8x32xf32>, vector<8x32xf32>, vector<8x32xf32>, vector<8x32xf32>, vector<8x32xf32>, vector<8x32xf32>, vector<8x32xf32>, vector<8x32xf32>, vector<8x32xf32>, vector<8x32xf32>, vector<8x32xf32>, vector<8x32xf32>, vector<8x32xf32>, vector<8x32xf32> -> vector<128x32xf32>
    %c0_64 = arith.constant 0 : index
    %c0_65 = arith.constant 0 : index
    %317 = vector.load %arg6[%c0_64, %c0_65] : memref<32x128xf32, #tpu.memory_space<vmem>>, vector<32x128xf32>
    %cst_66 = arith.constant dense<0.000000e+00> : vector<128x128xf32>
    %318 = tpu.matmul %316, %317, %cst_66 {dimension_numbers = #tpu.dot_dimension_numbers<[1], [0], [0], [1], [0, 0, 1, 1], [], []>} : vector<128x32xf32>, vector<32x128xf32>, vector<128x128xf32> -> vector<128x128xf32>
    %c0_67 = arith.constant 0 : index
    %c0_68 = arith.constant 0 : index
    %319 = vector.load %arg8[%c0_67, %c0_68] : memref<1x128xf32, #tpu.memory_space<vmem>>, vector<1x128xf32>
    %320 = vector.broadcast %319 : vector<1x128xf32> to vector<128x128xf32>
    %321 = arith.addf %318, %320 : vector<128x128xf32>
    %c0_69 = arith.constant 0 : index
    %c0_70 = arith.constant 0 : index
    %322 = vector.load %arg14[%c0_69, %c0_70] : memref<128x128xf32, #tpu.memory_space<vmem>>, vector<128x128xf32>
    tpu.vector_store %arg14[%c0_69, %c0_70], %321 {strides = array<i32>} : memref<128x128xf32, #tpu.memory_space<vmem>>, vector<128x128xf32>,
    %c1 = arith.constant 1 : index
    %c0_71 = arith.constant 0 : index
    %c0_72 = arith.constant 0 : index
    %323 = vector.load %arg1[%c1, %c0_71, %c0_72] : memref<2x8x32xf32, #tpu.memory_space<vmem>>, vector<1x8x32xf32>
    %324 = vector.shape_cast %323 : vector<1x8x32xf32> to vector<8x32xf32>
    %c1_73 = arith.constant 1 : index
    %c0_74 = arith.constant 0 : index
    %c0_75 = arith.constant 0 : index
    %325 = vector.load %arg2[%c1_73, %c0_74, %c0_75] : memref<2x8x32xf32, #tpu.memory_space<vmem>>, vector<1x8x32xf32>
    %326 = vector.shape_cast %325 : vector<1x8x32xf32> to vector<8x32xf32>
    %c0_76 = arith.constant 0 : index
    %c0_77 = arith.constant 0 : index
    %327 = vector.load %arg7[%c0_76, %c0_77] : memref<32x128xf32, #tpu.memory_space<vmem>>, vector<32x128xf32>
    %c0_78 = arith.constant 0 : index
    %c0_79 = arith.constant 0 : index
    %328 = vector.load %arg14[%c0_78, %c0_79] : memref<128x128xf32, #tpu.memory_space<vmem>>, vector<8x128xf32>
    %cst_80 = arith.constant dense<0.000000e+00> : vector<8x128xf32>
    %329 = tpu.matmul %324, %327, %cst_80 {dimension_numbers = #tpu.dot_dimension_numbers<[1], [0], [0], [1], [0, 0, 1, 1], [], []>} : vector<8x32xf32>, vector<32x128xf32>, vector<8x128xf32> -> vector<8x128xf32>
    %330 = arith.addf %328, %329 : vector<8x128xf32>
    %331 = vector.extract_strided_slice %330 {offsets = [0, 0], sizes = [8, 96], strides = [1, 1]} : vector<8x128xf32> to vector<8x96xf32>
    %332 = arith.negf %331 : vector<8x96xf32>
    %333 = math.exp %332 : vector<8x96xf32>
    %cst_81 = arith.constant 1.000000e+00 : f32
    %334 = vector.broadcast %cst_81 : f32 to vector<8x96xf32>
    %335 = arith.addf %334, %333 : vector<8x96xf32>
    %336 = arith.divf %334, %335 : vector<8x96xf32>
    %337 = vector.extract_strided_slice %330 {offsets = [0, 96], sizes = [8, 32], strides = [1, 1]} : vector<8x128xf32> to vector<8x32xf32>
    %338 = math.tanh %337 : vector<8x32xf32>
    %339 = vector.extract_strided_slice %336 {offsets = [0, 0], sizes = [8, 32], strides = [1, 1]} : vector<8x96xf32> to vector<8x32xf32>
    %340 = vector.extract_strided_slice %336 {offsets = [0, 32], sizes = [8, 32], strides = [1, 1]} : vector<8x96xf32> to vector<8x32xf32>
    %341 = vector.extract_strided_slice %336 {offsets = [0, 64], sizes = [8, 32], strides = [1, 1]} : vector<8x96xf32> to vector<8x32xf32>
    %342 = arith.mulf %340, %326 : vector<8x32xf32>
    %343 = arith.mulf %339, %338 : vector<8x32xf32>
    %344 = arith.addf %342, %343 : vector<8x32xf32>
    %345 = math.tanh %344 : vector<8x32xf32>
    %346 = arith.mulf %341, %345 : vector<8x32xf32>
    %c8_82 = arith.constant 8 : index
    %c0_83 = arith.constant 0 : index
    %347 = vector.load %arg14[%c8_82, %c0_83] : memref<128x128xf32, #tpu.memory_space<vmem>>, vector<8x128xf32>
    %cst_84 = arith.constant dense<0.000000e+00> : vector<8x128xf32>
    %348 = tpu.matmul %346, %327, %cst_84 {dimension_numbers = #tpu.dot_dimension_numbers<[1], [0], [0], [1], [0, 0, 1, 1], [], []>} : vector<8x32xf32>, vector<32x128xf32>, vector<8x128xf32> -> vector<8x128xf32>
    %349 = arith.addf %347, %348 : vector<8x128xf32>
    %350 = vector.extract_strided_slice %349 {offsets = [0, 0], sizes = [8, 96], strides = [1, 1]} : vector<8x128xf32> to vector<8x96xf32>
    %351 = arith.negf %350 : vector<8x96xf32>
    %352 = math.exp %351 : vector<8x96xf32>
    %cst_85 = arith.constant 1.000000e+00 : f32
    %353 = vector.broadcast %cst_85 : f32 to vector<8x96xf32>
    %354 = arith.addf %353, %352 : vector<8x96xf32>
    %355 = arith.divf %353, %354 : vector<8x96xf32>
    %356 = vector.extract_strided_slice %349 {offsets = [0, 96], sizes = [8, 32], strides = [1, 1]} : vector<8x128xf32> to vector<8x32xf32>
    %357 = math.tanh %356 : vector<8x32xf32>
    %358 = vector.extract_strided_slice %355 {offsets = [0, 0], sizes = [8, 32], strides = [1, 1]} : vector<8x96xf32> to vector<8x32xf32>
    %359 = vector.extract_strided_slice %355 {offsets = [0, 32], sizes = [8, 32], strides = [1, 1]} : vector<8x96xf32> to vector<8x32xf32>
    %360 = vector.extract_strided_slice %355 {offsets = [0, 64], sizes = [8, 32], strides = [1, 1]} : vector<8x96xf32> to vector<8x32xf32>
    %361 = arith.mulf %359, %344 : vector<8x32xf32>
    %362 = arith.mulf %358, %357 : vector<8x32xf32>
    %363 = arith.addf %361, %362 : vector<8x32xf32>
    %364 = math.tanh %363 : vector<8x32xf32>
    %365 = arith.mulf %360, %364 : vector<8x32xf32>
    %c16_86 = arith.constant 16 : index
    %c0_87 = arith.constant 0 : index
    %366 = vector.load %arg14[%c16_86, %c0_87] : memref<128x128xf32, #tpu.memory_space<vmem>>, vector<8x128xf32>
    %cst_88 = arith.constant dense<0.000000e+00> : vector<8x128xf32>
    %367 = tpu.matmul %365, %327, %cst_88 {dimension_numbers = #tpu.dot_dimension_numbers<[1], [0], [0], [1], [0, 0, 1, 1], [], []>} : vector<8x32xf32>, vector<32x128xf32>, vector<8x128xf32> -> vector<8x128xf32>
    %368 = arith.addf %366, %367 : vector<8x128xf32>
    %369 = vector.extract_strided_slice %368 {offsets = [0, 0], sizes = [8, 96], strides = [1, 1]} : vector<8x128xf32> to vector<8x96xf32>
    %370 = arith.negf %369 : vector<8x96xf32>
    %371 = math.exp %370 : vector<8x96xf32>
    %cst_89 = arith.constant 1.000000e+00 : f32
    %372 = vector.broadcast %cst_89 : f32 to vector<8x96xf32>
    %373 = arith.addf %372, %371 : vector<8x96xf32>
    %374 = arith.divf %372, %373 : vector<8x96xf32>
    %375 = vector.extract_strided_slice %368 {offsets = [0, 96], sizes = [8, 32], strides = [1, 1]} : vector<8x128xf32> to vector<8x32xf32>
    %376 = math.tanh %375 : vector<8x32xf32>
    %377 = vector.extract_strided_slice %374 {offsets = [0, 0], sizes = [8, 32], strides = [1, 1]} : vector<8x96xf32> to vector<8x32xf32>
    %378 = vector.extract_strided_slice %374 {offsets = [0, 32], sizes = [8, 32], strides = [1, 1]} : vector<8x96xf32> to vector<8x32xf32>
    %379 = vector.extract_strided_slice %374 {offsets = [0, 64], sizes = [8, 32], strides = [1, 1]} : vector<8x96xf32> to vector<8x32xf32>
    %380 = arith.mulf %378, %363 : vector<8x32xf32>
    %381 = arith.mulf %377, %376 : vector<8x32xf32>
    %382 = arith.addf %380, %381 : vector<8x32xf32>
    %383 = math.tanh %382 : vector<8x32xf32>
    %384 = arith.mulf %379, %383 : vector<8x32xf32>
    %c24_90 = arith.constant 24 : index
    %c0_91 = arith.constant 0 : index
    %385 = vector.load %arg14[%c24_90, %c0_91] : memref<128x128xf32, #tpu.memory_space<vmem>>, vector<8x128xf32>
    %cst_92 = arith.constant dense<0.000000e+00> : vector<8x128xf32>
    %386 = tpu.matmul %384, %327, %cst_92 {dimension_numbers = #tpu.dot_dimension_numbers<[1], [0], [0], [1], [0, 0, 1, 1], [], []>} : vector<8x32xf32>, vector<32x128xf32>, vector<8x128xf32> -> vector<8x128xf32>
    %387 = arith.addf %385, %386 : vector<8x128xf32>
    %388 = vector.extract_strided_slice %387 {offsets = [0, 0], sizes = [8, 96], strides = [1, 1]} : vector<8x128xf32> to vector<8x96xf32>
    %389 = arith.negf %388 : vector<8x96xf32>
    %390 = math.exp %389 : vector<8x96xf32>
    %cst_93 = arith.constant 1.000000e+00 : f32
    %391 = vector.broadcast %cst_93 : f32 to vector<8x96xf32>
    %392 = arith.addf %391, %390 : vector<8x96xf32>
    %393 = arith.divf %391, %392 : vector<8x96xf32>
    %394 = vector.extract_strided_slice %387 {offsets = [0, 96], sizes = [8, 32], strides = [1, 1]} : vector<8x128xf32> to vector<8x32xf32>
    %395 = math.tanh %394 : vector<8x32xf32>
    %396 = vector.extract_strided_slice %393 {offsets = [0, 0], sizes = [8, 32], strides = [1, 1]} : vector<8x96xf32> to vector<8x32xf32>
    %397 = vector.extract_strided_slice %393 {offsets = [0, 32], sizes = [8, 32], strides = [1, 1]} : vector<8x96xf32> to vector<8x32xf32>
    %398 = vector.extract_strided_slice %393 {offsets = [0, 64], sizes = [8, 32], strides = [1, 1]} : vector<8x96xf32> to vector<8x32xf32>
    %399 = arith.mulf %397, %382 : vector<8x32xf32>
    %400 = arith.mulf %396, %395 : vector<8x32xf32>
    %401 = arith.addf %399, %400 : vector<8x32xf32>
    %402 = math.tanh %401 : vector<8x32xf32>
    %403 = arith.mulf %398, %402 : vector<8x32xf32>
    %c32_94 = arith.constant 32 : index
    %c0_95 = arith.constant 0 : index
    %404 = vector.load %arg14[%c32_94, %c0_95] : memref<128x128xf32, #tpu.memory_space<vmem>>, vector<8x128xf32>
    %cst_96 = arith.constant dense<0.000000e+00> : vector<8x128xf32>
    %405 = tpu.matmul %403, %327, %cst_96 {dimension_numbers = #tpu.dot_dimension_numbers<[1], [0], [0], [1], [0, 0, 1, 1], [], []>} : vector<8x32xf32>, vector<32x128xf32>, vector<8x128xf32> -> vector<8x128xf32>
    %406 = arith.addf %404, %405 : vector<8x128xf32>
    %407 = vector.extract_strided_slice %406 {offsets = [0, 0], sizes = [8, 96], strides = [1, 1]} : vector<8x128xf32> to vector<8x96xf32>
    %408 = arith.negf %407 : vector<8x96xf32>
    %409 = math.exp %408 : vector<8x96xf32>
    %cst_97 = arith.constant 1.000000e+00 : f32
    %410 = vector.broadcast %cst_97 : f32 to vector<8x96xf32>
    %411 = arith.addf %410, %409 : vector<8x96xf32>
    %412 = arith.divf %410, %411 : vector<8x96xf32>
    %413 = vector.extract_strided_slice %406 {offsets = [0, 96], sizes = [8, 32], strides = [1, 1]} : vector<8x128xf32> to vector<8x32xf32>
    %414 = math.tanh %413 : vector<8x32xf32>
    %415 = vector.extract_strided_slice %412 {offsets = [0, 0], sizes = [8, 32], strides = [1, 1]} : vector<8x96xf32> to vector<8x32xf32>
    %416 = vector.extract_strided_slice %412 {offsets = [0, 32], sizes = [8, 32], strides = [1, 1]} : vector<8x96xf32> to vector<8x32xf32>
    %417 = vector.extract_strided_slice %412 {offsets = [0, 64], sizes = [8, 32], strides = [1, 1]} : vector<8x96xf32> to vector<8x32xf32>
    %418 = arith.mulf %416, %401 : vector<8x32xf32>
    %419 = arith.mulf %415, %414 : vector<8x32xf32>
    %420 = arith.addf %418, %419 : vector<8x32xf32>
    %421 = math.tanh %420 : vector<8x32xf32>
    %422 = arith.mulf %417, %421 : vector<8x32xf32>
    %c40_98 = arith.constant 40 : index
    %c0_99 = arith.constant 0 : index
    %423 = vector.load %arg14[%c40_98, %c0_99] : memref<128x128xf32, #tpu.memory_space<vmem>>, vector<8x128xf32>
    %cst_100 = arith.constant dense<0.000000e+00> : vector<8x128xf32>
    %424 = tpu.matmul %422, %327, %cst_100 {dimension_numbers = #tpu.dot_dimension_numbers<[1], [0], [0], [1], [0, 0, 1, 1], [], []>} : vector<8x32xf32>, vector<32x128xf32>, vector<8x128xf32> -> vector<8x128xf32>
    %425 = arith.addf %423, %424 : vector<8x128xf32>
    %426 = vector.extract_strided_slice %425 {offsets = [0, 0], sizes = [8, 96], strides = [1, 1]} : vector<8x128xf32> to vector<8x96xf32>
    %427 = arith.negf %426 : vector<8x96xf32>
    %428 = math.exp %427 : vector<8x96xf32>
    %cst_101 = arith.constant 1.000000e+00 : f32
    %429 = vector.broadcast %cst_101 : f32 to vector<8x96xf32>
    %430 = arith.addf %429, %428 : vector<8x96xf32>
    %431 = arith.divf %429, %430 : vector<8x96xf32>
    %432 = vector.extract_strided_slice %425 {offsets = [0, 96], sizes = [8, 32], strides = [1, 1]} : vector<8x128xf32> to vector<8x32xf32>
    %433 = math.tanh %432 : vector<8x32xf32>
    %434 = vector.extract_strided_slice %431 {offsets = [0, 0], sizes = [8, 32], strides = [1, 1]} : vector<8x96xf32> to vector<8x32xf32>
    %435 = vector.extract_strided_slice %431 {offsets = [0, 32], sizes = [8, 32], strides = [1, 1]} : vector<8x96xf32> to vector<8x32xf32>
    %436 = vector.extract_strided_slice %431 {offsets = [0, 64], sizes = [8, 32], strides = [1, 1]} : vector<8x96xf32> to vector<8x32xf32>
    %437 = arith.mulf %435, %420 : vector<8x32xf32>
    %438 = arith.mulf %434, %433 : vector<8x32xf32>
    %439 = arith.addf %437, %438 : vector<8x32xf32>
    %440 = math.tanh %439 : vector<8x32xf32>
    %441 = arith.mulf %436, %440 : vector<8x32xf32>
    %c48_102 = arith.constant 48 : index
    %c0_103 = arith.constant 0 : index
    %442 = vector.load %arg14[%c48_102, %c0_103] : memref<128x128xf32, #tpu.memory_space<vmem>>, vector<8x128xf32>
    %cst_104 = arith.constant dense<0.000000e+00> : vector<8x128xf32>
    %443 = tpu.matmul %441, %327, %cst_104 {dimension_numbers = #tpu.dot_dimension_numbers<[1], [0], [0], [1], [0, 0, 1, 1], [], []>} : vector<8x32xf32>, vector<32x128xf32>, vector<8x128xf32> -> vector<8x128xf32>
    %444 = arith.addf %442, %443 : vector<8x128xf32>
    %445 = vector.extract_strided_slice %444 {offsets = [0, 0], sizes = [8, 96], strides = [1, 1]} : vector<8x128xf32> to vector<8x96xf32>
    %446 = arith.negf %445 : vector<8x96xf32>
    %447 = math.exp %446 : vector<8x96xf32>
    %cst_105 = arith.constant 1.000000e+00 : f32
    %448 = vector.broadcast %cst_105 : f32 to vector<8x96xf32>
    %449 = arith.addf %448, %447 : vector<8x96xf32>
    %450 = arith.divf %448, %449 : vector<8x96xf32>
    %451 = vector.extract_strided_slice %444 {offsets = [0, 96], sizes = [8, 32], strides = [1, 1]} : vector<8x128xf32> to vector<8x32xf32>
    %452 = math.tanh %451 : vector<8x32xf32>
    %453 = vector.extract_strided_slice %450 {offsets = [0, 0], sizes = [8, 32], strides = [1, 1]} : vector<8x96xf32> to vector<8x32xf32>
    %454 = vector.extract_strided_slice %450 {offsets = [0, 32], sizes = [8, 32], strides = [1, 1]} : vector<8x96xf32> to vector<8x32xf32>
    %455 = vector.extract_strided_slice %450 {offsets = [0, 64], sizes = [8, 32], strides = [1, 1]} : vector<8x96xf32> to vector<8x32xf32>
    %456 = arith.mulf %454, %439 : vector<8x32xf32>
    %457 = arith.mulf %453, %452 : vector<8x32xf32>
    %458 = arith.addf %456, %457 : vector<8x32xf32>
    %459 = math.tanh %458 : vector<8x32xf32>
    %460 = arith.mulf %455, %459 : vector<8x32xf32>
    %c56_106 = arith.constant 56 : index
    %c0_107 = arith.constant 0 : index
    %461 = vector.load %arg14[%c56_106, %c0_107] : memref<128x128xf32, #tpu.memory_space<vmem>>, vector<8x128xf32>
    %cst_108 = arith.constant dense<0.000000e+00> : vector<8x128xf32>
    %462 = tpu.matmul %460, %327, %cst_108 {dimension_numbers = #tpu.dot_dimension_numbers<[1], [0], [0], [1], [0, 0, 1, 1], [], []>} : vector<8x32xf32>, vector<32x128xf32>, vector<8x128xf32> -> vector<8x128xf32>
    %463 = arith.addf %461, %462 : vector<8x128xf32>
    %464 = vector.extract_strided_slice %463 {offsets = [0, 0], sizes = [8, 96], strides = [1, 1]} : vector<8x128xf32> to vector<8x96xf32>
    %465 = arith.negf %464 : vector<8x96xf32>
    %466 = math.exp %465 : vector<8x96xf32>
    %cst_109 = arith.constant 1.000000e+00 : f32
    %467 = vector.broadcast %cst_109 : f32 to vector<8x96xf32>
    %468 = arith.addf %467, %466 : vector<8x96xf32>
    %469 = arith.divf %467, %468 : vector<8x96xf32>
    %470 = vector.extract_strided_slice %463 {offsets = [0, 96], sizes = [8, 32], strides = [1, 1]} : vector<8x128xf32> to vector<8x32xf32>
    %471 = math.tanh %470 : vector<8x32xf32>
    %472 = vector.extract_strided_slice %469 {offsets = [0, 0], sizes = [8, 32], strides = [1, 1]} : vector<8x96xf32> to vector<8x32xf32>
    %473 = vector.extract_strided_slice %469 {offsets = [0, 32], sizes = [8, 32], strides = [1, 1]} : vector<8x96xf32> to vector<8x32xf32>
    %474 = vector.extract_strided_slice %469 {offsets = [0, 64], sizes = [8, 32], strides = [1, 1]} : vector<8x96xf32> to vector<8x32xf32>
    %475 = arith.mulf %473, %458 : vector<8x32xf32>
    %476 = arith.mulf %472, %471 : vector<8x32xf32>
    %477 = arith.addf %475, %476 : vector<8x32xf32>
    %478 = math.tanh %477 : vector<8x32xf32>
    %479 = arith.mulf %474, %478 : vector<8x32xf32>
    %c64_110 = arith.constant 64 : index
    %c0_111 = arith.constant 0 : index
    %480 = vector.load %arg14[%c64_110, %c0_111] : memref<128x128xf32, #tpu.memory_space<vmem>>, vector<8x128xf32>
    %cst_112 = arith.constant dense<0.000000e+00> : vector<8x128xf32>
    %481 = tpu.matmul %479, %327, %cst_112 {dimension_numbers = #tpu.dot_dimension_numbers<[1], [0], [0], [1], [0, 0, 1, 1], [], []>} : vector<8x32xf32>, vector<32x128xf32>, vector<8x128xf32> -> vector<8x128xf32>
    %482 = arith.addf %480, %481 : vector<8x128xf32>
    %483 = vector.extract_strided_slice %482 {offsets = [0, 0], sizes = [8, 96], strides = [1, 1]} : vector<8x128xf32> to vector<8x96xf32>
    %484 = arith.negf %483 : vector<8x96xf32>
    %485 = math.exp %484 : vector<8x96xf32>
    %cst_113 = arith.constant 1.000000e+00 : f32
    %486 = vector.broadcast %cst_113 : f32 to vector<8x96xf32>
    %487 = arith.addf %486, %485 : vector<8x96xf32>
    %488 = arith.divf %486, %487 : vector<8x96xf32>
    %489 = vector.extract_strided_slice %482 {offsets = [0, 96], sizes = [8, 32], strides = [1, 1]} : vector<8x128xf32> to vector<8x32xf32>
    %490 = math.tanh %489 : vector<8x32xf32>
    %491 = vector.extract_strided_slice %488 {offsets = [0, 0], sizes = [8, 32], strides = [1, 1]} : vector<8x96xf32> to vector<8x32xf32>
    %492 = vector.extract_strided_slice %488 {offsets = [0, 32], sizes = [8, 32], strides = [1, 1]} : vector<8x96xf32> to vector<8x32xf32>
    %493 = vector.extract_strided_slice %488 {offsets = [0, 64], sizes = [8, 32], strides = [1, 1]} : vector<8x96xf32> to vector<8x32xf32>
    %494 = arith.mulf %492, %477 : vector<8x32xf32>
    %495 = arith.mulf %491, %490 : vector<8x32xf32>
    %496 = arith.addf %494, %495 : vector<8x32xf32>
    %497 = math.tanh %496 : vector<8x32xf32>
    %498 = arith.mulf %493, %497 : vector<8x32xf32>
    %c72_114 = arith.constant 72 : index
    %c0_115 = arith.constant 0 : index
    %499 = vector.load %arg14[%c72_114, %c0_115] : memref<128x128xf32, #tpu.memory_space<vmem>>, vector<8x128xf32>
    %cst_116 = arith.constant dense<0.000000e+00> : vector<8x128xf32>
    %500 = tpu.matmul %498, %327, %cst_116 {dimension_numbers = #tpu.dot_dimension_numbers<[1], [0], [0], [1], [0, 0, 1, 1], [], []>} : vector<8x32xf32>, vector<32x128xf32>, vector<8x128xf32> -> vector<8x128xf32>
    %501 = arith.addf %499, %500 : vector<8x128xf32>
    %502 = vector.extract_strided_slice %501 {offsets = [0, 0], sizes = [8, 96], strides = [1, 1]} : vector<8x128xf32> to vector<8x96xf32>
    %503 = arith.negf %502 : vector<8x96xf32>
    %504 = math.exp %503 : vector<8x96xf32>
    %cst_117 = arith.constant 1.000000e+00 : f32
    %505 = vector.broadcast %cst_117 : f32 to vector<8x96xf32>
    %506 = arith.addf %505, %504 : vector<8x96xf32>
    %507 = arith.divf %505, %506 : vector<8x96xf32>
    %508 = vector.extract_strided_slice %501 {offsets = [0, 96], sizes = [8, 32], strides = [1, 1]} : vector<8x128xf32> to vector<8x32xf32>
    %509 = math.tanh %508 : vector<8x32xf32>
    %510 = vector.extract_strided_slice %507 {offsets = [0, 0], sizes = [8, 32], strides = [1, 1]} : vector<8x96xf32> to vector<8x32xf32>
    %511 = vector.extract_strided_slice %507 {offsets = [0, 32], sizes = [8, 32], strides = [1, 1]} : vector<8x96xf32> to vector<8x32xf32>
    %512 = vector.extract_strided_slice %507 {offsets = [0, 64], sizes = [8, 32], strides = [1, 1]} : vector<8x96xf32> to vector<8x32xf32>
    %513 = arith.mulf %511, %496 : vector<8x32xf32>
    %514 = arith.mulf %510, %509 : vector<8x32xf32>
    %515 = arith.addf %513, %514 : vector<8x32xf32>
    %516 = math.tanh %515 : vector<8x32xf32>
    %517 = arith.mulf %512, %516 : vector<8x32xf32>
    %c80_118 = arith.constant 80 : index
    %c0_119 = arith.constant 0 : index
    %518 = vector.load %arg14[%c80_118, %c0_119] : memref<128x128xf32, #tpu.memory_space<vmem>>, vector<8x128xf32>
    %cst_120 = arith.constant dense<0.000000e+00> : vector<8x128xf32>
    %519 = tpu.matmul %517, %327, %cst_120 {dimension_numbers = #tpu.dot_dimension_numbers<[1], [0], [0], [1], [0, 0, 1, 1], [], []>} : vector<8x32xf32>, vector<32x128xf32>, vector<8x128xf32> -> vector<8x128xf32>
    %520 = arith.addf %518, %519 : vector<8x128xf32>
    %521 = vector.extract_strided_slice %520 {offsets = [0, 0], sizes = [8, 96], strides = [1, 1]} : vector<8x128xf32> to vector<8x96xf32>
    %522 = arith.negf %521 : vector<8x96xf32>
    %523 = math.exp %522 : vector<8x96xf32>
    %cst_121 = arith.constant 1.000000e+00 : f32
    %524 = vector.broadcast %cst_121 : f32 to vector<8x96xf32>
    %525 = arith.addf %524, %523 : vector<8x96xf32>
    %526 = arith.divf %524, %525 : vector<8x96xf32>
    %527 = vector.extract_strided_slice %520 {offsets = [0, 96], sizes = [8, 32], strides = [1, 1]} : vector<8x128xf32> to vector<8x32xf32>
    %528 = math.tanh %527 : vector<8x32xf32>
    %529 = vector.extract_strided_slice %526 {offsets = [0, 0], sizes = [8, 32], strides = [1, 1]} : vector<8x96xf32> to vector<8x32xf32>
    %530 = vector.extract_strided_slice %526 {offsets = [0, 32], sizes = [8, 32], strides = [1, 1]} : vector<8x96xf32> to vector<8x32xf32>
    %531 = vector.extract_strided_slice %526 {offsets = [0, 64], sizes = [8, 32], strides = [1, 1]} : vector<8x96xf32> to vector<8x32xf32>
    %532 = arith.mulf %530, %515 : vector<8x32xf32>
    %533 = arith.mulf %529, %528 : vector<8x32xf32>
    %534 = arith.addf %532, %533 : vector<8x32xf32>
    %535 = math.tanh %534 : vector<8x32xf32>
    %536 = arith.mulf %531, %535 : vector<8x32xf32>
    %c88_122 = arith.constant 88 : index
    %c0_123 = arith.constant 0 : index
    %537 = vector.load %arg14[%c88_122, %c0_123] : memref<128x128xf32, #tpu.memory_space<vmem>>, vector<8x128xf32>
    %cst_124 = arith.constant dense<0.000000e+00> : vector<8x128xf32>
    %538 = tpu.matmul %536, %327, %cst_124 {dimension_numbers = #tpu.dot_dimension_numbers<[1], [0], [0], [1], [0, 0, 1, 1], [], []>} : vector<8x32xf32>, vector<32x128xf32>, vector<8x128xf32> -> vector<8x128xf32>
    %539 = arith.addf %537, %538 : vector<8x128xf32>
    %540 = vector.extract_strided_slice %539 {offsets = [0, 0], sizes = [8, 96], strides = [1, 1]} : vector<8x128xf32> to vector<8x96xf32>
    %541 = arith.negf %540 : vector<8x96xf32>
    %542 = math.exp %541 : vector<8x96xf32>
    %cst_125 = arith.constant 1.000000e+00 : f32
    %543 = vector.broadcast %cst_125 : f32 to vector<8x96xf32>
    %544 = arith.addf %543, %542 : vector<8x96xf32>
    %545 = arith.divf %543, %544 : vector<8x96xf32>
    %546 = vector.extract_strided_slice %539 {offsets = [0, 96], sizes = [8, 32], strides = [1, 1]} : vector<8x128xf32> to vector<8x32xf32>
    %547 = math.tanh %546 : vector<8x32xf32>
    %548 = vector.extract_strided_slice %545 {offsets = [0, 0], sizes = [8, 32], strides = [1, 1]} : vector<8x96xf32> to vector<8x32xf32>
    %549 = vector.extract_strided_slice %545 {offsets = [0, 32], sizes = [8, 32], strides = [1, 1]} : vector<8x96xf32> to vector<8x32xf32>
    %550 = vector.extract_strided_slice %545 {offsets = [0, 64], sizes = [8, 32], strides = [1, 1]} : vector<8x96xf32> to vector<8x32xf32>
    %551 = arith.mulf %549, %534 : vector<8x32xf32>
    %552 = arith.mulf %548, %547 : vector<8x32xf32>
    %553 = arith.addf %551, %552 : vector<8x32xf32>
    %554 = math.tanh %553 : vector<8x32xf32>
    %555 = arith.mulf %550, %554 : vector<8x32xf32>
    %c96_126 = arith.constant 96 : index
    %c0_127 = arith.constant 0 : index
    %556 = vector.load %arg14[%c96_126, %c0_127] : memref<128x128xf32, #tpu.memory_space<vmem>>, vector<8x128xf32>
    %cst_128 = arith.constant dense<0.000000e+00> : vector<8x128xf32>
    %557 = tpu.matmul %555, %327, %cst_128 {dimension_numbers = #tpu.dot_dimension_numbers<[1], [0], [0], [1], [0, 0, 1, 1], [], []>} : vector<8x32xf32>, vector<32x128xf32>, vector<8x128xf32> -> vector<8x128xf32>
    %558 = arith.addf %556, %557 : vector<8x128xf32>
    %559 = vector.extract_strided_slice %558 {offsets = [0, 0], sizes = [8, 96], strides = [1, 1]} : vector<8x128xf32> to vector<8x96xf32>
    %560 = arith.negf %559 : vector<8x96xf32>
    %561 = math.exp %560 : vector<8x96xf32>
    %cst_129 = arith.constant 1.000000e+00 : f32
    %562 = vector.broadcast %cst_129 : f32 to vector<8x96xf32>
    %563 = arith.addf %562, %561 : vector<8x96xf32>
    %564 = arith.divf %562, %563 : vector<8x96xf32>
    %565 = vector.extract_strided_slice %558 {offsets = [0, 96], sizes = [8, 32], strides = [1, 1]} : vector<8x128xf32> to vector<8x32xf32>
    %566 = math.tanh %565 : vector<8x32xf32>
    %567 = vector.extract_strided_slice %564 {offsets = [0, 0], sizes = [8, 32], strides = [1, 1]} : vector<8x96xf32> to vector<8x32xf32>
    %568 = vector.extract_strided_slice %564 {offsets = [0, 32], sizes = [8, 32], strides = [1, 1]} : vector<8x96xf32> to vector<8x32xf32>
    %569 = vector.extract_strided_slice %564 {offsets = [0, 64], sizes = [8, 32], strides = [1, 1]} : vector<8x96xf32> to vector<8x32xf32>
    %570 = arith.mulf %568, %553 : vector<8x32xf32>
    %571 = arith.mulf %567, %566 : vector<8x32xf32>
    %572 = arith.addf %570, %571 : vector<8x32xf32>
    %573 = math.tanh %572 : vector<8x32xf32>
    %574 = arith.mulf %569, %573 : vector<8x32xf32>
    %c104_130 = arith.constant 104 : index
    %c0_131 = arith.constant 0 : index
    %575 = vector.load %arg14[%c104_130, %c0_131] : memref<128x128xf32, #tpu.memory_space<vmem>>, vector<8x128xf32>
    %cst_132 = arith.constant dense<0.000000e+00> : vector<8x128xf32>
    %576 = tpu.matmul %574, %327, %cst_132 {dimension_numbers = #tpu.dot_dimension_numbers<[1], [0], [0], [1], [0, 0, 1, 1], [], []>} : vector<8x32xf32>, vector<32x128xf32>, vector<8x128xf32> -> vector<8x128xf32>
    %577 = arith.addf %575, %576 : vector<8x128xf32>
    %578 = vector.extract_strided_slice %577 {offsets = [0, 0], sizes = [8, 96], strides = [1, 1]} : vector<8x128xf32> to vector<8x96xf32>
    %579 = arith.negf %578 : vector<8x96xf32>
    %580 = math.exp %579 : vector<8x96xf32>
    %cst_133 = arith.constant 1.000000e+00 : f32
    %581 = vector.broadcast %cst_133 : f32 to vector<8x96xf32>
    %582 = arith.addf %581, %580 : vector<8x96xf32>
    %583 = arith.divf %581, %582 : vector<8x96xf32>
    %584 = vector.extract_strided_slice %577 {offsets = [0, 96], sizes = [8, 32], strides = [1, 1]} : vector<8x128xf32> to vector<8x32xf32>
    %585 = math.tanh %584 : vector<8x32xf32>
    %586 = vector.extract_strided_slice %583 {offsets = [0, 0], sizes = [8, 32], strides = [1, 1]} : vector<8x96xf32> to vector<8x32xf32>
    %587 = vector.extract_strided_slice %583 {offsets = [0, 32], sizes = [8, 32], strides = [1, 1]} : vector<8x96xf32> to vector<8x32xf32>
    %588 = vector.extract_strided_slice %583 {offsets = [0, 64], sizes = [8, 32], strides = [1, 1]} : vector<8x96xf32> to vector<8x32xf32>
    %589 = arith.mulf %587, %572 : vector<8x32xf32>
    %590 = arith.mulf %586, %585 : vector<8x32xf32>
    %591 = arith.addf %589, %590 : vector<8x32xf32>
    %592 = math.tanh %591 : vector<8x32xf32>
    %593 = arith.mulf %588, %592 : vector<8x32xf32>
    %c112_134 = arith.constant 112 : index
    %c0_135 = arith.constant 0 : index
    %594 = vector.load %arg14[%c112_134, %c0_135] : memref<128x128xf32, #tpu.memory_space<vmem>>, vector<8x128xf32>
    %cst_136 = arith.constant dense<0.000000e+00> : vector<8x128xf32>
    %595 = tpu.matmul %593, %327, %cst_136 {dimension_numbers = #tpu.dot_dimension_numbers<[1], [0], [0], [1], [0, 0, 1, 1], [], []>} : vector<8x32xf32>, vector<32x128xf32>, vector<8x128xf32> -> vector<8x128xf32>
    %596 = arith.addf %594, %595 : vector<8x128xf32>
    %597 = vector.extract_strided_slice %596 {offsets = [0, 0], sizes = [8, 96], strides = [1, 1]} : vector<8x128xf32> to vector<8x96xf32>
    %598 = arith.negf %597 : vector<8x96xf32>
    %599 = math.exp %598 : vector<8x96xf32>
    %cst_137 = arith.constant 1.000000e+00 : f32
    %600 = vector.broadcast %cst_137 : f32 to vector<8x96xf32>
    %601 = arith.addf %600, %599 : vector<8x96xf32>
    %602 = arith.divf %600, %601 : vector<8x96xf32>
    %603 = vector.extract_strided_slice %596 {offsets = [0, 96], sizes = [8, 32], strides = [1, 1]} : vector<8x128xf32> to vector<8x32xf32>
    %604 = math.tanh %603 : vector<8x32xf32>
    %605 = vector.extract_strided_slice %602 {offsets = [0, 0], sizes = [8, 32], strides = [1, 1]} : vector<8x96xf32> to vector<8x32xf32>
    %606 = vector.extract_strided_slice %602 {offsets = [0, 32], sizes = [8, 32], strides = [1, 1]} : vector<8x96xf32> to vector<8x32xf32>
    %607 = vector.extract_strided_slice %602 {offsets = [0, 64], sizes = [8, 32], strides = [1, 1]} : vector<8x96xf32> to vector<8x32xf32>
    %608 = arith.mulf %606, %591 : vector<8x32xf32>
    %609 = arith.mulf %605, %604 : vector<8x32xf32>
    %610 = arith.addf %608, %609 : vector<8x32xf32>
    %611 = math.tanh %610 : vector<8x32xf32>
    %612 = arith.mulf %607, %611 : vector<8x32xf32>
    %c120_138 = arith.constant 120 : index
    %c0_139 = arith.constant 0 : index
    %613 = vector.load %arg14[%c120_138, %c0_139] : memref<128x128xf32, #tpu.memory_space<vmem>>, vector<8x128xf32>
    %cst_140 = arith.constant dense<0.000000e+00> : vector<8x128xf32>
    %614 = tpu.matmul %612, %327, %cst_140 {dimension_numbers = #tpu.dot_dimension_numbers<[1], [0], [0], [1], [0, 0, 1, 1], [], []>} : vector<8x32xf32>, vector<32x128xf32>, vector<8x128xf32> -> vector<8x128xf32>
    %615 = arith.addf %613, %614 : vector<8x128xf32>
    %616 = vector.extract_strided_slice %615 {offsets = [0, 0], sizes = [8, 96], strides = [1, 1]} : vector<8x128xf32> to vector<8x96xf32>
    %617 = arith.negf %616 : vector<8x96xf32>
    %618 = math.exp %617 : vector<8x96xf32>
    %cst_141 = arith.constant 1.000000e+00 : f32
    %619 = vector.broadcast %cst_141 : f32 to vector<8x96xf32>
    %620 = arith.addf %619, %618 : vector<8x96xf32>
    %621 = arith.divf %619, %620 : vector<8x96xf32>
    %622 = vector.extract_strided_slice %615 {offsets = [0, 96], sizes = [8, 32], strides = [1, 1]} : vector<8x128xf32> to vector<8x32xf32>
    %623 = math.tanh %622 : vector<8x32xf32>
    %624 = vector.extract_strided_slice %621 {offsets = [0, 0], sizes = [8, 32], strides = [1, 1]} : vector<8x96xf32> to vector<8x32xf32>
    %625 = vector.extract_strided_slice %621 {offsets = [0, 32], sizes = [8, 32], strides = [1, 1]} : vector<8x96xf32> to vector<8x32xf32>
    %626 = vector.extract_strided_slice %621 {offsets = [0, 64], sizes = [8, 32], strides = [1, 1]} : vector<8x96xf32> to vector<8x32xf32>
    %627 = arith.mulf %625, %610 : vector<8x32xf32>
    %628 = arith.mulf %624, %623 : vector<8x32xf32>
    %629 = arith.addf %627, %628 : vector<8x32xf32>
    %630 = math.tanh %629 : vector<8x32xf32>
    %631 = arith.mulf %626, %630 : vector<8x32xf32>
    %c0_142 = arith.constant 0 : index
    %c0_143 = arith.constant 0 : index
    %632 = vector.load %arg9[%c0_142, %c0_143] : memref<32x128xf32, #tpu.memory_space<vmem>>, vector<32x128xf32>
    %cst_144 = arith.constant dense<0.000000e+00> : vector<8x128xf32>
    %633 = tpu.matmul %631, %632, %cst_144 {dimension_numbers = #tpu.dot_dimension_numbers<[1], [0], [0], [1], [0, 0, 1, 1], [], []>} : vector<8x32xf32>, vector<32x128xf32>, vector<8x128xf32> -> vector<8x128xf32>
    %c0_145 = arith.constant 0 : index
    %c0_146 = arith.constant 0 : index
    %634 = vector.load %arg10[%c0_145, %c0_146] : memref<1x128xf32, #tpu.memory_space<vmem>>, vector<1x128xf32>
    %635 = vector.broadcast %634 : vector<1x128xf32> to vector<8x128xf32>
    %636 = arith.addf %633, %635 : vector<8x128xf32>
    %cst_147 = arith.constant 0.000000e+00 : f32
    %637 = vector.broadcast %cst_147 : f32 to vector<8x128xf32>
    %638 = arith.maximumf %636, %637 : vector<8x128xf32>
    %c0_148 = arith.constant 0 : index
    %c0_149 = arith.constant 0 : index
    %639 = vector.load %arg11[%c0_148, %c0_149] : memref<128x4xf32, #tpu.memory_space<vmem>>, vector<128x4xf32>
    %cst_150 = arith.constant dense<0.000000e+00> : vector<8x4xf32>
    %640 = tpu.matmul %638, %639, %cst_150 {dimension_numbers = #tpu.dot_dimension_numbers<[1], [0], [0], [1], [0, 0, 1, 1], [], []>} : vector<8x128xf32>, vector<128x4xf32>, vector<8x4xf32> -> vector<8x4xf32>
    %c0_151 = arith.constant 0 : index
    %c0_152 = arith.constant 0 : index
    %641 = vector.load %arg12[%c0_151, %c0_152] : memref<1x4xf32, #tpu.memory_space<vmem>>, vector<1x4xf32>
    %642 = vector.broadcast %641 : vector<1x4xf32> to vector<8x4xf32>
    %643 = arith.addf %640, %642 : vector<8x4xf32>
    %644 = arith.negf %643 : vector<8x4xf32>
    %645 = math.exp %644 : vector<8x4xf32>
    %cst_153 = arith.constant 1.000000e+00 : f32
    %646 = vector.broadcast %cst_153 : f32 to vector<8x4xf32>
    %647 = arith.addf %646, %645 : vector<8x4xf32>
    %648 = arith.divf %646, %647 : vector<8x4xf32>
    %c0_154 = arith.constant 0 : index
    %c0_155 = arith.constant 0 : index
    %649 = vector.load %arg13[%c0_154, %c0_155] : memref<8x4xf32, #tpu.memory_space<vmem>>, vector<8x4xf32>
    tpu.vector_store %arg13[%c0_154, %c0_155], %648 {strides = array<i32>} : memref<8x4xf32, #tpu.memory_space<vmem>>, vector<8x4xf32>,
    return
  }
}

</mosaic_0001>

<llo_original>
// kernel: tpu_custom_call.1
$region0: #{tpu_custom_call.1}
  #allocation0 [shape = 'u32[]', space=smem, size = 0x4, offset = 0x4, fixed_abs, tag = 'smem constant byte address 0x4 - core index']
  #allocation1 [shape = 'u32[72,128]{1,0:T(1,128)}', space=vmem, size = 0x9000, scoped, tag = 'internal scratch']
  #allocation2 [shape = 'f32[128,128]{1,0:T(8,128)}', space=vmem, size = 0x10000, scoped, tag = 'scratch operand']
  %s0 = inlined_call_operand.vmem [shape: f32[128,8], index: 0, kind: input, shape index: {}]
  %s1 = inlined_call_operand.vmem [shape: f32[2,8,32], index: 1, kind: input, shape index: {}]
  %s2 = inlined_call_operand.vmem [shape: f32[2,8,32], index: 2, kind: input, shape index: {}]
  %s3 = inlined_call_operand.vmem [shape: f32[8,128], index: 3, kind: input, shape index: {}]
  %s4 = inlined_call_operand.vmem [shape: f32[32,128], index: 4, kind: input, shape index: {}]
  %s5 = inlined_call_operand.vmem [shape: f32[1,128], index: 5, kind: input, shape index: {}]
  %s6 = inlined_call_operand.vmem [shape: f32[32,128], index: 6, kind: input, shape index: {}]
  %s7 = inlined_call_operand.vmem [shape: f32[32,128], index: 7, kind: input, shape index: {}]
  %s8 = inlined_call_operand.vmem [shape: f32[1,128], index: 8, kind: input, shape index: {}]
  %s9 = inlined_call_operand.vmem [shape: f32[32,128], index: 9, kind: input, shape index: {}]
  %s10 = inlined_call_operand.vmem [shape: f32[1,128], index: 10, kind: input, shape index: {}]
  %s11 = inlined_call_operand.vmem [shape: f32[128,4], index: 11, kind: input, shape index: {}]
  %s12 = inlined_call_operand.vmem [shape: f32[1,4], index: 12, kind: input, shape index: {}]
  %s13 = inlined_call_operand.vmem [shape: f32[8,4], index: 13, kind: output, shape index: {}]
  %s14 = sld [smem:[#allocation0]]
  $region62: #{tpu_custom_call.1} parent=0
    _
  %s16 = ssub.s32 1, %s14
  %s17 = scalar_select 0, %s16, %s14
  // Predicated region
  $region2: #{tpu_custom_call.1} parent=0 // pred_check
    _
  $region3: #{tpu_custom_call.1} parent=0 // pred_check_branch
    %19 = sbr.rel (0) target = $region5
  $region4: #{tpu_custom_call.1} parent=0 // pred_region
    _
  $region5: #{tpu_custom_call.1} parent=0 // pred_fallthru
    _
  // Predicated region
  $region6: #{tpu_custom_call.1} parent=0 // pred_check
    _
  $region7: #{tpu_custom_call.1} parent=0 // pred_check_branch
    %21 = sbr.rel (0) target = $region9
  $region8: #{tpu_custom_call.1} parent=0 // pred_region
    _
  $region9: #{tpu_custom_call.1} parent=0 // pred_fallthru
    _
  // Predicated region
  $region10: #{tpu_custom_call.1} parent=0 // pred_check
    _
  $region11: #{tpu_custom_call.1} parent=0 // pred_check_branch
    %23 = sbr.rel (0) target = $region13
  $region12: #{tpu_custom_call.1} parent=0 // pred_region
    _
  $region13: #{tpu_custom_call.1} parent=0 // pred_fallthru
    _
  // Predicated region
  $region14: #{tpu_custom_call.1} parent=0 // pred_check
    _
  $region15: #{tpu_custom_call.1} parent=0 // pred_check_branch
    %25 = sbr.rel (0) target = $region17
  $region16: #{tpu_custom_call.1} parent=0 // pred_region
    _
  $region17: #{tpu_custom_call.1} parent=0 // pred_fallthru
    _
  // Predicated region
  $region18: #{tpu_custom_call.1} parent=0 // pred_check
    _
  $region19: #{tpu_custom_call.1} parent=0 // pred_check_branch
    %27 = sbr.rel (0) target = $region21
  $region20: #{tpu_custom_call.1} parent=0 // pred_region
    _
  $region21: #{tpu_custom_call.1} parent=0 // pred_fallthru
    _
  // Predicated region
  $region22: #{tpu_custom_call.1} parent=0 // pred_check
    _
  $region23: #{tpu_custom_call.1} parent=0 // pred_check_branch
    %29 = sbr.rel (0) target = $region25
  $region24: #{tpu_custom_call.1} parent=0 // pred_region
    _
  $region25: #{tpu_custom_call.1} parent=0 // pred_fallthru
    _
  // Predicated region
  $region26: #{tpu_custom_call.1} parent=0 // pred_check
    _
  $region27: #{tpu_custom_call.1} parent=0 // pred_check_branch
    %31 = sbr.rel (0) target = $region29
  $region28: #{tpu_custom_call.1} parent=0 // pred_region
    _
  $region29: #{tpu_custom_call.1} parent=0 // pred_fallthru
    _
  // Predicated region
  $region30: #{tpu_custom_call.1} parent=0 // pred_check
    _
  $region31: #{tpu_custom_call.1} parent=0 // pred_check_branch
    %33 = sbr.rel (0) target = $region33
  $region32: #{tpu_custom_call.1} parent=0 // pred_region
    _
  $region33: #{tpu_custom_call.1} parent=0 // pred_fallthru
    _
  // Predicated region
  $region34: #{tpu_custom_call.1} parent=0 // pred_check
    _
  $region35: #{tpu_custom_call.1} parent=0 // pred_check_branch
    %35 = sbr.rel (0) target = $region37
  $region36: #{tpu_custom_call.1} parent=0 // pred_region
    _
  $region37: #{tpu_custom_call.1} parent=0 // pred_fallthru
    _
  // Predicated region
  $region38: #{tpu_custom_call.1} parent=0 // pred_check
    _
  $region39: #{tpu_custom_call.1} parent=0 // pred_check_branch
    %37 = sbr.rel (0) target = $region41
  $region40: #{tpu_custom_call.1} parent=0 // pred_region
    _
  $region41: #{tpu_custom_call.1} parent=0 // pred_fallthru
    _
  // Predicated region
  $region42: #{tpu_custom_call.1} parent=0 // pred_check
    _
  $region43: #{tpu_custom_call.1} parent=0 // pred_check_branch
    %39 = sbr.rel (0) target = $region45
  $region44: #{tpu_custom_call.1} parent=0 // pred_region
    _
  $region45: #{tpu_custom_call.1} parent=0 // pred_fallthru
    _
  // Predicated region
  $region46: #{tpu_custom_call.1} parent=0 // pred_check
    _
  $region47: #{tpu_custom_call.1} parent=0 // pred_check_branch
    %41 = sbr.rel (0) target = $region49
  $region48: #{tpu_custom_call.1} parent=0 // pred_region
    _
  $region49: #{tpu_custom_call.1} parent=0 // pred_fallthru
    _
  // Predicated region
  $region50: #{tpu_custom_call.1} parent=0 // pred_check
    _
  $region51: #{tpu_custom_call.1} parent=0 // pred_check_branch
    %43 = sbr.rel (0) target = $region53
  $region52: #{tpu_custom_call.1} parent=0 // pred_region
    _
  $region53: #{tpu_custom_call.1} parent=0 // pred_fallthru
    _
  %v44 = vld [vmem:[%s0] sm:$0xff]
  %v45 = vld [vmem:[%s0 + $0x8] sm:$0xff]
  %v46 = vld [vmem:[%s0 + $0x10] sm:$0xff]
  %v47 = vld [vmem:[%s0 + $0x18] sm:$0xff]
  %v48 = vld [vmem:[%s0 + $0x20] sm:$0xff]
  %v49 = vld [vmem:[%s0 + $0x28] sm:$0xff]
  %v50 = vld [vmem:[%s0 + $0x30] sm:$0xff]
  %v51 = vld [vmem:[%s0 + $0x38] sm:$0xff]
  %v52 = vld [vmem:[%s0 + $0x40] sm:$0xff]
  %v53 = vld [vmem:[%s0 + $0x48] sm:$0xff]
  %v54 = vld [vmem:[%s0 + $0x50] sm:$0xff]
  %v55 = vld [vmem:[%s0 + $0x58] sm:$0xff]
  %v56 = vld [vmem:[%s0 + $0x60] sm:$0xff]
  %v57 = vld [vmem:[%s0 + $0x68] sm:$0xff]
  %v58 = vld [vmem:[%s0 + $0x70] sm:$0xff]
  %v59 = vld [vmem:[%s0 + $0x78] sm:$0xff]
  %v60 = vld [vmem:[%s3] sm:$0xff]
  %v61 = vld [vmem:[%s5] sm:$0x1]
  %v63 = vperm.slane %v61, 0
  %vm65 = vcmask 64512
  %v67 = vsel %vm65, %v44, 0
  %v70 = vsel %vm65, %v45, 0
  %v73 = vsel %vm65, %v46, 0
  %v76 = vsel %vm65, %v47, 0
  %v79 = vsel %vm65, %v48, 0
  %v82 = vsel %vm65, %v49, 0
  %v85 = vsel %vm65, %v50, 0
  %v88 = vsel %vm65, %v51, 0
  %v91 = vsel %vm65, %v52, 0
  %v94 = vsel %vm65, %v53, 0
  %v97 = vsel %vm65, %v54, 0
  %v100 = vsel %vm65, %v55, 0
  %v103 = vsel %vm65, %v56, 0
  %v106 = vsel %vm65, %v57, 0
  %v109 = vsel %vm65, %v58, 0
  %v112 = vsel %vm65, %v59, 0
  %114 = vmatpush.msra.mxu0 0.0
  %115 = vmatpush.msra.mxu0 0.0
  %116 = vmatpush.msra.mxu0 0.0
  %117 = vmatpush.msra.mxu0 0.0
  %118 = vmatpush.msra.mxu0 0.0
  %119 = vmatpush.msra.mxu0 0.0
  %120 = vmatpush.msra.mxu0 0.0
  %121 = vmatpush.msra.mxu0 0.0
  %122 = vmatpush.msra.mxu0 0.0
  %123 = vmatpush.msra.mxu0 0.0
  %124 = vmatpush.msra.mxu0 0.0
  %125 = vmatpush.msra.mxu0 0.0
  %126 = vmatpush.msra.mxu0 0.0
  %127 = vmatpush.msra.mxu0 0.0
  %128 = vmatpush.msra.mxu0 0.0
  %129 = vmatpush.msra.mxu0 %v60
  %130 = vmatmul.f32.gmra.mxu0 %v67
  %v131 = vpop.f32.mrf.mxu0
  %v132 = vadd.f32 %v63, %v131
  %133 = vmatmul.f32.gmra.mxu0 %v70
  %v134 = vpop.f32.mrf.mxu0
  %v135 = vadd.f32 %v63, %v134
  %136 = vmatmul.f32.gmra.mxu0 %v73
  %v137 = vpop.f32.mrf.mxu0
  %v138 = vadd.f32 %v63, %v137
  %139 = vmatmul.f32.gmra.mxu0 %v76
  %v140 = vpop.f32.mrf.mxu0
  %v141 = vadd.f32 %v63, %v140
  %142 = vmatmul.f32.gmra.mxu0 %v79
  %v143 = vpop.f32.mrf.mxu0
  %v144 = vadd.f32 %v63, %v143
  %145 = vmatmul.f32.gmra.mxu0 %v82
  %v146 = vpop.f32.mrf.mxu0
  %v147 = vadd.f32 %v63, %v146
  %148 = vmatmul.f32.gmra.mxu0 %v85
  %v149 = vpop.f32.mrf.mxu0
  %v150 = vadd.f32 %v63, %v149
  %151 = vmatmul.f32.gmra.mxu0 %v88
  %v152 = vpop.f32.mrf.mxu0
  %v153 = vadd.f32 %v63, %v152
  %154 = vmatmul.f32.gmra.mxu0 %v91
  %v155 = vpop.f32.mrf.mxu0
  %v156 = vadd.f32 %v63, %v155
  %157 = vmatmul.f32.gmra.mxu0 %v94
  %v158 = vpop.f32.mrf.mxu0
  %v159 = vadd.f32 %v63, %v158
  %160 = vmatmul.f32.gmra.mxu0 %v97
  %v161 = vpop.f32.mrf.mxu0
  %v162 = vadd.f32 %v63, %v161
  %163 = vmatmul.f32.gmra.mxu0 %v100
  %v164 = vpop.f32.mrf.mxu0
  %v165 = vadd.f32 %v63, %v164
  %166 = vmatmul.f32.gmra.mxu0 %v103
  %v167 = vpop.f32.mrf.mxu0
  %v168 = vadd.f32 %v63, %v167
  %169 = vmatmul.f32.gmra.mxu0 %v106
  %v170 = vpop.f32.mrf.mxu0
  %v171 = vadd.f32 %v63, %v170
  %172 = vmatmul.f32.gmra.mxu0 %v109
  %v173 = vpop.f32.mrf.mxu0
  %v174 = vadd.f32 %v63, %v173
  %175 = vmatmul.f32.gmra.mxu0 %v112
  %v176 = vpop.f32.mrf.mxu0
  %v177 = vadd.f32 %v63, %v176
  %178 = vdwg.mxu0
  %179 = vst [vmem:[#allocation2] sm:$0xff] %v132
  %180 = vst [vmem:[#allocation2 + $0x8] sm:$0xff] %v135
  %181 = vst [vmem:[#allocation2 + $0x10] sm:$0xff] %v138
  %182 = vst [vmem:[#allocation2 + $0x18] sm:$0xff] %v141
  %183 = vst [vmem:[#allocation2 + $0x20] sm:$0xff] %v144
  %184 = vst [vmem:[#allocation2 + $0x28] sm:$0xff] %v147
  %185 = vst [vmem:[#allocation2 + $0x30] sm:$0xff] %v150
  %186 = vst [vmem:[#allocation2 + $0x38] sm:$0xff] %v153
  %187 = vst [vmem:[#allocation2 + $0x40] sm:$0xff] %v156
  %188 = vst [vmem:[#allocation2 + $0x48] sm:$0xff] %v159
  %189 = vst [vmem:[#allocation2 + $0x50] sm:$0xff] %v162
  %190 = vst [vmem:[#allocation2 + $0x58] sm:$0xff] %v165
  %191 = vst [vmem:[#allocation2 + $0x60] sm:$0xff] %v168
  %192 = vst [vmem:[#allocation2 + $0x68] sm:$0xff] %v171
  %193 = vst [vmem:[#allocation2 + $0x70] sm:$0xff] %v174
  %194 = vst [vmem:[#allocation2 + $0x78] sm:$0xff] %v177
  %v195 = vld [vmem:[%s1] sm:$0xff]
  %v196 = vld [vmem:[%s2] sm:$0xff]
  %v197 = vld [vmem:[%s4] sm:$0xff]
  %v198 = vld [vmem:[%s4 + $0x8] sm:$0xff]
  %v199 = vld [vmem:[%s4 + $0x10] sm:$0xff]
  %v200 = vld [vmem:[%s4 + $0x18] sm:$0xff]
  %v201 = vld [vmem:[#allocation2] sm:$0xff]
  %vm202 = vcmask 261120
  %v204 = vsel %vm202, %v195, 0
  %206 = vmatpush.msra.mxu0 0.0
  %207 = vmatpush.msra.mxu0 0.0
  %208 = vmatpush.msra.mxu0 0.0
  %209 = vmatpush.msra.mxu0 0.0
  %210 = vmatpush.msra.mxu0 0.0
  %211 = vmatpush.msra.mxu0 0.0
  %212 = vmatpush.msra.mxu0 0.0
  %213 = vmatpush.msra.mxu0 0.0
  %214 = vmatpush.msra.mxu0 0.0
  %215 = vmatpush.msra.mxu0 0.0
  %216 = vmatpush.msra.mxu0 0.0
  %217 = vmatpush.msra.mxu0 0.0
  %218 = vmatpush.msra.mxu0 %v200
  %219 = vmatpush.msra.mxu0 %v199
  %220 = vmatpush.msra.mxu0 %v198
  %221 = vmatpush.msra.mxu0 %v197
  %222 = vmatmul.f32.gmra.mxu0 %v204
  %v223 = vpop.f32.mrf.mxu0
  %v224 = vadd.f32 0.0, %v223
  %225 = vdwg.mxu0
  %v226 = vadd.f32 %v201, %v224
  %v227 = vxor.u32 %v226, 2147483648
  %v228 = vmul.f32 %v227, 1.442695
  %v229 = vpow.pop %v228
  %v230 = vadd.f32 %v229, 1.0
  %v231 = vrcp.pop %v230
  %v232 = vmul.f32 %v230, %v231
  %v233 = vsub.f32 1.0, %v232
  %v234 = vmul.f32 %v231, %v233
  %v235 = vadd.f32 %v231, %v234
  %vm236 = vweird.f32 %v230
  %vm237 = vweird.f32 %v231
  %vm238 = vmor %vm236, %vm237
  %v239 = vsel %vm238, %v231, %v235
  %v240 = vand.u32 2147483647, %v230
  %vm241 = vcmp.eq.f32.partialorder %v240, 8.507059e+37
  %v242 = vand.u32 %v230, 2147483648
  %v243 = vor.u32 1.1754944e-38, %v242
  %v244 = vsel %vm241, %v243, %v239
  %v245 = vmul.f32 1.0, %v244
  %v246 = vtanh.pop %v226
  %248 = vrot.lane.b32.xlu0 %v196, 32
  %v249 = vpop.permute.xlu0 %248
  %v251 = vmul.f32 %v245, %v249
  %253 = vrot.lane.b32.xlu0 %v246, 32
  %v254 = vpop.permute.xlu0 %253
  %v256 = vmul.f32 %v245, %v254
  %258 = vrot.lane.b32.xlu0 %v256, 32
  %v259 = vpop.permute.xlu0 %258
  %v261 = vadd.f32 %v251, %v259
  %v262 = vtanh.pop %v261
  %264 = vrot.lane.b32.xlu0 %v262, 32
  %v265 = vpop.permute.xlu0 %264
  %v267 = vmul.f32 %v245, %v265
  %v268 = vld [vmem:[#allocation2 + $0x8] sm:$0xff]
  %270 = vrot.lane.b32.xlu0 %v267, 64
  %v271 = vpop.permute.xlu0 %270
  %v272 = vsel %vm202, %v271, 0
  %274 = vmatpush.msra.mxu0 0.0
  %275 = vmatpush.msra.mxu0 0.0
  %276 = vmatpush.msra.mxu0 0.0
  %277 = vmatpush.msra.mxu0 0.0
  %278 = vmatpush.msra.mxu0 0.0
  %279 = vmatpush.msra.mxu0 0.0
  %280 = vmatpush.msra.mxu0 0.0
  %281 = vmatpush.msra.mxu0 0.0
  %282 = vmatpush.msra.mxu0 0.0
  %283 = vmatpush.msra.mxu0 0.0
  %284 = vmatpush.msra.mxu0 0.0
  %285 = vmatpush.msra.mxu0 0.0
  %286 = vmatpush.msra.mxu0 %v200
  %287 = vmatpush.msra.mxu0 %v199
  %288 = vmatpush.msra.mxu0 %v198
  %289 = vmatpush.msra.mxu0 %v197
  %290 = vmatmul.f32.gmra.mxu0 %v272
  %v291 = vpop.f32.mrf.mxu0
  %v292 = vadd.f32 0.0, %v291
  %293 = vdwg.mxu0
  %v294 = vadd.f32 %v268, %v292
  %v295 = vxor.u32 %v294, 2147483648
  %v296 = vmul.f32 %v295, 1.442695
  %v297 = vpow.pop %v296
  %v298 = vadd.f32 %v297, 1.0
  %v299 = vrcp.pop %v298
  %v300 = vmul.f32 %v298, %v299
  %v301 = vsub.f32 1.0, %v300
  %v302 = vmul.f32 %v299, %v301
  %v303 = vadd.f32 %v299, %v302
  %vm304 = vweird.f32 %v298
  %vm305 = vweird.f32 %v299
  %vm306 = vmor %vm304, %vm305
  %v307 = vsel %vm306, %v299, %v303
  %v308 = vand.u32 2147483647, %v298
  %vm309 = vcmp.eq.f32.partialorder %v308, 8.507059e+37
  %v310 = vand.u32 %v298, 2147483648
  %v311 = vor.u32 1.1754944e-38, %v310
  %v312 = vsel %vm309, %v311, %v307
  %v313 = vmul.f32 1.0, %v312
  %v314 = vtanh.pop %v294
  %v315 = vmul.f32 %v313, %v261
  %317 = vrot.lane.b32.xlu0 %v314, 32
  %v318 = vpop.permute.xlu0 %317
  %v320 = vmul.f32 %v313, %v318
  %322 = vrot.lane.b32.xlu0 %v320, 32
  %v323 = vpop.permute.xlu0 %322
  %v325 = vadd.f32 %v315, %v323
  %v326 = vtanh.pop %v325
  %328 = vrot.lane.b32.xlu0 %v326, 32
  %v329 = vpop.permute.xlu0 %328
  %v331 = vmul.f32 %v313, %v329
  %v332 = vld [vmem:[#allocation2 + $0x10] sm:$0xff]
  %334 = vrot.lane.b32.xlu0 %v331, 64
  %v335 = vpop.permute.xlu0 %334
  %v336 = vsel %vm202, %v335, 0
  %338 = vmatpush.msra.mxu0 0.0
  %339 = vmatpush.msra.mxu0 0.0
  %340 = vmatpush.msra.mxu0 0.0
  %341 = vmatpush.msra.mxu0 0.0
  %342 = vmatpush.msra.mxu0 0.0
  %343 = vmatpush.msra.mxu0 0.0
  %344 = vmatpush.msra.mxu0 0.0
  %345 = vmatpush.msra.mxu0 0.0
  %346 = vmatpush.msra.mxu0 0.0
  %347 = vmatpush.msra.mxu0 0.0
  %348 = vmatpush.msra.mxu0 0.0
  %349 = vmatpush.msra.mxu0 0.0
  %350 = vmatpush.msra.mxu0 %v200
  %351 = vmatpush.msra.mxu0 %v199
  %352 = vmatpush.msra.mxu0 %v198
  %353 = vmatpush.msra.mxu0 %v197
  %354 = vmatmul.f32.gmra.mxu0 %v336
  %v355 = vpop.f32.mrf.mxu0
  %v356 = vadd.f32 0.0, %v355
  %357 = vdwg.mxu0
  %v358 = vadd.f32 %v332, %v356
  %v359 = vxor.u32 %v358, 2147483648
  %v360 = vmul.f32 %v359, 1.442695
  %v361 = vpow.pop %v360
  %v362 = vadd.f32 %v361, 1.0
  %v363 = vrcp.pop %v362
  %v364 = vmul.f32 %v362, %v363
  %v365 = vsub.f32 1.0, %v364
  %v366 = vmul.f32 %v363, %v365
  %v367 = vadd.f32 %v363, %v366
  %vm368 = vweird.f32 %v362
  %vm369 = vweird.f32 %v363
  %vm370 = vmor %vm368, %vm369
  %v371 = vsel %vm370, %v363, %v367
  %v372 = vand.u32 2147483647, %v362
  %vm373 = vcmp.eq.f32.partialorder %v372, 8.507059e+37
  %v374 = vand.u32 %v362, 2147483648
  %v375 = vor.u32 1.1754944e-38, %v374
  %v376 = vsel %vm373, %v375, %v371
  %v377 = vmul.f32 1.0, %v376
  %v378 = vtanh.pop %v358
  %v379 = vmul.f32 %v377, %v325
  %381 = vrot.lane.b32.xlu0 %v378, 32
  %v382 = vpop.permute.xlu0 %381
  %v384 = vmul.f32 %v377, %v382
  %386 = vrot.lane.b32.xlu0 %v384, 32
  %v387 = vpop.permute.xlu0 %386
  %v389 = vadd.f32 %v379, %v387
  %v390 = vtanh.pop %v389
  %392 = vrot.lane.b32.xlu0 %v390, 32
  %v393 = vpop.permute.xlu0 %392
  %v395 = vmul.f32 %v377, %v393
  %v396 = vld [vmem:[#allocation2 + $0x18] sm:$0xff]
  %398 = vrot.lane.b32.xlu0 %v395, 64
  %v399 = vpop.permute.xlu0 %398
  %v400 = vsel %vm202, %v399, 0
  %402 = vmatpush.msra.mxu0 0.0
  %403 = vmatpush.msra.mxu0 0.0
  %404 = vmatpush.msra.mxu0 0.0
  %405 = vmatpush.msra.mxu0 0.0
  %406 = vmatpush.msra.mxu0 0.0
  %407 = vmatpush.msra.mxu0 0.0
  %408 = vmatpush.msra.mxu0 0.0
  %409 = vmatpush.msra.mxu0 0.0
  %410 = vmatpush.msra.mxu0 0.0
  %411 = vmatpush.msra.mxu0 0.0
  %412 = vmatpush.msra.mxu0 0.0
  %413 = vmatpush.msra.mxu0 0.0
  %414 = vmatpush.msra.mxu0 %v200
  %415 = vmatpush.msra.mxu0 %v199
  %416 = vmatpush.msra.mxu0 %v198
  %417 = vmatpush.msra.mxu0 %v197
  %418 = vmatmul.f32.gmra.mxu0 %v400
  %v419 = vpop.f32.mrf.mxu0
  %v420 = vadd.f32 0.0, %v419
  %421 = vdwg.mxu0
  %v422 = vadd.f32 %v396, %v420
  %v423 = vxor.u32 %v422, 2147483648
  %v424 = vmul.f32 %v423, 1.442695
  %v425 = vpow.pop %v424
  %v426 = vadd.f32 %v425, 1.0
  %v427 = vrcp.pop %v426
  %v428 = vmul.f32 %v426, %v427
  %v429 = vsub.f32 1.0, %v428
  %v430 = vmul.f32 %v427, %v429
  %v431 = vadd.f32 %v427, %v430
  %vm432 = vweird.f32 %v426
  %vm433 = vweird.f32 %v427
  %vm434 = vmor %vm432, %vm433
  %v435 = vsel %vm434, %v427, %v431
  %v436 = vand.u32 2147483647, %v426
  %vm437 = vcmp.eq.f32.partialorder %v436, 8.507059e+37
  %v438 = vand.u32 %v426, 2147483648
  %v439 = vor.u32 1.1754944e-38, %v438
  %v440 = vsel %vm437, %v439, %v435
  %v441 = vmul.f32 1.0, %v440
  %v442 = vtanh.pop %v422
  %v443 = vmul.f32 %v441, %v389
  %445 = vrot.lane.b32.xlu0 %v442, 32
  %v446 = vpop.permute.xlu0 %445
  %v448 = vmul.f32 %v441, %v446
  %450 = vrot.lane.b32.xlu0 %v448, 32
  %v451 = vpop.permute.xlu0 %450
  %v453 = vadd.f32 %v443, %v451
  %v454 = vtanh.pop %v453
  %456 = vrot.lane.b32.xlu0 %v454, 32
  %v457 = vpop.permute.xlu0 %456
  %v459 = vmul.f32 %v441, %v457
  %v460 = vld [vmem:[#allocation2 + $0x20] sm:$0xff]
  %462 = vrot.lane.b32.xlu0 %v459, 64
  %v463 = vpop.permute.xlu0 %462
  %v464 = vsel %vm202, %v463, 0
  %466 = vmatpush.msra.mxu0 0.0
  %467 = vmatpush.msra.mxu0 0.0
  %468 = vmatpush.msra.mxu0 0.0
  %469 = vmatpush.msra.mxu0 0.0
  %470 = vmatpush.msra.mxu0 0.0
  %471 = vmatpush.msra.mxu0 0.0
  %472 = vmatpush.msra.mxu0 0.0
  %473 = vmatpush.msra.mxu0 0.0
  %474 = vmatpush.msra.mxu0 0.0
  %475 = vmatpush.msra.mxu0 0.0
  %476 = vmatpush.msra.mxu0 0.0
  %477 = vmatpush.msra.mxu0 0.0
  %478 = vmatpush.msra.mxu0 %v200
  %479 = vmatpush.msra.mxu0 %v199
  %480 = vmatpush.msra.mxu0 %v198
  %481 = vmatpush.msra.mxu0 %v197
  %482 = vmatmul.f32.gmra.mxu0 %v464
  %v483 = vpop.f32.mrf.mxu0
  %v484 = vadd.f32 0.0, %v483
  %485 = vdwg.mxu0
  %v486 = vadd.f32 %v460, %v484
  %v487 = vxor.u32 %v486, 2147483648
  %v488 = vmul.f32 %v487, 1.442695
  %v489 = vpow.pop %v488
  %v490 = vadd.f32 %v489, 1.0
  %v491 = vrcp.pop %v490
  %v492 = vmul.f32 %v490, %v491
  %v493 = vsub.f32 1.0, %v492
  %v494 = vmul.f32 %v491, %v493
  %v495 = vadd.f32 %v491, %v494
  %vm496 = vweird.f32 %v490
  %vm497 = vweird.f32 %v491
  %vm498 = vmor %vm496, %vm497
  %v499 = vsel %vm498, %v491, %v495
  %v500 = vand.u32 2147483647, %v490
  %vm501 = vcmp.eq.f32.partialorder %v500, 8.507059e+37
  %v502 = vand.u32 %v490, 2147483648
  %v503 = vor.u32 1.1754944e-38, %v502
  %v504 = vsel %vm501, %v503, %v499
  %v505 = vmul.f32 1.0, %v504
  %v506 = vtanh.pop %v486
  %v507 = vmul.f32 %v505, %v453
  %509 = vrot.lane.b32.xlu0 %v506, 32
  %v510 = vpop.permute.xlu0 %509
  %v512 = vmul.f32 %v505, %v510
  %514 = vrot.lane.b32.xlu0 %v512, 32
  %v515 = vpop.permute.xlu0 %514
  %v517 = vadd.f32 %v507, %v515
  %v518 = vtanh.pop %v517
  %520 = vrot.lane.b32.xlu0 %v518, 32
  %v521 = vpop.permute.xlu0 %520
  %v523 = vmul.f32 %v505, %v521
  %v524 = vld [vmem:[#allocation2 + $0x28] sm:$0xff]
  %526 = vrot.lane.b32.xlu0 %v523, 64
  %v527 = vpop.permute.xlu0 %526
  %v528 = vsel %vm202, %v527, 0
  %530 = vmatpush.msra.mxu0 0.0
  %531 = vmatpush.msra.mxu0 0.0
  %532 = vmatpush.msra.mxu0 0.0
  %533 = vmatpush.msra.mxu0 0.0
  %534 = vmatpush.msra.mxu0 0.0
  %535 = vmatpush.msra.mxu0 0.0
  %536 = vmatpush.msra.mxu0 0.0
  %537 = vmatpush.msra.mxu0 0.0
  %538 = vmatpush.msra.mxu0 0.0
  %539 = vmatpush.msra.mxu0 0.0
  %540 = vmatpush.msra.mxu0 0.0
  %541 = vmatpush.msra.mxu0 0.0
  %542 = vmatpush.msra.mxu0 %v200
  %543 = vmatpush.msra.mxu0 %v199
  %544 = vmatpush.msra.mxu0 %v198
  %545 = vmatpush.msra.mxu0 %v197
  %546 = vmatmul.f32.gmra.mxu0 %v528
  %v547 = vpop.f32.mrf.mxu0
  %v548 = vadd.f32 0.0, %v547
  %549 = vdwg.mxu0
  %v550 = vadd.f32 %v524, %v548
  %v551 = vxor.u32 %v550, 2147483648
  %v552 = vmul.f32 %v551, 1.442695
  %v553 = vpow.pop %v552
  %v554 = vadd.f32 %v553, 1.0
  %v555 = vrcp.pop %v554
  %v556 = vmul.f32 %v554, %v555
  %v557 = vsub.f32 1.0, %v556
  %v558 = vmul.f32 %v555, %v557
  %v559 = vadd.f32 %v555, %v558
  %vm560 = vweird.f32 %v554
  %vm561 = vweird.f32 %v555
  %vm562 = vmor %vm560, %vm561
  %v563 = vsel %vm562, %v555, %v559
  %v564 = vand.u32 2147483647, %v554
  %vm565 = vcmp.eq.f32.partialorder %v564, 8.507059e+37
  %v566 = vand.u32 %v554, 2147483648
  %v567 = vor.u32 1.1754944e-38, %v566
  %v568 = vsel %vm565, %v567, %v563
  %v569 = vmul.f32 1.0, %v568
  %v570 = vtanh.pop %v550
  %v571 = vmul.f32 %v569, %v517
  %573 = vrot.lane.b32.xlu0 %v570, 32
  %v574 = vpop.permute.xlu0 %573
  %v576 = vmul.f32 %v569, %v574
  %578 = vrot.lane.b32.xlu0 %v576, 32
  %v579 = vpop.permute.xlu0 %578
  %v581 = vadd.f32 %v571, %v579
  %v582 = vtanh.pop %v581
  %584 = vrot.lane.b32.xlu0 %v582, 32
  %v585 = vpop.permute.xlu0 %584
  %v587 = vmul.f32 %v569, %v585
  %v588 = vld [vmem:[#allocation2 + $0x30] sm:$0xff]
  %590 = vrot.lane.b32.xlu0 %v587, 64
  %v591 = vpop.permute.xlu0 %590
  %v592 = vsel %vm202, %v591, 0
  %594 = vmatpush.msra.mxu0 0.0
  %595 = vmatpush.msra.mxu0 0.0
  %596 = vmatpush.msra.mxu0 0.0
  %597 = vmatpush.msra.mxu0 0.0
  %598 = vmatpush.msra.mxu0 0.0
  %599 = vmatpush.msra.mxu0 0.0
  %600 = vmatpush.msra.mxu0 0.0
  %601 = vmatpush.msra.mxu0 0.0
  %602 = vmatpush.msra.mxu0 0.0
  %603 = vmatpush.msra.mxu0 0.0
  %604 = vmatpush.msra.mxu0 0.0
  %605 = vmatpush.msra.mxu0 0.0
  %606 = vmatpush.msra.mxu0 %v200
  %607 = vmatpush.msra.mxu0 %v199
  %608 = vmatpush.msra.mxu0 %v198
  %609 = vmatpush.msra.mxu0 %v197
  %610 = vmatmul.f32.gmra.mxu0 %v592
  %v611 = vpop.f32.mrf.mxu0
  %v612 = vadd.f32 0.0, %v611
  %613 = vdwg.mxu0
  %v614 = vadd.f32 %v588, %v612
  %v615 = vxor.u32 %v614, 2147483648
  %v616 = vmul.f32 %v615, 1.442695
  %v617 = vpow.pop %v616
  %v618 = vadd.f32 %v617, 1.0
  %v619 = vrcp.pop %v618
  %v620 = vmul.f32 %v618, %v619
  %v621 = vsub.f32 1.0, %v620
  %v622 = vmul.f32 %v619, %v621
  %v623 = vadd.f32 %v619, %v622
  %vm624 = vweird.f32 %v618
  %vm625 = vweird.f32 %v619
  %vm626 = vmor %vm624, %vm625
  %v627 = vsel %vm626, %v619, %v623
  %v628 = vand.u32 2147483647, %v618
  %vm629 = vcmp.eq.f32.partialorder %v628, 8.507059e+37
  %v630 = vand.u32 %v618, 2147483648
  %v631 = vor.u32 1.1754944e-38, %v630
  %v632 = vsel %vm629, %v631, %v627
  %v633 = vmul.f32 1.0, %v632
  %v634 = vtanh.pop %v614
  %v635 = vmul.f32 %v633, %v581
  %637 = vrot.lane.b32.xlu0 %v634, 32
  %v638 = vpop.permute.xlu0 %637
  %v640 = vmul.f32 %v633, %v638
  %642 = vrot.lane.b32.xlu0 %v640, 32
  %v643 = vpop.permute.xlu0 %642
  %v645 = vadd.f32 %v635, %v643
  %v646 = vtanh.pop %v645
  %648 = vrot.lane.b32.xlu0 %v646, 32
  %v649 = vpop.permute.xlu0 %648
  %v651 = vmul.f32 %v633, %v649
  %v652 = vld [vmem:[#allocation2 + $0x38] sm:$0xff]
  %654 = vrot.lane.b32.xlu0 %v651, 64
  %v655 = vpop.permute.xlu0 %654
  %v656 = vsel %vm202, %v655, 0
  %658 = vmatpush.msra.mxu0 0.0
  %659 = vmatpush.msra.mxu0 0.0
  %660 = vmatpush.msra.mxu0 0.0
  %661 = vmatpush.msra.mxu0 0.0
  %662 = vmatpush.msra.mxu0 0.0
  %663 = vmatpush.msra.mxu0 0.0
  %664 = vmatpush.msra.mxu0 0.0
  %665 = vmatpush.msra.mxu0 0.0
  %666 = vmatpush.msra.mxu0 0.0
  %667 = vmatpush.msra.mxu0 0.0
  %668 = vmatpush.msra.mxu0 0.0
  %669 = vmatpush.msra.mxu0 0.0
  %670 = vmatpush.msra.mxu0 %v200
  %671 = vmatpush.msra.mxu0 %v199
  %672 = vmatpush.msra.mxu0 %v198
  %673 = vmatpush.msra.mxu0 %v197
  %674 = vmatmul.f32.gmra.mxu0 %v656
  %v675 = vpop.f32.mrf.mxu0
  %v676 = vadd.f32 0.0, %v675
  %677 = vdwg.mxu0
  %v678 = vadd.f32 %v652, %v676
  %v679 = vxor.u32 %v678, 2147483648
  %v680 = vmul.f32 %v679, 1.442695
  %v681 = vpow.pop %v680
  %v682 = vadd.f32 %v681, 1.0
  %v683 = vrcp.pop %v682
  %v684 = vmul.f32 %v682, %v683
  %v685 = vsub.f32 1.0, %v684
  %v686 = vmul.f32 %v683, %v685
  %v687 = vadd.f32 %v683, %v686
  %vm688 = vweird.f32 %v682
  %vm689 = vweird.f32 %v683
  %vm690 = vmor %vm688, %vm689
  %v691 = vsel %vm690, %v683, %v687
  %v692 = vand.u32 2147483647, %v682
  %vm693 = vcmp.eq.f32.partialorder %v692, 8.507059e+37
  %v694 = vand.u32 %v682, 2147483648
  %v695 = vor.u32 1.1754944e-38, %v694
  %v696 = vsel %vm693, %v695, %v691
  %v697 = vmul.f32 1.0, %v696
  %v698 = vtanh.pop %v678
  %v699 = vmul.f32 %v697, %v645
  %701 = vrot.lane.b32.xlu0 %v698, 32
  %v702 = vpop.permute.xlu0 %701
  %v704 = vmul.f32 %v697, %v702
  %706 = vrot.lane.b32.xlu0 %v704, 32
  %v707 = vpop.permute.xlu0 %706
  %v709 = vadd.f32 %v699, %v707
  %v710 = vtanh.pop %v709
  %712 = vrot.lane.b32.xlu0 %v710, 32
  %v713 = vpop.permute.xlu0 %712
  %v715 = vmul.f32 %v697, %v713
  %v716 = vld [vmem:[#allocation2 + $0x40] sm:$0xff]
  %718 = vrot.lane.b32.xlu0 %v715, 64
  %v719 = vpop.permute.xlu0 %718
  %v720 = vsel %vm202, %v719, 0
  %722 = vmatpush.msra.mxu0 0.0
  %723 = vmatpush.msra.mxu0 0.0
  %724 = vmatpush.msra.mxu0 0.0
  %725 = vmatpush.msra.mxu0 0.0
  %726 = vmatpush.msra.mxu0 0.0
  %727 = vmatpush.msra.mxu0 0.0
  %728 = vmatpush.msra.mxu0 0.0
  %729 = vmatpush.msra.mxu0 0.0
  %730 = vmatpush.msra.mxu0 0.0
  %731 = vmatpush.msra.mxu0 0.0
  %732 = vmatpush.msra.mxu0 0.0
  %733 = vmatpush.msra.mxu0 0.0
  %734 = vmatpush.msra.mxu0 %v200
  %735 = vmatpush.msra.mxu0 %v199
  %736 = vmatpush.msra.mxu0 %v198
  %737 = vmatpush.msra.mxu0 %v197
  %738 = vmatmul.f32.gmra.mxu0 %v720
  %v739 = vpop.f32.mrf.mxu0
  %v740 = vadd.f32 0.0, %v739
  %741 = vdwg.mxu0
  %v742 = vadd.f32 %v716, %v740
  %v743 = vxor.u32 %v742, 2147483648
  %v744 = vmul.f32 %v743, 1.442695
  %v745 = vpow.pop %v744
  %v746 = vadd.f32 %v745, 1.0
  %v747 = vrcp.pop %v746
  %v748 = vmul.f32 %v746, %v747
  %v749 = vsub.f32 1.0, %v748
  %v750 = vmul.f32 %v747, %v749
  %v751 = vadd.f32 %v747, %v750
  %vm752 = vweird.f32 %v746
  %vm753 = vweird.f32 %v747
  %vm754 = vmor %vm752, %vm753
  %v755 = vsel %vm754, %v747, %v751
  %v756 = vand.u32 2147483647, %v746
  %vm757 = vcmp.eq.f32.partialorder %v756, 8.507059e+37
  %v758 = vand.u32 %v746, 2147483648
  %v759 = vor.u32 1.1754944e-38, %v758
  %v760 = vsel %vm757, %v759, %v755
  %v761 = vmul.f32 1.0, %v760
  %v762 = vtanh.pop %v742
  %v763 = vmul.f32 %v761, %v709
  %765 = vrot.lane.b32.xlu0 %v762, 32
  %v766 = vpop.permute.xlu0 %765
  %v768 = vmul.f32 %v761, %v766
  %770 = vrot.lane.b32.xlu0 %v768, 32
  %v771 = vpop.permute.xlu0 %770
  %v773 = vadd.f32 %v763, %v771
  %v774 = vtanh.pop %v773
  %776 = vrot.lane.b32.xlu0 %v774, 32
  %v777 = vpop.permute.xlu0 %776
  %v779 = vmul.f32 %v761, %v777
  %v780 = vld [vmem:[#allocation2 + $0x48] sm:$0xff]
  %782 = vrot.lane.b32.xlu0 %v779, 64
  %v783 = vpop.permute.xlu0 %782
  %v784 = vsel %vm202, %v783, 0
  %786 = vmatpush.msra.mxu0 0.0
  %787 = vmatpush.msra.mxu0 0.0
  %788 = vmatpush.msra.mxu0 0.0
  %789 = vmatpush.msra.mxu0 0.0
  %790 = vmatpush.msra.mxu0 0.0
  %791 = vmatpush.msra.mxu0 0.0
  %792 = vmatpush.msra.mxu0 0.0
  %793 = vmatpush.msra.mxu0 0.0
  %794 = vmatpush.msra.mxu0 0.0
  %795 = vmatpush.msra.mxu0 0.0
  %796 = vmatpush.msra.mxu0 0.0
  %797 = vmatpush.msra.mxu0 0.0
  %798 = vmatpush.msra.mxu0 %v200
  %799 = vmatpush.msra.mxu0 %v199
  %800 = vmatpush.msra.mxu0 %v198
  %801 = vmatpush.msra.mxu0 %v197
  %802 = vmatmul.f32.gmra.mxu0 %v784
  %v803 = vpop.f32.mrf.mxu0
  %v804 = vadd.f32 0.0, %v803
  %805 = vdwg.mxu0
  %v806 = vadd.f32 %v780, %v804
  %v807 = vxor.u32 %v806, 2147483648
  %v808 = vmul.f32 %v807, 1.442695
  %v809 = vpow.pop %v808
  %v810 = vadd.f32 %v809, 1.0
  %v811 = vrcp.pop %v810
  %v812 = vmul.f32 %v810, %v811
  %v813 = vsub.f32 1.0, %v812
  %v814 = vmul.f32 %v811, %v813
  %v815 = vadd.f32 %v811, %v814
  %vm816 = vweird.f32 %v810
  %vm817 = vweird.f32 %v811
  %vm818 = vmor %vm816, %vm817
  %v819 = vsel %vm818, %v811, %v815
  %v820 = vand.u32 2147483647, %v810
  %vm821 = vcmp.eq.f32.partialorder %v820, 8.507059e+37
  %v822 = vand.u32 %v810, 2147483648
  %v823 = vor.u32 1.1754944e-38, %v822
  %v824 = vsel %vm821, %v823, %v819
  %v825 = vmul.f32 1.0, %v824
  %v826 = vtanh.pop %v806
  %v827 = vmul.f32 %v825, %v773
  %829 = vrot.lane.b32.xlu0 %v826, 32
  %v830 = vpop.permute.xlu0 %829
  %v832 = vmul.f32 %v825, %v830
  %834 = vrot.lane.b32.xlu0 %v832, 32
  %v835 = vpop.permute.xlu0 %834
  %v837 = vadd.f32 %v827, %v835
  %v838 = vtanh.pop %v837
  %840 = vrot.lane.b32.xlu0 %v838, 32
  %v841 = vpop.permute.xlu0 %840
  %v843 = vmul.f32 %v825, %v841
  %v844 = vld [vmem:[#allocation2 + $0x50] sm:$0xff]
  %846 = vrot.lane.b32.xlu0 %v843, 64
  %v847 = vpop.permute.xlu0 %846
  %v848 = vsel %vm202, %v847, 0
  %850 = vmatpush.msra.mxu0 0.0
  %851 = vmatpush.msra.mxu0 0.0
  %852 = vmatpush.msra.mxu0 0.0
  %853 = vmatpush.msra.mxu0 0.0
  %854 = vmatpush.msra.mxu0 0.0
  %855 = vmatpush.msra.mxu0 0.0
  %856 = vmatpush.msra.mxu0 0.0
  %857 = vmatpush.msra.mxu0 0.0
  %858 = vmatpush.msra.mxu0 0.0
  %859 = vmatpush.msra.mxu0 0.0
  %860 = vmatpush.msra.mxu0 0.0
  %861 = vmatpush.msra.mxu0 0.0
  %862 = vmatpush.msra.mxu0 %v200
  %863 = vmatpush.msra.mxu0 %v199
  %864 = vmatpush.msra.mxu0 %v198
  %865 = vmatpush.msra.mxu0 %v197
  %866 = vmatmul.f32.gmra.mxu0 %v848
  %v867 = vpop.f32.mrf.mxu0
  %v868 = vadd.f32 0.0, %v867
  %869 = vdwg.mxu0
  %v870 = vadd.f32 %v844, %v868
  %v871 = vxor.u32 %v870, 2147483648
  %v872 = vmul.f32 %v871, 1.442695
  %v873 = vpow.pop %v872
  %v874 = vadd.f32 %v873, 1.0
  %v875 = vrcp.pop %v874
  %v876 = vmul.f32 %v874, %v875
  %v877 = vsub.f32 1.0, %v876
  %v878 = vmul.f32 %v875, %v877
  %v879 = vadd.f32 %v875, %v878
  %vm880 = vweird.f32 %v874
  %vm881 = vweird.f32 %v875
  %vm882 = vmor %vm880, %vm881
  %v883 = vsel %vm882, %v875, %v879
  %v884 = vand.u32 2147483647, %v874
  %vm885 = vcmp.eq.f32.partialorder %v884, 8.507059e+37
  %v886 = vand.u32 %v874, 2147483648
  %v887 = vor.u32 1.1754944e-38, %v886
  %v888 = vsel %vm885, %v887, %v883
  %v889 = vmul.f32 1.0, %v888
  %v890 = vtanh.pop %v870
  %v891 = vmul.f32 %v889, %v837
  %893 = vrot.lane.b32.xlu0 %v890, 32
  %v894 = vpop.permute.xlu0 %893
  %v896 = vmul.f32 %v889, %v894
  %898 = vrot.lane.b32.xlu0 %v896, 32
  %v899 = vpop.permute.xlu0 %898
  %v901 = vadd.f32 %v891, %v899
  %v902 = vtanh.pop %v901
  %904 = vrot.lane.b32.xlu0 %v902, 32
  %v905 = vpop.permute.xlu0 %904
  %v907 = vmul.f32 %v889, %v905
  %v908 = vld [vmem:[#allocation2 + $0x58] sm:$0xff]
  %910 = vrot.lane.b32.xlu0 %v907, 64
  %v911 = vpop.permute.xlu0 %910
  %v912 = vsel %vm202, %v911, 0
  %914 = vmatpush.msra.mxu0 0.0
  %915 = vmatpush.msra.mxu0 0.0
  %916 = vmatpush.msra.mxu0 0.0
  %917 = vmatpush.msra.mxu0 0.0
  %918 = vmatpush.msra.mxu0 0.0
  %919 = vmatpush.msra.mxu0 0.0
  %920 = vmatpush.msra.mxu0 0.0
  %921 = vmatpush.msra.mxu0 0.0
  %922 = vmatpush.msra.mxu0 0.0
  %923 = vmatpush.msra.mxu0 0.0
  %924 = vmatpush.msra.mxu0 0.0
  %925 = vmatpush.msra.mxu0 0.0
  %926 = vmatpush.msra.mxu0 %v200
  %927 = vmatpush.msra.mxu0 %v199
  %928 = vmatpush.msra.mxu0 %v198
  %929 = vmatpush.msra.mxu0 %v197
  %930 = vmatmul.f32.gmra.mxu0 %v912
  %v931 = vpop.f32.mrf.mxu0
  %v932 = vadd.f32 0.0, %v931
  %933 = vdwg.mxu0
  %v934 = vadd.f32 %v908, %v932
  %v935 = vxor.u32 %v934, 2147483648
  %v936 = vmul.f32 %v935, 1.442695
  %v937 = vpow.pop %v936
  %v938 = vadd.f32 %v937, 1.0
  %v939 = vrcp.pop %v938
  %v940 = vmul.f32 %v938, %v939
  %v941 = vsub.f32 1.0, %v940
  %v942 = vmul.f32 %v939, %v941
  %v943 = vadd.f32 %v939, %v942
  %vm944 = vweird.f32 %v938
  %vm945 = vweird.f32 %v939
  %vm946 = vmor %vm944, %vm945
  %v947 = vsel %vm946, %v939, %v943
  %v948 = vand.u32 2147483647, %v938
  %vm949 = vcmp.eq.f32.partialorder %v948, 8.507059e+37
  %v950 = vand.u32 %v938, 2147483648
  %v951 = vor.u32 1.1754944e-38, %v950
  %v952 = vsel %vm949, %v951, %v947
  %v953 = vmul.f32 1.0, %v952
  %v954 = vtanh.pop %v934
  %v955 = vmul.f32 %v953, %v901
  %957 = vrot.lane.b32.xlu0 %v954, 32
  %v958 = vpop.permute.xlu0 %957
  %v960 = vmul.f32 %v953, %v958
  %962 = vrot.lane.b32.xlu0 %v960, 32
  %v963 = vpop.permute.xlu0 %962
  %v965 = vadd.f32 %v955, %v963
  %v966 = vtanh.pop %v965
  %968 = vrot.lane.b32.xlu0 %v966, 32
  %v969 = vpop.permute.xlu0 %968
  %v971 = vmul.f32 %v953, %v969
  %v972 = vld [vmem:[#allocation2 + $0x60] sm:$0xff]
  %974 = vrot.lane.b32.xlu0 %v971, 64
  %v975 = vpop.permute.xlu0 %974
  %v976 = vsel %vm202, %v975, 0
  %978 = vmatpush.msra.mxu0 0.0
  %979 = vmatpush.msra.mxu0 0.0
  %980 = vmatpush.msra.mxu0 0.0
  %981 = vmatpush.msra.mxu0 0.0
  %982 = vmatpush.msra.mxu0 0.0
  %983 = vmatpush.msra.mxu0 0.0
  %984 = vmatpush.msra.mxu0 0.0
  %985 = vmatpush.msra.mxu0 0.0
  %986 = vmatpush.msra.mxu0 0.0
  %987 = vmatpush.msra.mxu0 0.0
  %988 = vmatpush.msra.mxu0 0.0
  %989 = vmatpush.msra.mxu0 0.0
  %990 = vmatpush.msra.mxu0 %v200
  %991 = vmatpush.msra.mxu0 %v199
  %992 = vmatpush.msra.mxu0 %v198
  %993 = vmatpush.msra.mxu0 %v197
  %994 = vmatmul.f32.gmra.mxu0 %v976
  %v995 = vpop.f32.mrf.mxu0
  %v996 = vadd.f32 0.0, %v995
  %997 = vdwg.mxu0
  %v998 = vadd.f32 %v972, %v996
  %v999 = vxor.u32 %v998, 2147483648
  %v1000 = vmul.f32 %v999, 1.442695
  %v1001 = vpow.pop %v1000
  %v1002 = vadd.f32 %v1001, 1.0
  %v1003 = vrcp.pop %v1002
  %v1004 = vmul.f32 %v1002, %v1003
  %v1005 = vsub.f32 1.0, %v1004
  %v1006 = vmul.f32 %v1003, %v1005
  %v1007 = vadd.f32 %v1003, %v1006
  %vm1008 = vweird.f32 %v1002
  %vm1009 = vweird.f32 %v1003
  %vm1010 = vmor %vm1008, %vm1009
  %v1011 = vsel %vm1010, %v1003, %v1007
  %v1012 = vand.u32 2147483647, %v1002
  %vm1013 = vcmp.eq.f32.partialorder %v1012, 8.507059e+37
  %v1014 = vand.u32 %v1002, 2147483648
  %v1015 = vor.u32 1.1754944e-38, %v1014
  %v1016 = vsel %vm1013, %v1015, %v1011
  %v1017 = vmul.f32 1.0, %v1016
  %v1018 = vtanh.pop %v998
  %v1019 = vmul.f32 %v1017, %v965
  %1021 = vrot.lane.b32.xlu0 %v1018, 32
  %v1022 = vpop.permute.xlu0 %1021
  %v1024 = vmul.f32 %v1017, %v1022
  %1026 = vrot.lane.b32.xlu0 %v1024, 32
  %v1027 = vpop.permute.xlu0 %1026
  %v1029 = vadd.f32 %v1019, %v1027
  %v1030 = vtanh.pop %v1029
  %1032 = vrot.lane.b32.xlu0 %v1030, 32
  %v1033 = vpop.permute.xlu0 %1032
  %v1035 = vmul.f32 %v1017, %v1033
  %v1036 = vld [vmem:[#allocation2 + $0x68] sm:$0xff]
  %1038 = vrot.lane.b32.xlu0 %v1035, 64
  %v1039 = vpop.permute.xlu0 %1038
  %v1040 = vsel %vm202, %v1039, 0
  %1042 = vmatpush.msra.mxu0 0.0
  %1043 = vmatpush.msra.mxu0 0.0
  %1044 = vmatpush.msra.mxu0 0.0
  %1045 = vmatpush.msra.mxu0 0.0
  %1046 = vmatpush.msra.mxu0 0.0
  %1047 = vmatpush.msra.mxu0 0.0
  %1048 = vmatpush.msra.mxu0 0.0
  %1049 = vmatpush.msra.mxu0 0.0
  %1050 = vmatpush.msra.mxu0 0.0
  %1051 = vmatpush.msra.mxu0 0.0
  %1052 = vmatpush.msra.mxu0 0.0
  %1053 = vmatpush.msra.mxu0 0.0
  %1054 = vmatpush.msra.mxu0 %v200
  %1055 = vmatpush.msra.mxu0 %v199
  %1056 = vmatpush.msra.mxu0 %v198
  %1057 = vmatpush.msra.mxu0 %v197
  %1058 = vmatmul.f32.gmra.mxu0 %v1040
  %v1059 = vpop.f32.mrf.mxu0
  %v1060 = vadd.f32 0.0, %v1059
  %1061 = vdwg.mxu0
  %v1062 = vadd.f32 %v1036, %v1060
  %v1063 = vxor.u32 %v1062, 2147483648
  %v1064 = vmul.f32 %v1063, 1.442695
  %v1065 = vpow.pop %v1064
  %v1066 = vadd.f32 %v1065, 1.0
  %v1067 = vrcp.pop %v1066
  %v1068 = vmul.f32 %v1066, %v1067
  %v1069 = vsub.f32 1.0, %v1068
  %v1070 = vmul.f32 %v1067, %v1069
  %v1071 = vadd.f32 %v1067, %v1070
  %vm1072 = vweird.f32 %v1066
  %vm1073 = vweird.f32 %v1067
  %vm1074 = vmor %vm1072, %vm1073
  %v1075 = vsel %vm1074, %v1067, %v1071
  %v1076 = vand.u32 2147483647, %v1066
  %vm1077 = vcmp.eq.f32.partialorder %v1076, 8.507059e+37
  %v1078 = vand.u32 %v1066, 2147483648
  %v1079 = vor.u32 1.1754944e-38, %v1078
  %v1080 = vsel %vm1077, %v1079, %v1075
  %v1081 = vmul.f32 1.0, %v1080
  %v1082 = vtanh.pop %v1062
  %v1083 = vmul.f32 %v1081, %v1029
  %1085 = vrot.lane.b32.xlu0 %v1082, 32
  %v1086 = vpop.permute.xlu0 %1085
  %v1088 = vmul.f32 %v1081, %v1086
  %1090 = vrot.lane.b32.xlu0 %v1088, 32
  %v1091 = vpop.permute.xlu0 %1090
  %v1093 = vadd.f32 %v1083, %v1091
  %v1094 = vtanh.pop %v1093
  %1096 = vrot.lane.b32.xlu0 %v1094, 32
  %v1097 = vpop.permute.xlu0 %1096
  %v1099 = vmul.f32 %v1081, %v1097
  %v1100 = vld [vmem:[#allocation2 + $0x70] sm:$0xff]
  %1102 = vrot.lane.b32.xlu0 %v1099, 64
  %v1103 = vpop.permute.xlu0 %1102
  %v1104 = vsel %vm202, %v1103, 0
  %1106 = vmatpush.msra.mxu0 0.0
  %1107 = vmatpush.msra.mxu0 0.0
  %1108 = vmatpush.msra.mxu0 0.0
  %1109 = vmatpush.msra.mxu0 0.0
  %1110 = vmatpush.msra.mxu0 0.0
  %1111 = vmatpush.msra.mxu0 0.0
  %1112 = vmatpush.msra.mxu0 0.0
  %1113 = vmatpush.msra.mxu0 0.0
  %1114 = vmatpush.msra.mxu0 0.0
  %1115 = vmatpush.msra.mxu0 0.0
  %1116 = vmatpush.msra.mxu0 0.0
  %1117 = vmatpush.msra.mxu0 0.0
  %1118 = vmatpush.msra.mxu0 %v200
  %1119 = vmatpush.msra.mxu0 %v199
  %1120 = vmatpush.msra.mxu0 %v198
  %1121 = vmatpush.msra.mxu0 %v197
  %1122 = vmatmul.f32.gmra.mxu0 %v1104
  %v1123 = vpop.f32.mrf.mxu0
  %v1124 = vadd.f32 0.0, %v1123
  %1125 = vdwg.mxu0
  %v1126 = vadd.f32 %v1100, %v1124
  %v1127 = vxor.u32 %v1126, 2147483648
  %v1128 = vmul.f32 %v1127, 1.442695
  %v1129 = vpow.pop %v1128
  %v1130 = vadd.f32 %v1129, 1.0
  %v1131 = vrcp.pop %v1130
  %v1132 = vmul.f32 %v1130, %v1131
  %v1133 = vsub.f32 1.0, %v1132
  %v1134 = vmul.f32 %v1131, %v1133
  %v1135 = vadd.f32 %v1131, %v1134
  %vm1136 = vweird.f32 %v1130
  %vm1137 = vweird.f32 %v1131
  %vm1138 = vmor %vm1136, %vm1137
  %v1139 = vsel %vm1138, %v1131, %v1135
  %v1140 = vand.u32 2147483647, %v1130
  %vm1141 = vcmp.eq.f32.partialorder %v1140, 8.507059e+37
  %v1142 = vand.u32 %v1130, 2147483648
  %v1143 = vor.u32 1.1754944e-38, %v1142
  %v1144 = vsel %vm1141, %v1143, %v1139
  %v1145 = vmul.f32 1.0, %v1144
  %v1146 = vtanh.pop %v1126
  %v1147 = vmul.f32 %v1145, %v1093
  %1149 = vrot.lane.b32.xlu0 %v1146, 32
  %v1150 = vpop.permute.xlu0 %1149
  %v1152 = vmul.f32 %v1145, %v1150
  %1154 = vrot.lane.b32.xlu0 %v1152, 32
  %v1155 = vpop.permute.xlu0 %1154
  %v1157 = vadd.f32 %v1147, %v1155
  %v1158 = vtanh.pop %v1157
  %1160 = vrot.lane.b32.xlu0 %v1158, 32
  %v1161 = vpop.permute.xlu0 %1160
  %v1163 = vmul.f32 %v1145, %v1161
  %v1164 = vld [vmem:[#allocation2 + $0x78] sm:$0xff]
  %1166 = vrot.lane.b32.xlu0 %v1163, 64
  %v1167 = vpop.permute.xlu0 %1166
  %v1168 = vsel %vm202, %v1167, 0
  %1170 = vmatpush.msra.mxu0 0.0
  %1171 = vmatpush.msra.mxu0 0.0
  %1172 = vmatpush.msra.mxu0 0.0
  %1173 = vmatpush.msra.mxu0 0.0
  %1174 = vmatpush.msra.mxu0 0.0
  %1175 = vmatpush.msra.mxu0 0.0
  %1176 = vmatpush.msra.mxu0 0.0
  %1177 = vmatpush.msra.mxu0 0.0
  %1178 = vmatpush.msra.mxu0 0.0
  %1179 = vmatpush.msra.mxu0 0.0
  %1180 = vmatpush.msra.mxu0 0.0
  %1181 = vmatpush.msra.mxu0 0.0
  %1182 = vmatpush.msra.mxu0 %v200
  %1183 = vmatpush.msra.mxu0 %v199
  %1184 = vmatpush.msra.mxu0 %v198
  %1185 = vmatpush.msra.mxu0 %v197
  %1186 = vmatmul.f32.gmra.mxu0 %v1168
  %v1187 = vpop.f32.mrf.mxu0
  %v1188 = vadd.f32 0.0, %v1187
  %1189 = vdwg.mxu0
  %v1190 = vadd.f32 %v1164, %v1188
  %v1191 = vxor.u32 %v1190, 2147483648
  %v1192 = vmul.f32 %v1191, 1.442695
  %v1193 = vpow.pop %v1192
  %v1194 = vadd.f32 %v1193, 1.0
  %v1195 = vrcp.pop %v1194
  %v1196 = vmul.f32 %v1194, %v1195
  %v1197 = vsub.f32 1.0, %v1196
  %v1198 = vmul.f32 %v1195, %v1197
  %v1199 = vadd.f32 %v1195, %v1198
  %vm1200 = vweird.f32 %v1194
  %vm1201 = vweird.f32 %v1195
  %vm1202 = vmor %vm1200, %vm1201
  %v1203 = vsel %vm1202, %v1195, %v1199
  %v1204 = vand.u32 2147483647, %v1194
  %vm1205 = vcmp.eq.f32.partialorder %v1204, 8.507059e+37
  %v1206 = vand.u32 %v1194, 2147483648
  %v1207 = vor.u32 1.1754944e-38, %v1206
  %v1208 = vsel %vm1205, %v1207, %v1203
  %v1209 = vmul.f32 1.0, %v1208
  %v1210 = vtanh.pop %v1190
  %v1211 = vmul.f32 %v1209, %v1157
  %1213 = vrot.lane.b32.xlu0 %v1210, 32
  %v1214 = vpop.permute.xlu0 %1213
  %v1216 = vmul.f32 %v1209, %v1214
  %1218 = vrot.lane.b32.xlu0 %v1216, 32
  %v1219 = vpop.permute.xlu0 %1218
  %v1221 = vadd.f32 %v1211, %v1219
  %v1222 = vtanh.pop %v1221
  %1224 = vrot.lane.b32.xlu0 %v1222, 32
  %v1225 = vpop.permute.xlu0 %1224
  %v1227 = vmul.f32 %v1209, %v1225
  %v1228 = vld [vmem:[%s6] sm:$0xff]
  %v1229 = vld [vmem:[%s6 + $0x8] sm:$0xff]
  %v1230 = vld [vmem:[%s6 + $0x10] sm:$0xff]
  %v1231 = vld [vmem:[%s6 + $0x18] sm:$0xff]
  %v1232 = vld [vmem:[%s8] sm:$0x1]
  %v1234 = vperm.slane %v1232, 0
  %1237 = vrot.lane.b32.xlu0 %v1227, 64
  %v1238 = vpop.permute.xlu0 %1237
  %v1239 = vsel %vm202, %v1238, 0
  %1241 = vmatpush.msra.mxu0 0.0
  %1242 = vmatpush.msra.mxu0 0.0
  %1243 = vmatpush.msra.mxu0 0.0
  %1244 = vmatpush.msra.mxu0 0.0
  %1245 = vmatpush.msra.mxu0 0.0
  %1246 = vmatpush.msra.mxu0 0.0
  %1247 = vmatpush.msra.mxu0 0.0
  %1248 = vmatpush.msra.mxu0 0.0
  %1249 = vmatpush.msra.mxu0 0.0
  %1250 = vmatpush.msra.mxu0 0.0
  %1251 = vmatpush.msra.mxu0 0.0
  %1252 = vmatpush.msra.mxu0 0.0
  %1253 = vmatpush.msra.mxu0 %v1231
  %1254 = vmatpush.msra.mxu0 %v1230
  %1255 = vmatpush.msra.mxu0 %v1229
  %1256 = vmatpush.msra.mxu0 %v1228
  %1257 = vmatmul.f32.gmra.mxu0 %v272
  %v1258 = vpop.f32.mrf.mxu0
  %v1259 = vadd.f32 %v1234, %v1258
  %1260 = vmatmul.f32.gmra.mxu0 %v336
  %v1261 = vpop.f32.mrf.mxu0
  %v1262 = vadd.f32 %v1234, %v1261
  %1263 = vmatmul.f32.gmra.mxu0 %v400
  %v1264 = vpop.f32.mrf.mxu0
  %v1265 = vadd.f32 %v1234, %v1264
  %1266 = vmatmul.f32.gmra.mxu0 %v464
  %v1267 = vpop.f32.mrf.mxu0
  %v1268 = vadd.f32 %v1234, %v1267
  %1269 = vmatmul.f32.gmra.mxu0 %v528
  %v1270 = vpop.f32.mrf.mxu0
  %v1271 = vadd.f32 %v1234, %v1270
  %1272 = vmatmul.f32.gmra.mxu0 %v592
  %v1273 = vpop.f32.mrf.mxu0
  %v1274 = vadd.f32 %v1234, %v1273
  %1275 = vmatmul.f32.gmra.mxu0 %v656
  %v1276 = vpop.f32.mrf.mxu0
  %v1277 = vadd.f32 %v1234, %v1276
  %1278 = vmatmul.f32.gmra.mxu0 %v720
  %v1279 = vpop.f32.mrf.mxu0
  %v1280 = vadd.f32 %v1234, %v1279
  %1281 = vmatmul.f32.gmra.mxu0 %v784
  %v1282 = vpop.f32.mrf.mxu0
  %v1283 = vadd.f32 %v1234, %v1282
  %1284 = vmatmul.f32.gmra.mxu0 %v848
  %v1285 = vpop.f32.mrf.mxu0
  %v1286 = vadd.f32 %v1234, %v1285
  %1287 = vmatmul.f32.gmra.mxu0 %v912
  %v1288 = vpop.f32.mrf.mxu0
  %v1289 = vadd.f32 %v1234, %v1288
  %1290 = vmatmul.f32.gmra.mxu0 %v976
  %v1291 = vpop.f32.mrf.mxu0
  %v1292 = vadd.f32 %v1234, %v1291
  %1293 = vmatmul.f32.gmra.mxu0 %v1040
  %v1294 = vpop.f32.mrf.mxu0
  %v1295 = vadd.f32 %v1234, %v1294
  %1296 = vmatmul.f32.gmra.mxu0 %v1104
  %v1297 = vpop.f32.mrf.mxu0
  %v1298 = vadd.f32 %v1234, %v1297
  %1299 = vmatmul.f32.gmra.mxu0 %v1168
  %v1300 = vpop.f32.mrf.mxu0
  %v1301 = vadd.f32 %v1234, %v1300
  %1302 = vmatmul.f32.gmra.mxu0 %v1239
  %v1303 = vpop.f32.mrf.mxu0
  %v1304 = vadd.f32 %v1234, %v1303
  %1305 = vdwg.mxu0
  %1306 = vst [vmem:[#allocation2] sm:$0xff] %v1259
  %1307 = vst [vmem:[#allocation2 + $0x8] sm:$0xff] %v1262
  %1308 = vst [vmem:[#allocation2 + $0x10] sm:$0xff] %v1265
  %1309 = vst [vmem:[#allocation2 + $0x18] sm:$0xff] %v1268
  %1310 = vst [vmem:[#allocation2 + $0x20] sm:$0xff] %v1271
  %1311 = vst [vmem:[#allocation2 + $0x28] sm:$0xff] %v1274
  %1312 = vst [vmem:[#allocation2 + $0x30] sm:$0xff] %v1277
  %1313 = vst [vmem:[#allocation2 + $0x38] sm:$0xff] %v1280
  %1314 = vst [vmem:[#allocation2 + $0x40] sm:$0xff] %v1283
  %1315 = vst [vmem:[#allocation2 + $0x48] sm:$0xff] %v1286
  %1316 = vst [vmem:[#allocation2 + $0x50] sm:$0xff] %v1289
  %1317 = vst [vmem:[#allocation2 + $0x58] sm:$0xff] %v1292
  %1318 = vst [vmem:[#allocation2 + $0x60] sm:$0xff] %v1295
  %1319 = vst [vmem:[#allocation2 + $0x68] sm:$0xff] %v1298
  %1320 = vst [vmem:[#allocation2 + $0x70] sm:$0xff] %v1301
  %1321 = vst [vmem:[#allocation2 + $0x78] sm:$0xff] %v1304
  %s1322 = scalar_lea.vmem %s1, 8
  %v1323 = vld [vmem:[%s1322] sm:$0xff]
  %s1324 = scalar_lea.vmem %s2, 8
  %v1325 = vld [vmem:[%s1324] sm:$0xff]
  %v1326 = vld [vmem:[%s7] sm:$0xff]
  %v1327 = vld [vmem:[%s7 + $0x8] sm:$0xff]
  %v1328 = vld [vmem:[%s7 + $0x10] sm:$0xff]
  %v1329 = vld [vmem:[%s7 + $0x18] sm:$0xff]
  %v1330 = vld [vmem:[#allocation2] sm:$0xff]
  %v1332 = vsel %vm202, %v1323, 0
  %1334 = vmatpush.msra.mxu0 0.0
  %1335 = vmatpush.msra.mxu0 0.0
  %1336 = vmatpush.msra.mxu0 0.0
  %1337 = vmatpush.msra.mxu0 0.0
  %1338 = vmatpush.msra.mxu0 0.0
  %1339 = vmatpush.msra.mxu0 0.0
  %1340 = vmatpush.msra.mxu0 0.0
  %1341 = vmatpush.msra.mxu0 0.0
  %1342 = vmatpush.msra.mxu0 0.0
  %1343 = vmatpush.msra.mxu0 0.0
  %1344 = vmatpush.msra.mxu0 0.0
  %1345 = vmatpush.msra.mxu0 0.0
  %1346 = vmatpush.msra.mxu0 %v1329
  %1347 = vmatpush.msra.mxu0 %v1328
  %1348 = vmatpush.msra.mxu0 %v1327
  %1349 = vmatpush.msra.mxu0 %v1326
  %1350 = vmatmul.f32.gmra.mxu0 %v1332
  %v1351 = vpop.f32.mrf.mxu0
  %v1352 = vadd.f32 0.0, %v1351
  %1353 = vdwg.mxu0
  %v1354 = vadd.f32 %v1330, %v1352
  %v1355 = vxor.u32 %v1354, 2147483648
  %v1356 = vmul.f32 %v1355, 1.442695
  %v1357 = vpow.pop %v1356
  %v1358 = vadd.f32 %v1357, 1.0
  %v1359 = vrcp.pop %v1358
  %v1360 = vmul.f32 %v1358, %v1359
  %v1361 = vsub.f32 1.0, %v1360
  %v1362 = vmul.f32 %v1359, %v1361
  %v1363 = vadd.f32 %v1359, %v1362
  %vm1364 = vweird.f32 %v1358
  %vm1365 = vweird.f32 %v1359
  %vm1366 = vmor %vm1364, %vm1365
  %v1367 = vsel %vm1366, %v1359, %v1363
  %v1368 = vand.u32 2147483647, %v1358
  %vm1369 = vcmp.eq.f32.partialorder %v1368, 8.507059e+37
  %v1370 = vand.u32 %v1358, 2147483648
  %v1371 = vor.u32 1.1754944e-38, %v1370
  %v1372 = vsel %vm1369, %v1371, %v1367
  %v1373 = vmul.f32 1.0, %v1372
  %v1374 = vtanh.pop %v1354
  %1376 = vrot.lane.b32.xlu0 %v1325, 32
  %v1377 = vpop.permute.xlu0 %1376
  %v1379 = vmul.f32 %v1373, %v1377
  %1381 = vrot.lane.b32.xlu0 %v1374, 32
  %v1382 = vpop.permute.xlu0 %1381
  %v1384 = vmul.f32 %v1373, %v1382
  %1386 = vrot.lane.b32.xlu0 %v1384, 32
  %v1387 = vpop.permute.xlu0 %1386
  %v1389 = vadd.f32 %v1379, %v1387
  %v1390 = vtanh.pop %v1389
  %1392 = vrot.lane.b32.xlu0 %v1390, 32
  %v1393 = vpop.permute.xlu0 %1392
  %v1395 = vmul.f32 %v1373, %v1393
  %v1396 = vld [vmem:[#allocation2 + $0x8] sm:$0xff]
  %1398 = vrot.lane.b32.xlu0 %v1395, 64
  %v1399 = vpop.permute.xlu0 %1398
  %v1400 = vsel %vm202, %v1399, 0
  %1402 = vmatpush.msra.mxu0 0.0
  %1403 = vmatpush.msra.mxu0 0.0
  %1404 = vmatpush.msra.mxu0 0.0
  %1405 = vmatpush.msra.mxu0 0.0
  %1406 = vmatpush.msra.mxu0 0.0
  %1407 = vmatpush.msra.mxu0 0.0
  %1408 = vmatpush.msra.mxu0 0.0
  %1409 = vmatpush.msra.mxu0 0.0
  %1410 = vmatpush.msra.mxu0 0.0
  %1411 = vmatpush.msra.mxu0 0.0
  %1412 = vmatpush.msra.mxu0 0.0
  %1413 = vmatpush.msra.mxu0 0.0
  %1414 = vmatpush.msra.mxu0 %v1329
  %1415 = vmatpush.msra.mxu0 %v1328
  %1416 = vmatpush.msra.mxu0 %v1327
  %1417 = vmatpush.msra.mxu0 %v1326
  %1418 = vmatmul.f32.gmra.mxu0 %v1400
  %v1419 = vpop.f32.mrf.mxu0
  %v1420 = vadd.f32 0.0, %v1419
  %1421 = vdwg.mxu0
  %v1422 = vadd.f32 %v1396, %v1420
  %v1423 = vxor.u32 %v1422, 2147483648
  %v1424 = vmul.f32 %v1423, 1.442695
  %v1425 = vpow.pop %v1424
  %v1426 = vadd.f32 %v1425, 1.0
  %v1427 = vrcp.pop %v1426
  %v1428 = vmul.f32 %v1426, %v1427
  %v1429 = vsub.f32 1.0, %v1428
  %v1430 = vmul.f32 %v1427, %v1429
  %v1431 = vadd.f32 %v1427, %v1430
  %vm1432 = vweird.f32 %v1426
  %vm1433 = vweird.f32 %v1427
  %vm1434 = vmor %vm1432, %vm1433
  %v1435 = vsel %vm1434, %v1427, %v1431
  %v1436 = vand.u32 2147483647, %v1426
  %vm1437 = vcmp.eq.f32.partialorder %v1436, 8.507059e+37
  %v1438 = vand.u32 %v1426, 2147483648
  %v1439 = vor.u32 1.1754944e-38, %v1438
  %v1440 = vsel %vm1437, %v1439, %v1435
  %v1441 = vmul.f32 1.0, %v1440
  %v1442 = vtanh.pop %v1422
  %v1443 = vmul.f32 %v1441, %v1389
  %1445 = vrot.lane.b32.xlu0 %v1442, 32
  %v1446 = vpop.permute.xlu0 %1445
  %v1448 = vmul.f32 %v1441, %v1446
  %1450 = vrot.lane.b32.xlu0 %v1448, 32
  %v1451 = vpop.permute.xlu0 %1450
  %v1453 = vadd.f32 %v1443, %v1451
  %v1454 = vtanh.pop %v1453
  %1456 = vrot.lane.b32.xlu0 %v1454, 32
  %v1457 = vpop.permute.xlu0 %1456
  %v1459 = vmul.f32 %v1441, %v1457
  %v1460 = vld [vmem:[#allocation2 + $0x10] sm:$0xff]
  %1462 = vrot.lane.b32.xlu0 %v1459, 64
  %v1463 = vpop.permute.xlu0 %1462
  %v1464 = vsel %vm202, %v1463, 0
  %1466 = vmatpush.msra.mxu0 0.0
  %1467 = vmatpush.msra.mxu0 0.0
  %1468 = vmatpush.msra.mxu0 0.0
  %1469 = vmatpush.msra.mxu0 0.0
  %1470 = vmatpush.msra.mxu0 0.0
  %1471 = vmatpush.msra.mxu0 0.0
  %1472 = vmatpush.msra.mxu0 0.0
  %1473 = vmatpush.msra.mxu0 0.0
  %1474 = vmatpush.msra.mxu0 0.0
  %1475 = vmatpush.msra.mxu0 0.0
  %1476 = vmatpush.msra.mxu0 0.0
  %1477 = vmatpush.msra.mxu0 0.0
  %1478 = vmatpush.msra.mxu0 %v1329
  %1479 = vmatpush.msra.mxu0 %v1328
  %1480 = vmatpush.msra.mxu0 %v1327
  %1481 = vmatpush.msra.mxu0 %v1326
  %1482 = vmatmul.f32.gmra.mxu0 %v1464
  %v1483 = vpop.f32.mrf.mxu0
  %v1484 = vadd.f32 0.0, %v1483
  %1485 = vdwg.mxu0
  %v1486 = vadd.f32 %v1460, %v1484
  %v1487 = vxor.u32 %v1486, 2147483648
  %v1488 = vmul.f32 %v1487, 1.442695
  %v1489 = vpow.pop %v1488
  %v1490 = vadd.f32 %v1489, 1.0
  %v1491 = vrcp.pop %v1490
  %v1492 = vmul.f32 %v1490, %v1491
  %v1493 = vsub.f32 1.0, %v1492
  %v1494 = vmul.f32 %v1491, %v1493
  %v1495 = vadd.f32 %v1491, %v1494
  %vm1496 = vweird.f32 %v1490
  %vm1497 = vweird.f32 %v1491
  %vm1498 = vmor %vm1496, %vm1497
  %v1499 = vsel %vm1498, %v1491, %v1495
  %v1500 = vand.u32 2147483647, %v1490
  %vm1501 = vcmp.eq.f32.partialorder %v1500, 8.507059e+37
  %v1502 = vand.u32 %v1490, 2147483648
  %v1503 = vor.u32 1.1754944e-38, %v1502
  %v1504 = vsel %vm1501, %v1503, %v1499
  %v1505 = vmul.f32 1.0, %v1504
  %v1506 = vtanh.pop %v1486
  %v1507 = vmul.f32 %v1505, %v1453
  %1509 = vrot.lane.b32.xlu0 %v1506, 32
  %v1510 = vpop.permute.xlu0 %1509
  %v1512 = vmul.f32 %v1505, %v1510
  %1514 = vrot.lane.b32.xlu0 %v1512, 32
  %v1515 = vpop.permute.xlu0 %1514
  %v1517 = vadd.f32 %v1507, %v1515
  %v1518 = vtanh.pop %v1517
  %1520 = vrot.lane.b32.xlu0 %v1518, 32
  %v1521 = vpop.permute.xlu0 %1520
  %v1523 = vmul.f32 %v1505, %v1521
  %v1524 = vld [vmem:[#allocation2 + $0x18] sm:$0xff]
  %1526 = vrot.lane.b32.xlu0 %v1523, 64
  %v1527 = vpop.permute.xlu0 %1526
  %v1528 = vsel %vm202, %v1527, 0
  %1530 = vmatpush.msra.mxu0 0.0
  %1531 = vmatpush.msra.mxu0 0.0
  %1532 = vmatpush.msra.mxu0 0.0
  %1533 = vmatpush.msra.mxu0 0.0
  %1534 = vmatpush.msra.mxu0 0.0
  %1535 = vmatpush.msra.mxu0 0.0
  %1536 = vmatpush.msra.mxu0 0.0
  %1537 = vmatpush.msra.mxu0 0.0
  %1538 = vmatpush.msra.mxu0 0.0
  %1539 = vmatpush.msra.mxu0 0.0
  %1540 = vmatpush.msra.mxu0 0.0
  %1541 = vmatpush.msra.mxu0 0.0
  %1542 = vmatpush.msra.mxu0 %v1329
  %1543 = vmatpush.msra.mxu0 %v1328
  %1544 = vmatpush.msra.mxu0 %v1327
  %1545 = vmatpush.msra.mxu0 %v1326
  %1546 = vmatmul.f32.gmra.mxu0 %v1528
  %v1547 = vpop.f32.mrf.mxu0
  %v1548 = vadd.f32 0.0, %v1547
  %1549 = vdwg.mxu0
  %v1550 = vadd.f32 %v1524, %v1548
  %v1551 = vxor.u32 %v1550, 2147483648
  %v1552 = vmul.f32 %v1551, 1.442695
  %v1553 = vpow.pop %v1552
  %v1554 = vadd.f32 %v1553, 1.0
  %v1555 = vrcp.pop %v1554
  %v1556 = vmul.f32 %v1554, %v1555
  %v1557 = vsub.f32 1.0, %v1556
  %v1558 = vmul.f32 %v1555, %v1557
  %v1559 = vadd.f32 %v1555, %v1558
  %vm1560 = vweird.f32 %v1554
  %vm1561 = vweird.f32 %v1555
  %vm1562 = vmor %vm1560, %vm1561
  %v1563 = vsel %vm1562, %v1555, %v1559
  %v1564 = vand.u32 2147483647, %v1554
  %vm1565 = vcmp.eq.f32.partialorder %v1564, 8.507059e+37
  %v1566 = vand.u32 %v1554, 2147483648
  %v1567 = vor.u32 1.1754944e-38, %v1566
  %v1568 = vsel %vm1565, %v1567, %v1563
  %v1569 = vmul.f32 1.0, %v1568
  %v1570 = vtanh.pop %v1550
  %v1571 = vmul.f32 %v1569, %v1517
  %1573 = vrot.lane.b32.xlu0 %v1570, 32
  %v1574 = vpop.permute.xlu0 %1573
  %v1576 = vmul.f32 %v1569, %v1574
  %1578 = vrot.lane.b32.xlu0 %v1576, 32
  %v1579 = vpop.permute.xlu0 %1578
  %v1581 = vadd.f32 %v1571, %v1579
  %v1582 = vtanh.pop %v1581
  %1584 = vrot.lane.b32.xlu0 %v1582, 32
  %v1585 = vpop.permute.xlu0 %1584
  %v1587 = vmul.f32 %v1569, %v1585
  %v1588 = vld [vmem:[#allocation2 + $0x20] sm:$0xff]
  %1590 = vrot.lane.b32.xlu0 %v1587, 64
  %v1591 = vpop.permute.xlu0 %1590
  %v1592 = vsel %vm202, %v1591, 0
  %1594 = vmatpush.msra.mxu0 0.0
  %1595 = vmatpush.msra.mxu0 0.0
  %1596 = vmatpush.msra.mxu0 0.0
  %1597 = vmatpush.msra.mxu0 0.0
  %1598 = vmatpush.msra.mxu0 0.0
  %1599 = vmatpush.msra.mxu0 0.0
  %1600 = vmatpush.msra.mxu0 0.0
  %1601 = vmatpush.msra.mxu0 0.0
  %1602 = vmatpush.msra.mxu0 0.0
  %1603 = vmatpush.msra.mxu0 0.0
  %1604 = vmatpush.msra.mxu0 0.0
  %1605 = vmatpush.msra.mxu0 0.0
  %1606 = vmatpush.msra.mxu0 %v1329
  %1607 = vmatpush.msra.mxu0 %v1328
  %1608 = vmatpush.msra.mxu0 %v1327
  %1609 = vmatpush.msra.mxu0 %v1326
  %1610 = vmatmul.f32.gmra.mxu0 %v1592
  %v1611 = vpop.f32.mrf.mxu0
  %v1612 = vadd.f32 0.0, %v1611
  %1613 = vdwg.mxu0
  %v1614 = vadd.f32 %v1588, %v1612
  %v1615 = vxor.u32 %v1614, 2147483648
  %v1616 = vmul.f32 %v1615, 1.442695
  %v1617 = vpow.pop %v1616
  %v1618 = vadd.f32 %v1617, 1.0
  %v1619 = vrcp.pop %v1618
  %v1620 = vmul.f32 %v1618, %v1619
  %v1621 = vsub.f32 1.0, %v1620
  %v1622 = vmul.f32 %v1619, %v1621
  %v1623 = vadd.f32 %v1619, %v1622
  %vm1624 = vweird.f32 %v1618
  %vm1625 = vweird.f32 %v1619
  %vm1626 = vmor %vm1624, %vm1625
  %v1627 = vsel %vm1626, %v1619, %v1623
  %v1628 = vand.u32 2147483647, %v1618
  %vm1629 = vcmp.eq.f32.partialorder %v1628, 8.507059e+37
  %v1630 = vand.u32 %v1618, 2147483648
  %v1631 = vor.u32 1.1754944e-38, %v1630
  %v1632 = vsel %vm1629, %v1631, %v1627
  %v1633 = vmul.f32 1.0, %v1632
  %v1634 = vtanh.pop %v1614
  %v1635 = vmul.f32 %v1633, %v1581
  %1637 = vrot.lane.b32.xlu0 %v1634, 32
  %v1638 = vpop.permute.xlu0 %1637
  %v1640 = vmul.f32 %v1633, %v1638
  %1642 = vrot.lane.b32.xlu0 %v1640, 32
  %v1643 = vpop.permute.xlu0 %1642
  %v1645 = vadd.f32 %v1635, %v1643
  %v1646 = vtanh.pop %v1645
  %1648 = vrot.lane.b32.xlu0 %v1646, 32
  %v1649 = vpop.permute.xlu0 %1648
  %v1651 = vmul.f32 %v1633, %v1649
  %v1652 = vld [vmem:[#allocation2 + $0x28] sm:$0xff]
  %1654 = vrot.lane.b32.xlu0 %v1651, 64
  %v1655 = vpop.permute.xlu0 %1654
  %v1656 = vsel %vm202, %v1655, 0
  %1658 = vmatpush.msra.mxu0 0.0
  %1659 = vmatpush.msra.mxu0 0.0
  %1660 = vmatpush.msra.mxu0 0.0
  %1661 = vmatpush.msra.mxu0 0.0
  %1662 = vmatpush.msra.mxu0 0.0
  %1663 = vmatpush.msra.mxu0 0.0
  %1664 = vmatpush.msra.mxu0 0.0
  %1665 = vmatpush.msra.mxu0 0.0
  %1666 = vmatpush.msra.mxu0 0.0
  %1667 = vmatpush.msra.mxu0 0.0
  %1668 = vmatpush.msra.mxu0 0.0
  %1669 = vmatpush.msra.mxu0 0.0
  %1670 = vmatpush.msra.mxu0 %v1329
  %1671 = vmatpush.msra.mxu0 %v1328
  %1672 = vmatpush.msra.mxu0 %v1327
  %1673 = vmatpush.msra.mxu0 %v1326
  %1674 = vmatmul.f32.gmra.mxu0 %v1656
  %v1675 = vpop.f32.mrf.mxu0
  %v1676 = vadd.f32 0.0, %v1675
  %1677 = vdwg.mxu0
  %v1678 = vadd.f32 %v1652, %v1676
  %v1679 = vxor.u32 %v1678, 2147483648
  %v1680 = vmul.f32 %v1679, 1.442695
  %v1681 = vpow.pop %v1680
  %v1682 = vadd.f32 %v1681, 1.0
  %v1683 = vrcp.pop %v1682
  %v1684 = vmul.f32 %v1682, %v1683
  %v1685 = vsub.f32 1.0, %v1684
  %v1686 = vmul.f32 %v1683, %v1685
  %v1687 = vadd.f32 %v1683, %v1686
  %vm1688 = vweird.f32 %v1682
  %vm1689 = vweird.f32 %v1683
  %vm1690 = vmor %vm1688, %vm1689
  %v1691 = vsel %vm1690, %v1683, %v1687
  %v1692 = vand.u32 2147483647, %v1682
  %vm1693 = vcmp.eq.f32.partialorder %v1692, 8.507059e+37
  %v1694 = vand.u32 %v1682, 2147483648
  %v1695 = vor.u32 1.1754944e-38, %v1694
  %v1696 = vsel %vm1693, %v1695, %v1691
  %v1697 = vmul.f32 1.0, %v1696
  %v1698 = vtanh.pop %v1678
  %v1699 = vmul.f32 %v1697, %v1645
  %1701 = vrot.lane.b32.xlu0 %v1698, 32
  %v1702 = vpop.permute.xlu0 %1701
  %v1704 = vmul.f32 %v1697, %v1702
  %1706 = vrot.lane.b32.xlu0 %v1704, 32
  %v1707 = vpop.permute.xlu0 %1706
  %v1709 = vadd.f32 %v1699, %v1707
  %v1710 = vtanh.pop %v1709
  %1712 = vrot.lane.b32.xlu0 %v1710, 32
  %v1713 = vpop.permute.xlu0 %1712
  %v1715 = vmul.f32 %v1697, %v1713
  %v1716 = vld [vmem:[#allocation2 + $0x30] sm:$0xff]
  %1718 = vrot.lane.b32.xlu0 %v1715, 64
  %v1719 = vpop.permute.xlu0 %1718
  %v1720 = vsel %vm202, %v1719, 0
  %1722 = vmatpush.msra.mxu0 0.0
  %1723 = vmatpush.msra.mxu0 0.0
  %1724 = vmatpush.msra.mxu0 0.0
  %1725 = vmatpush.msra.mxu0 0.0
  %1726 = vmatpush.msra.mxu0 0.0
  %1727 = vmatpush.msra.mxu0 0.0
  %1728 = vmatpush.msra.mxu0 0.0
  %1729 = vmatpush.msra.mxu0 0.0
  %1730 = vmatpush.msra.mxu0 0.0
  %1731 = vmatpush.msra.mxu0 0.0
  %1732 = vmatpush.msra.mxu0 0.0
  %1733 = vmatpush.msra.mxu0 0.0
  %1734 = vmatpush.msra.mxu0 %v1329
  %1735 = vmatpush.msra.mxu0 %v1328
  %1736 = vmatpush.msra.mxu0 %v1327
  %1737 = vmatpush.msra.mxu0 %v1326
  %1738 = vmatmul.f32.gmra.mxu0 %v1720
  %v1739 = vpop.f32.mrf.mxu0
  %v1740 = vadd.f32 0.0, %v1739
  %1741 = vdwg.mxu0
  %v1742 = vadd.f32 %v1716, %v1740
  %v1743 = vxor.u32 %v1742, 2147483648
  %v1744 = vmul.f32 %v1743, 1.442695
  %v1745 = vpow.pop %v1744
  %v1746 = vadd.f32 %v1745, 1.0
  %v1747 = vrcp.pop %v1746
  %v1748 = vmul.f32 %v1746, %v1747
  %v1749 = vsub.f32 1.0, %v1748
  %v1750 = vmul.f32 %v1747, %v1749
  %v1751 = vadd.f32 %v1747, %v1750
  %vm1752 = vweird.f32 %v1746
  %vm1753 = vweird.f32 %v1747
  %vm1754 = vmor %vm1752, %vm1753
  %v1755 = vsel %vm1754, %v1747, %v1751
  %v1756 = vand.u32 2147483647, %v1746
  %vm1757 = vcmp.eq.f32.partialorder %v1756, 8.507059e+37
  %v1758 = vand.u32 %v1746, 2147483648
  %v1759 = vor.u32 1.1754944e-38, %v1758
  %v1760 = vsel %vm1757, %v1759, %v1755
  %v1761 = vmul.f32 1.0, %v1760
  %v1762 = vtanh.pop %v1742
  %v1763 = vmul.f32 %v1761, %v1709
  %1765 = vrot.lane.b32.xlu0 %v1762, 32
  %v1766 = vpop.permute.xlu0 %1765
  %v1768 = vmul.f32 %v1761, %v1766
  %1770 = vrot.lane.b32.xlu0 %v1768, 32
  %v1771 = vpop.permute.xlu0 %1770
  %v1773 = vadd.f32 %v1763, %v1771
  %v1774 = vtanh.pop %v1773
  %1776 = vrot.lane.b32.xlu0 %v1774, 32
  %v1777 = vpop.permute.xlu0 %1776
  %v1779 = vmul.f32 %v1761, %v1777
  %v1780 = vld [vmem:[#allocation2 + $0x38] sm:$0xff]
  %1782 = vrot.lane.b32.xlu0 %v1779, 64
  %v1783 = vpop.permute.xlu0 %1782
  %v1784 = vsel %vm202, %v1783, 0
  %1786 = vmatpush.msra.mxu0 0.0
  %1787 = vmatpush.msra.mxu0 0.0
  %1788 = vmatpush.msra.mxu0 0.0
  %1789 = vmatpush.msra.mxu0 0.0
  %1790 = vmatpush.msra.mxu0 0.0
  %1791 = vmatpush.msra.mxu0 0.0
  %1792 = vmatpush.msra.mxu0 0.0
  %1793 = vmatpush.msra.mxu0 0.0
  %1794 = vmatpush.msra.mxu0 0.0
  %1795 = vmatpush.msra.mxu0 0.0
  %1796 = vmatpush.msra.mxu0 0.0
  %1797 = vmatpush.msra.mxu0 0.0
  %1798 = vmatpush.msra.mxu0 %v1329
  %1799 = vmatpush.msra.mxu0 %v1328
  %1800 = vmatpush.msra.mxu0 %v1327
  %1801 = vmatpush.msra.mxu0 %v1326
  %1802 = vmatmul.f32.gmra.mxu0 %v1784
  %v1803 = vpop.f32.mrf.mxu0
  %v1804 = vadd.f32 0.0, %v1803
  %1805 = vdwg.mxu0
  %v1806 = vadd.f32 %v1780, %v1804
  %v1807 = vxor.u32 %v1806, 2147483648
  %v1808 = vmul.f32 %v1807, 1.442695
  %v1809 = vpow.pop %v1808
  %v1810 = vadd.f32 %v1809, 1.0
  %v1811 = vrcp.pop %v1810
  %v1812 = vmul.f32 %v1810, %v1811
  %v1813 = vsub.f32 1.0, %v1812
  %v1814 = vmul.f32 %v1811, %v1813
  %v1815 = vadd.f32 %v1811, %v1814
  %vm1816 = vweird.f32 %v1810
  %vm1817 = vweird.f32 %v1811
  %vm1818 = vmor %vm1816, %vm1817
  %v1819 = vsel %vm1818, %v1811, %v1815
  %v1820 = vand.u32 2147483647, %v1810
  %vm1821 = vcmp.eq.f32.partialorder %v1820, 8.507059e+37
  %v1822 = vand.u32 %v1810, 2147483648
  %v1823 = vor.u32 1.1754944e-38, %v1822
  %v1824 = vsel %vm1821, %v1823, %v1819
  %v1825 = vmul.f32 1.0, %v1824
  %v1826 = vtanh.pop %v1806
  %v1827 = vmul.f32 %v1825, %v1773
  %1829 = vrot.lane.b32.xlu0 %v1826, 32
  %v1830 = vpop.permute.xlu0 %1829
  %v1832 = vmul.f32 %v1825, %v1830
  %1834 = vrot.lane.b32.xlu0 %v1832, 32
  %v1835 = vpop.permute.xlu0 %1834
  %v1837 = vadd.f32 %v1827, %v1835
  %v1838 = vtanh.pop %v1837
  %1840 = vrot.lane.b32.xlu0 %v1838, 32
  %v1841 = vpop.permute.xlu0 %1840
  %v1843 = vmul.f32 %v1825, %v1841
  %v1844 = vld [vmem:[#allocation2 + $0x40] sm:$0xff]
  %1846 = vrot.lane.b32.xlu0 %v1843, 64
  %v1847 = vpop.permute.xlu0 %1846
  %v1848 = vsel %vm202, %v1847, 0
  %1850 = vmatpush.msra.mxu0 0.0
  %1851 = vmatpush.msra.mxu0 0.0
  %1852 = vmatpush.msra.mxu0 0.0
  %1853 = vmatpush.msra.mxu0 0.0
  %1854 = vmatpush.msra.mxu0 0.0
  %1855 = vmatpush.msra.mxu0 0.0
  %1856 = vmatpush.msra.mxu0 0.0
  %1857 = vmatpush.msra.mxu0 0.0
  %1858 = vmatpush.msra.mxu0 0.0
  %1859 = vmatpush.msra.mxu0 0.0
  %1860 = vmatpush.msra.mxu0 0.0
  %1861 = vmatpush.msra.mxu0 0.0
  %1862 = vmatpush.msra.mxu0 %v1329
  %1863 = vmatpush.msra.mxu0 %v1328
  %1864 = vmatpush.msra.mxu0 %v1327
  %1865 = vmatpush.msra.mxu0 %v1326
  %1866 = vmatmul.f32.gmra.mxu0 %v1848
  %v1867 = vpop.f32.mrf.mxu0
  %v1868 = vadd.f32 0.0, %v1867
  %1869 = vdwg.mxu0
  %v1870 = vadd.f32 %v1844, %v1868
  %v1871 = vxor.u32 %v1870, 2147483648
  %v1872 = vmul.f32 %v1871, 1.442695
  %v1873 = vpow.pop %v1872
  %v1874 = vadd.f32 %v1873, 1.0
  %v1875 = vrcp.pop %v1874
  %v1876 = vmul.f32 %v1874, %v1875
  %v1877 = vsub.f32 1.0, %v1876
  %v1878 = vmul.f32 %v1875, %v1877
  %v1879 = vadd.f32 %v1875, %v1878
  %vm1880 = vweird.f32 %v1874
  %vm1881 = vweird.f32 %v1875
  %vm1882 = vmor %vm1880, %vm1881
  %v1883 = vsel %vm1882, %v1875, %v1879
  %v1884 = vand.u32 2147483647, %v1874
  %vm1885 = vcmp.eq.f32.partialorder %v1884, 8.507059e+37
  %v1886 = vand.u32 %v1874, 2147483648
  %v1887 = vor.u32 1.1754944e-38, %v1886
  %v1888 = vsel %vm1885, %v1887, %v1883
  %v1889 = vmul.f32 1.0, %v1888
  %v1890 = vtanh.pop %v1870
  %v1891 = vmul.f32 %v1889, %v1837
  %1893 = vrot.lane.b32.xlu0 %v1890, 32
  %v1894 = vpop.permute.xlu0 %1893
  %v1896 = vmul.f32 %v1889, %v1894
  %1898 = vrot.lane.b32.xlu0 %v1896, 32
  %v1899 = vpop.permute.xlu0 %1898
  %v1901 = vadd.f32 %v1891, %v1899
  %v1902 = vtanh.pop %v1901
  %1904 = vrot.lane.b32.xlu0 %v1902, 32
  %v1905 = vpop.permute.xlu0 %1904
  %v1907 = vmul.f32 %v1889, %v1905
  %v1908 = vld [vmem:[#allocation2 + $0x48] sm:$0xff]
  %1910 = vrot.lane.b32.xlu0 %v1907, 64
  %v1911 = vpop.permute.xlu0 %1910
  %v1912 = vsel %vm202, %v1911, 0
  %1914 = vmatpush.msra.mxu0 0.0
  %1915 = vmatpush.msra.mxu0 0.0
  %1916 = vmatpush.msra.mxu0 0.0
  %1917 = vmatpush.msra.mxu0 0.0
  %1918 = vmatpush.msra.mxu0 0.0
  %1919 = vmatpush.msra.mxu0 0.0
  %1920 = vmatpush.msra.mxu0 0.0
  %1921 = vmatpush.msra.mxu0 0.0
  %1922 = vmatpush.msra.mxu0 0.0
  %1923 = vmatpush.msra.mxu0 0.0
  %1924 = vmatpush.msra.mxu0 0.0
  %1925 = vmatpush.msra.mxu0 0.0
  %1926 = vmatpush.msra.mxu0 %v1329
  %1927 = vmatpush.msra.mxu0 %v1328
  %1928 = vmatpush.msra.mxu0 %v1327
  %1929 = vmatpush.msra.mxu0 %v1326
  %1930 = vmatmul.f32.gmra.mxu0 %v1912
  %v1931 = vpop.f32.mrf.mxu0
  %v1932 = vadd.f32 0.0, %v1931
  %1933 = vdwg.mxu0
  %v1934 = vadd.f32 %v1908, %v1932
  %v1935 = vxor.u32 %v1934, 2147483648
  %v1936 = vmul.f32 %v1935, 1.442695
  %v1937 = vpow.pop %v1936
  %v1938 = vadd.f32 %v1937, 1.0
  %v1939 = vrcp.pop %v1938
  %v1940 = vmul.f32 %v1938, %v1939
  %v1941 = vsub.f32 1.0, %v1940
  %v1942 = vmul.f32 %v1939, %v1941
  %v1943 = vadd.f32 %v1939, %v1942
  %vm1944 = vweird.f32 %v1938
  %vm1945 = vweird.f32 %v1939
  %vm1946 = vmor %vm1944, %vm1945
  %v1947 = vsel %vm1946, %v1939, %v1943
  %v1948 = vand.u32 2147483647, %v1938
  %vm1949 = vcmp.eq.f32.partialorder %v1948, 8.507059e+37
  %v1950 = vand.u32 %v1938, 2147483648
  %v1951 = vor.u32 1.1754944e-38, %v1950
  %v1952 = vsel %vm1949, %v1951, %v1947
  %v1953 = vmul.f32 1.0, %v1952
  %v1954 = vtanh.pop %v1934
  %v1955 = vmul.f32 %v1953, %v1901
  %1957 = vrot.lane.b32.xlu0 %v1954, 32
  %v1958 = vpop.permute.xlu0 %1957
  %v1960 = vmul.f32 %v1953, %v1958
  %1962 = vrot.lane.b32.xlu0 %v1960, 32
  %v1963 = vpop.permute.xlu0 %1962
  %v1965 = vadd.f32 %v1955, %v1963
  %v1966 = vtanh.pop %v1965
  %1968 = vrot.lane.b32.xlu0 %v1966, 32
  %v1969 = vpop.permute.xlu0 %1968
  %v1971 = vmul.f32 %v1953, %v1969
  %v1972 = vld [vmem:[#allocation2 + $0x50] sm:$0xff]
  %1974 = vrot.lane.b32.xlu0 %v1971, 64
  %v1975 = vpop.permute.xlu0 %1974
  %v1976 = vsel %vm202, %v1975, 0
  %1978 = vmatpush.msra.mxu0 0.0
  %1979 = vmatpush.msra.mxu0 0.0
  %1980 = vmatpush.msra.mxu0 0.0
  %1981 = vmatpush.msra.mxu0 0.0
  %1982 = vmatpush.msra.mxu0 0.0
  %1983 = vmatpush.msra.mxu0 0.0
  %1984 = vmatpush.msra.mxu0 0.0
  %1985 = vmatpush.msra.mxu0 0.0
  %1986 = vmatpush.msra.mxu0 0.0
  %1987 = vmatpush.msra.mxu0 0.0
  %1988 = vmatpush.msra.mxu0 0.0
  %1989 = vmatpush.msra.mxu0 0.0
  %1990 = vmatpush.msra.mxu0 %v1329
  %1991 = vmatpush.msra.mxu0 %v1328
  %1992 = vmatpush.msra.mxu0 %v1327
  %1993 = vmatpush.msra.mxu0 %v1326
  %1994 = vmatmul.f32.gmra.mxu0 %v1976
  %v1995 = vpop.f32.mrf.mxu0
  %v1996 = vadd.f32 0.0, %v1995
  %1997 = vdwg.mxu0
  %v1998 = vadd.f32 %v1972, %v1996
  %v1999 = vxor.u32 %v1998, 2147483648
  %v2000 = vmul.f32 %v1999, 1.442695
  %v2001 = vpow.pop %v2000
  %v2002 = vadd.f32 %v2001, 1.0
  %v2003 = vrcp.pop %v2002
  %v2004 = vmul.f32 %v2002, %v2003
  %v2005 = vsub.f32 1.0, %v2004
  %v2006 = vmul.f32 %v2003, %v2005
  %v2007 = vadd.f32 %v2003, %v2006
  %vm2008 = vweird.f32 %v2002
  %vm2009 = vweird.f32 %v2003
  %vm2010 = vmor %vm2008, %vm2009
  %v2011 = vsel %vm2010, %v2003, %v2007
  %v2012 = vand.u32 2147483647, %v2002
  %vm2013 = vcmp.eq.f32.partialorder %v2012, 8.507059e+37
  %v2014 = vand.u32 %v2002, 2147483648
  %v2015 = vor.u32 1.1754944e-38, %v2014
  %v2016 = vsel %vm2013, %v2015, %v2011
  %v2017 = vmul.f32 1.0, %v2016
  %v2018 = vtanh.pop %v1998
  %v2019 = vmul.f32 %v2017, %v1965
  %2021 = vrot.lane.b32.xlu0 %v2018, 32
  %v2022 = vpop.permute.xlu0 %2021
  %v2024 = vmul.f32 %v2017, %v2022
  %2026 = vrot.lane.b32.xlu0 %v2024, 32
  %v2027 = vpop.permute.xlu0 %2026
  %v2029 = vadd.f32 %v2019, %v2027
  %v2030 = vtanh.pop %v2029
  %2032 = vrot.lane.b32.xlu0 %v2030, 32
  %v2033 = vpop.permute.xlu0 %2032
  %v2035 = vmul.f32 %v2017, %v2033
  %v2036 = vld [vmem:[#allocation2 + $0x58] sm:$0xff]
  %2038 = vrot.lane.b32.xlu0 %v2035, 64
  %v2039 = vpop.permute.xlu0 %2038
  %v2040 = vsel %vm202, %v2039, 0
  %2042 = vmatpush.msra.mxu0 0.0
  %2043 = vmatpush.msra.mxu0 0.0
  %2044 = vmatpush.msra.mxu0 0.0
  %2045 = vmatpush.msra.mxu0 0.0
  %2046 = vmatpush.msra.mxu0 0.0
  %2047 = vmatpush.msra.mxu0 0.0
  %2048 = vmatpush.msra.mxu0 0.0
  %2049 = vmatpush.msra.mxu0 0.0
  %2050 = vmatpush.msra.mxu0 0.0
  %2051 = vmatpush.msra.mxu0 0.0
  %2052 = vmatpush.msra.mxu0 0.0
  %2053 = vmatpush.msra.mxu0 0.0
  %2054 = vmatpush.msra.mxu0 %v1329
  %2055 = vmatpush.msra.mxu0 %v1328
  %2056 = vmatpush.msra.mxu0 %v1327
  %2057 = vmatpush.msra.mxu0 %v1326
  %2058 = vmatmul.f32.gmra.mxu0 %v2040
  %v2059 = vpop.f32.mrf.mxu0
  %v2060 = vadd.f32 0.0, %v2059
  %2061 = vdwg.mxu0
  %v2062 = vadd.f32 %v2036, %v2060
  %v2063 = vxor.u32 %v2062, 2147483648
  %v2064 = vmul.f32 %v2063, 1.442695
  %v2065 = vpow.pop %v2064
  %v2066 = vadd.f32 %v2065, 1.0
  %v2067 = vrcp.pop %v2066
  %v2068 = vmul.f32 %v2066, %v2067
  %v2069 = vsub.f32 1.0, %v2068
  %v2070 = vmul.f32 %v2067, %v2069
  %v2071 = vadd.f32 %v2067, %v2070
  %vm2072 = vweird.f32 %v2066
  %vm2073 = vweird.f32 %v2067
  %vm2074 = vmor %vm2072, %vm2073
  %v2075 = vsel %vm2074, %v2067, %v2071
  %v2076 = vand.u32 2147483647, %v2066
  %vm2077 = vcmp.eq.f32.partialorder %v2076, 8.507059e+37
  %v2078 = vand.u32 %v2066, 2147483648
  %v2079 = vor.u32 1.1754944e-38, %v2078
  %v2080 = vsel %vm2077, %v2079, %v2075
  %v2081 = vmul.f32 1.0, %v2080
  %v2082 = vtanh.pop %v2062
  %v2083 = vmul.f32 %v2081, %v2029
  %2085 = vrot.lane.b32.xlu0 %v2082, 32
  %v2086 = vpop.permute.xlu0 %2085
  %v2088 = vmul.f32 %v2081, %v2086
  %2090 = vrot.lane.b32.xlu0 %v2088, 32
  %v2091 = vpop.permute.xlu0 %2090
  %v2093 = vadd.f32 %v2083, %v2091
  %v2094 = vtanh.pop %v2093
  %2096 = vrot.lane.b32.xlu0 %v2094, 32
  %v2097 = vpop.permute.xlu0 %2096
  %v2099 = vmul.f32 %v2081, %v2097
  %v2100 = vld [vmem:[#allocation2 + $0x60] sm:$0xff]
  %2102 = vrot.lane.b32.xlu0 %v2099, 64
  %v2103 = vpop.permute.xlu0 %2102
  %v2104 = vsel %vm202, %v2103, 0
  %2106 = vmatpush.msra.mxu0 0.0
  %2107 = vmatpush.msra.mxu0 0.0
  %2108 = vmatpush.msra.mxu0 0.0
  %2109 = vmatpush.msra.mxu0 0.0
  %2110 = vmatpush.msra.mxu0 0.0
  %2111 = vmatpush.msra.mxu0 0.0
  %2112 = vmatpush.msra.mxu0 0.0
  %2113 = vmatpush.msra.mxu0 0.0
  %2114 = vmatpush.msra.mxu0 0.0
  %2115 = vmatpush.msra.mxu0 0.0
  %2116 = vmatpush.msra.mxu0 0.0
  %2117 = vmatpush.msra.mxu0 0.0
  %2118 = vmatpush.msra.mxu0 %v1329
  %2119 = vmatpush.msra.mxu0 %v1328
  %2120 = vmatpush.msra.mxu0 %v1327
  %2121 = vmatpush.msra.mxu0 %v1326
  %2122 = vmatmul.f32.gmra.mxu0 %v2104
  %v2123 = vpop.f32.mrf.mxu0
  %v2124 = vadd.f32 0.0, %v2123
  %2125 = vdwg.mxu0
  %v2126 = vadd.f32 %v2100, %v2124
  %v2127 = vxor.u32 %v2126, 2147483648
  %v2128 = vmul.f32 %v2127, 1.442695
  %v2129 = vpow.pop %v2128
  %v2130 = vadd.f32 %v2129, 1.0
  %v2131 = vrcp.pop %v2130
  %v2132 = vmul.f32 %v2130, %v2131
  %v2133 = vsub.f32 1.0, %v2132
  %v2134 = vmul.f32 %v2131, %v2133
  %v2135 = vadd.f32 %v2131, %v2134
  %vm2136 = vweird.f32 %v2130
  %vm2137 = vweird.f32 %v2131
  %vm2138 = vmor %vm2136, %vm2137
  %v2139 = vsel %vm2138, %v2131, %v2135
  %v2140 = vand.u32 2147483647, %v2130
  %vm2141 = vcmp.eq.f32.partialorder %v2140, 8.507059e+37
  %v2142 = vand.u32 %v2130, 2147483648
  %v2143 = vor.u32 1.1754944e-38, %v2142
  %v2144 = vsel %vm2141, %v2143, %v2139
  %v2145 = vmul.f32 1.0, %v2144
  %v2146 = vtanh.pop %v2126
  %v2147 = vmul.f32 %v2145, %v2093
  %2149 = vrot.lane.b32.xlu0 %v2146, 32
  %v2150 = vpop.permute.xlu0 %2149
  %v2152 = vmul.f32 %v2145, %v2150
  %2154 = vrot.lane.b32.xlu0 %v2152, 32
  %v2155 = vpop.permute.xlu0 %2154
  %v2157 = vadd.f32 %v2147, %v2155
  %v2158 = vtanh.pop %v2157
  %2160 = vrot.lane.b32.xlu0 %v2158, 32
  %v2161 = vpop.permute.xlu0 %2160
  %v2163 = vmul.f32 %v2145, %v2161
  %v2164 = vld [vmem:[#allocation2 + $0x68] sm:$0xff]
  %2166 = vrot.lane.b32.xlu0 %v2163, 64
  %v2167 = vpop.permute.xlu0 %2166
  %v2168 = vsel %vm202, %v2167, 0
  %2170 = vmatpush.msra.mxu0 0.0
  %2171 = vmatpush.msra.mxu0 0.0
  %2172 = vmatpush.msra.mxu0 0.0
  %2173 = vmatpush.msra.mxu0 0.0
  %2174 = vmatpush.msra.mxu0 0.0
  %2175 = vmatpush.msra.mxu0 0.0
  %2176 = vmatpush.msra.mxu0 0.0
  %2177 = vmatpush.msra.mxu0 0.0
  %2178 = vmatpush.msra.mxu0 0.0
  %2179 = vmatpush.msra.mxu0 0.0
  %2180 = vmatpush.msra.mxu0 0.0
  %2181 = vmatpush.msra.mxu0 0.0
  %2182 = vmatpush.msra.mxu0 %v1329
  %2183 = vmatpush.msra.mxu0 %v1328
  %2184 = vmatpush.msra.mxu0 %v1327
  %2185 = vmatpush.msra.mxu0 %v1326
  %2186 = vmatmul.f32.gmra.mxu0 %v2168
  %v2187 = vpop.f32.mrf.mxu0
  %v2188 = vadd.f32 0.0, %v2187
  %2189 = vdwg.mxu0
  %v2190 = vadd.f32 %v2164, %v2188
  %v2191 = vxor.u32 %v2190, 2147483648
  %v2192 = vmul.f32 %v2191, 1.442695
  %v2193 = vpow.pop %v2192
  %v2194 = vadd.f32 %v2193, 1.0
  %v2195 = vrcp.pop %v2194
  %v2196 = vmul.f32 %v2194, %v2195
  %v2197 = vsub.f32 1.0, %v2196
  %v2198 = vmul.f32 %v2195, %v2197
  %v2199 = vadd.f32 %v2195, %v2198
  %vm2200 = vweird.f32 %v2194
  %vm2201 = vweird.f32 %v2195
  %vm2202 = vmor %vm2200, %vm2201
  %v2203 = vsel %vm2202, %v2195, %v2199
  %v2204 = vand.u32 2147483647, %v2194
  %vm2205 = vcmp.eq.f32.partialorder %v2204, 8.507059e+37
  %v2206 = vand.u32 %v2194, 2147483648
  %v2207 = vor.u32 1.1754944e-38, %v2206
  %v2208 = vsel %vm2205, %v2207, %v2203
  %v2209 = vmul.f32 1.0, %v2208
  %v2210 = vtanh.pop %v2190
  %v2211 = vmul.f32 %v2209, %v2157
  %2213 = vrot.lane.b32.xlu0 %v2210, 32
  %v2214 = vpop.permute.xlu0 %2213
  %v2216 = vmul.f32 %v2209, %v2214
  %2218 = vrot.lane.b32.xlu0 %v2216, 32
  %v2219 = vpop.permute.xlu0 %2218
  %v2221 = vadd.f32 %v2211, %v2219
  %v2222 = vtanh.pop %v2221
  %2224 = vrot.lane.b32.xlu0 %v2222, 32
  %v2225 = vpop.permute.xlu0 %2224
  %v2227 = vmul.f32 %v2209, %v2225
  %v2228 = vld [vmem:[#allocation2 + $0x70] sm:$0xff]
  %2230 = vrot.lane.b32.xlu0 %v2227, 64
  %v2231 = vpop.permute.xlu0 %2230
  %v2232 = vsel %vm202, %v2231, 0
  %2234 = vmatpush.msra.mxu0 0.0
  %2235 = vmatpush.msra.mxu0 0.0
  %2236 = vmatpush.msra.mxu0 0.0
  %2237 = vmatpush.msra.mxu0 0.0
  %2238 = vmatpush.msra.mxu0 0.0
  %2239 = vmatpush.msra.mxu0 0.0
  %2240 = vmatpush.msra.mxu0 0.0
  %2241 = vmatpush.msra.mxu0 0.0
  %2242 = vmatpush.msra.mxu0 0.0
  %2243 = vmatpush.msra.mxu0 0.0
  %2244 = vmatpush.msra.mxu0 0.0
  %2245 = vmatpush.msra.mxu0 0.0
  %2246 = vmatpush.msra.mxu0 %v1329
  %2247 = vmatpush.msra.mxu0 %v1328
  %2248 = vmatpush.msra.mxu0 %v1327
  %2249 = vmatpush.msra.mxu0 %v1326
  %2250 = vmatmul.f32.gmra.mxu0 %v2232
  %v2251 = vpop.f32.mrf.mxu0
  %v2252 = vadd.f32 0.0, %v2251
  %2253 = vdwg.mxu0
  %v2254 = vadd.f32 %v2228, %v2252
  %v2255 = vxor.u32 %v2254, 2147483648
  %v2256 = vmul.f32 %v2255, 1.442695
  %v2257 = vpow.pop %v2256
  %v2258 = vadd.f32 %v2257, 1.0
  %v2259 = vrcp.pop %v2258
  %v2260 = vmul.f32 %v2258, %v2259
  %v2261 = vsub.f32 1.0, %v2260
  %v2262 = vmul.f32 %v2259, %v2261
  %v2263 = vadd.f32 %v2259, %v2262
  %vm2264 = vweird.f32 %v2258
  %vm2265 = vweird.f32 %v2259
  %vm2266 = vmor %vm2264, %vm2265
  %v2267 = vsel %vm2266, %v2259, %v2263
  %v2268 = vand.u32 2147483647, %v2258
  %vm2269 = vcmp.eq.f32.partialorder %v2268, 8.507059e+37
  %v2270 = vand.u32 %v2258, 2147483648
  %v2271 = vor.u32 1.1754944e-38, %v2270
  %v2272 = vsel %vm2269, %v2271, %v2267
  %v2273 = vmul.f32 1.0, %v2272
  %v2274 = vtanh.pop %v2254
  %v2275 = vmul.f32 %v2273, %v2221
  %2277 = vrot.lane.b32.xlu0 %v2274, 32
  %v2278 = vpop.permute.xlu0 %2277
  %v2280 = vmul.f32 %v2273, %v2278
  %2282 = vrot.lane.b32.xlu0 %v2280, 32
  %v2283 = vpop.permute.xlu0 %2282
  %v2285 = vadd.f32 %v2275, %v2283
  %v2286 = vtanh.pop %v2285
  %2288 = vrot.lane.b32.xlu0 %v2286, 32
  %v2289 = vpop.permute.xlu0 %2288
  %v2291 = vmul.f32 %v2273, %v2289
  %v2292 = vld [vmem:[#allocation2 + $0x78] sm:$0xff]
  %2294 = vrot.lane.b32.xlu0 %v2291, 64
  %v2295 = vpop.permute.xlu0 %2294
  %v2296 = vsel %vm202, %v2295, 0
  %2298 = vmatpush.msra.mxu0 0.0
  %2299 = vmatpush.msra.mxu0 0.0
  %2300 = vmatpush.msra.mxu0 0.0
  %2301 = vmatpush.msra.mxu0 0.0
  %2302 = vmatpush.msra.mxu0 0.0
  %2303 = vmatpush.msra.mxu0 0.0
  %2304 = vmatpush.msra.mxu0 0.0
  %2305 = vmatpush.msra.mxu0 0.0
  %2306 = vmatpush.msra.mxu0 0.0
  %2307 = vmatpush.msra.mxu0 0.0
  %2308 = vmatpush.msra.mxu0 0.0
  %2309 = vmatpush.msra.mxu0 0.0
  %2310 = vmatpush.msra.mxu0 %v1329
  %2311 = vmatpush.msra.mxu0 %v1328
  %2312 = vmatpush.msra.mxu0 %v1327
  %2313 = vmatpush.msra.mxu0 %v1326
  %2314 = vmatmul.f32.gmra.mxu0 %v2296
  %v2315 = vpop.f32.mrf.mxu0
  %v2316 = vadd.f32 0.0, %v2315
  %2317 = vdwg.mxu0
  %v2318 = vadd.f32 %v2292, %v2316
  %v2319 = vxor.u32 %v2318, 2147483648
  %v2320 = vmul.f32 %v2319, 1.442695
  %v2321 = vpow.pop %v2320
  %v2322 = vadd.f32 %v2321, 1.0
  %v2323 = vrcp.pop %v2322
  %v2324 = vmul.f32 %v2322, %v2323
  %v2325 = vsub.f32 1.0, %v2324
  %v2326 = vmul.f32 %v2323, %v2325
  %v2327 = vadd.f32 %v2323, %v2326
  %vm2328 = vweird.f32 %v2322
  %vm2329 = vweird.f32 %v2323
  %vm2330 = vmor %vm2328, %vm2329
  %v2331 = vsel %vm2330, %v2323, %v2327
  %v2332 = vand.u32 2147483647, %v2322
  %vm2333 = vcmp.eq.f32.partialorder %v2332, 8.507059e+37
  %v2334 = vand.u32 %v2322, 2147483648
  %v2335 = vor.u32 1.1754944e-38, %v2334
  %v2336 = vsel %vm2333, %v2335, %v2331
  %v2337 = vmul.f32 1.0, %v2336
  %v2338 = vtanh.pop %v2318
  %v2339 = vmul.f32 %v2337, %v2285
  %2341 = vrot.lane.b32.xlu0 %v2338, 32
  %v2342 = vpop.permute.xlu0 %2341
  %v2344 = vmul.f32 %v2337, %v2342
  %2346 = vrot.lane.b32.xlu0 %v2344, 32
  %v2347 = vpop.permute.xlu0 %2346
  %v2349 = vadd.f32 %v2339, %v2347
  %v2350 = vtanh.pop %v2349
  %2352 = vrot.lane.b32.xlu0 %v2350, 32
  %v2353 = vpop.permute.xlu0 %2352
  %v2355 = vmul.f32 %v2337, %v2353
  %v2356 = vld [vmem:[%s9] sm:$0xff]
  %v2357 = vld [vmem:[%s9 + $0x8] sm:$0xff]
  %v2358 = vld [vmem:[%s9 + $0x10] sm:$0xff]
  %v2359 = vld [vmem:[%s9 + $0x18] sm:$0xff]
  %v2360 = vld [vmem:[%s10] sm:$0x1]
  %v2362 = vperm.slane %v2360, 0
  %2365 = vrot.lane.b32.xlu0 %v2355, 64
  %v2366 = vpop.permute.xlu0 %2365
  %v2367 = vsel %vm202, %v2366, 0
  %2369 = vmatpush.msra.mxu0 0.0
  %2370 = vmatpush.msra.mxu0 0.0
  %2371 = vmatpush.msra.mxu0 0.0
  %2372 = vmatpush.msra.mxu0 0.0
  %2373 = vmatpush.msra.mxu0 0.0
  %2374 = vmatpush.msra.mxu0 0.0
  %2375 = vmatpush.msra.mxu0 0.0
  %2376 = vmatpush.msra.mxu0 0.0
  %2377 = vmatpush.msra.mxu0 0.0
  %2378 = vmatpush.msra.mxu0 0.0
  %2379 = vmatpush.msra.mxu0 0.0
  %2380 = vmatpush.msra.mxu0 0.0
  %2381 = vmatpush.msra.mxu0 %v2359
  %2382 = vmatpush.msra.mxu0 %v2358
  %2383 = vmatpush.msra.mxu0 %v2357
  %2384 = vmatpush.msra.mxu0 %v2356
  %2385 = vmatmul.f32.gmra.mxu0 %v2367
  %v2386 = vpop.f32.mrf.mxu0
  %v2387 = vadd.f32 %v2362, %v2386
  %2388 = vdwg.mxu0
  %v2389 = vmax.f32 %v2387, 0.0
  %v2390 = vld [vmem:[%s11] sm:$0xff]
  %v2391 = vld [vmem:[%s11 + $0x8] sm:$0xff]
  %v2392 = vld [vmem:[%s11 + $0x10] sm:$0xff]
  %v2393 = vld [vmem:[%s11 + $0x18] sm:$0xff]
  %v2394 = vld [vmem:[%s11 + $0x20] sm:$0xff]
  %v2395 = vld [vmem:[%s11 + $0x28] sm:$0xff]
  %v2396 = vld [vmem:[%s11 + $0x30] sm:$0xff]
  %v2397 = vld [vmem:[%s11 + $0x38] sm:$0xff]
  %v2398 = vld [vmem:[%s11 + $0x40] sm:$0xff]
  %v2399 = vld [vmem:[%s11 + $0x48] sm:$0xff]
  %v2400 = vld [vmem:[%s11 + $0x50] sm:$0xff]
  %v2401 = vld [vmem:[%s11 + $0x58] sm:$0xff]
  %v2402 = vld [vmem:[%s11 + $0x60] sm:$0xff]
  %v2403 = vld [vmem:[%s11 + $0x68] sm:$0xff]
  %v2404 = vld [vmem:[%s11 + $0x70] sm:$0xff]
  %v2405 = vld [vmem:[%s11 + $0x78] sm:$0xff]
  %v2406 = vld [vmem:[%s12] sm:$0x1]
  %v2408 = vperm.slane %v2406, 0
  %2410 = vmatpush.msra.mxu0 %v2405
  %2411 = vmatpush.msra.mxu0 %v2404
  %2412 = vmatpush.msra.mxu0 %v2403
  %2413 = vmatpush.msra.mxu0 %v2402
  %2414 = vmatpush.msra.mxu0 %v2401
  %2415 = vmatpush.msra.mxu0 %v2400
  %2416 = vmatpush.msra.mxu0 %v2399
  %2417 = vmatpush.msra.mxu0 %v2398
  %2418 = vmatpush.msra.mxu0 %v2397
  %2419 = vmatpush.msra.mxu0 %v2396
  %2420 = vmatpush.msra.mxu0 %v2395
  %2421 = vmatpush.msra.mxu0 %v2394
  %2422 = vmatpush.msra.mxu0 %v2393
  %2423 = vmatpush.msra.mxu0 %v2392
  %2424 = vmatpush.msra.mxu0 %v2391
  %2425 = vmatpush.msra.mxu0 %v2390
  %2426 = vmatmul.f32.gmra.mxu0 %v2389
  %v2427 = vpop.f32.mrf.mxu0
  %v2428 = vadd.f32 %v2408, %v2427
  %2429 = vdwg.mxu0
  %v2430 = vxor.u32 %v2428, 2147483648
  %v2431 = vmul.f32 %v2430, 1.442695
  %v2432 = vpow.pop %v2431
  %v2433 = vadd.f32 %v2432, 1.0
  %v2434 = vrcp.pop %v2433
  %v2435 = vmul.f32 %v2433, %v2434
  %v2436 = vsub.f32 1.0, %v2435
  %v2437 = vmul.f32 %v2434, %v2436
  %v2438 = vadd.f32 %v2434, %v2437
  %vm2439 = vweird.f32 %v2433
  %vm2440 = vweird.f32 %v2434
  %vm2441 = vmor %vm2439, %vm2440
  %v2442 = vsel %vm2441, %v2434, %v2438
  %v2443 = vand.u32 2147483647, %v2433
  %vm2444 = vcmp.eq.f32.partialorder %v2443, 8.507059e+37
  %v2445 = vand.u32 %v2433, 2147483648
  %v2446 = vor.u32 1.1754944e-38, %v2445
  %v2447 = vsel %vm2444, %v2446, %v2442
  %v2448 = vmul.f32 1.0, %v2447
  %vm2449 = vcmask 31744
  %2450 = vst.msk [vmem:[%s13] sm:$0xff] %vm2449, %v2448
  // Predicated region
  $region54: #{tpu_custom_call.1} parent=0 // pred_check
    _
  $region55: #{tpu_custom_call.1} parent=0 // pred_check_branch
    %2452 = sbr.rel (0) target = $region57
  $region56: #{tpu_custom_call.1} parent=0 // pred_region
    _
  $region57: #{tpu_custom_call.1} parent=0 // pred_fallthru
    _
  // Predicated region
  $region58: #{tpu_custom_call.1} parent=0 // pred_check
    _
  $region59: #{tpu_custom_call.1} parent=0 // pred_check_branch
    %2454 = sbr.rel (0) target = $region61
  $region60: #{tpu_custom_call.1} parent=0 // pred_region
    _
  $region61: #{tpu_custom_call.1} parent=0 // pred_fallthru
    _

</llo_original>
